<compile_context>
chip_gen: v7x
topology: tpu7x:2x2x1
jax: 0.10.0
libtpu: 0.0.40
codegen_flags: <defaults>
</compile_context>

<pallas_src>
import jax
import jax.numpy as jnp
import numpy as np
from jax.experimental import pallas as pl
from jax.experimental.pallas import tpu as pltpu


def _round_up(x, m):
    return ((x + m - 1) // m) * m


def _tpu_vmem_capacity_bytes():
    """Per-TensorCore VMEM capacity; conservative 64 MiB (v7x) fallback."""
    try:
        return int(pltpu.get_tpu_info().vmem_capacity_bytes)
    except Exception:
        return 64 * 1024 * 1024


def _estimate_vmem_bytes(bb, Np, Ep, Hp, K):
    """Rough per-grid-step VMEM working set (bytes) for bb graphs per step."""
    f32 = 4
    idx_lanes = max(_round_up(2 * K, 128), 128)              # int32 idx is lane-padded
    cs_blk = bb * Np * Hp * f32
    em_blk = bb * Ep * Hp * f32
    out_blk = bb * Np * Hp * f32
    idx_blk = bb * Np * idx_lanes * 4
    pipelined = 2 * (cs_blk + em_blk + out_blk + idx_blk)    # double-buffered I/O
    weights = (6 * Hp * Hp + 3 * Hp) * f32                   # single-buffered weights + bias
    adjacency = 2 * bb * Np * (Np + Ep) * f32                # Mn/Me + compare temporaries
    temps = bb * Np * (3 * Hp + 2 * Hp + 3 * Hp) * f32       # act_proj / cs_proj / activation
    return pipelined + weights + adjacency + temps


def _choose_block_batch(B, Np, Ep, Hp, K, vmem_budget):
    """Largest graphs-per-step fitting VMEM while giving >= 2 (prefer even) grid steps."""
    if B == 1:
        return 1
    divisors = [d for d in range(B, 0, -1) if B % d == 0]

    def fits(bb):
        return _estimate_vmem_bytes(bb, Np, Ep, Hp, K) <= vmem_budget

    for require_even_steps in (True, False):
        for bb in divisors:
            steps = B // bb
            if steps < 2:                      # keep both v7x TensorCores busy
                continue
            if require_even_steps and steps % 2 != 0:
                continue
            if fits(bb):
                return bb
    # TODO(synk): graphs too large for a single step need the neighbour-source
    # axis tiled with an inner accumulation into `activation`.
    return 1


def _make_kernel(K, Hp, adj_precision):
    """Kernel over one batch block of bb graphs: feature refs are [bb, Np|Ep, Hp]."""

    def kernel(cs_ref, em_ref, idx_ref, wact_ref, wcs_ref, wh_ref, b_ref, out_ref):
        cs3 = cs_ref[...]                     # [bb, Np, Hp] f32
        em3 = em_ref[...]                     # [bb, Ep, Hp] f32
        idx = idx_ref[...]                    # [bb, Np, 2K] int32 (graph-local, -1 = masked)
        bb, Np, _ = cs3.shape
        Ep = em3.shape[1]

        # Per-graph multi-hot adjacency (block-diagonal structure made explicit:
        # no bb-fold redundant compare/select work, no dense [bb*Np, bb*Np] matrix).
        node_iota = jax.lax.broadcasted_iota(jnp.int32, (bb, Np, Np), 2)
        edge_iota = jax.lax.broadcasted_iota(jnp.int32, (bb, Np, Ep), 2)
        Mn = jnp.zeros((bb, Np, Np), jnp.float32)
        Me = jnp.zeros((bb, Np, Ep), jnp.float32)
        # TODO(synk): on v6e/v7x build Mn/Me in bfloat16 and/or use a lane-major
        # [2K, rows] idx layout so the per-k index broadcast is a cheap sublane
        # splat; keep f32 on v5e (no bf16 VALU/EUP).
        for k in range(K):                    # K is small & static -> unrolled
            ank = idx[:, :, k:k + 1]          # [bb, Np, 1] node index or -1
            aek = idx[:, :, K + k:K + k + 1]  # [bb, Np, 1] edge index or -1
            Mn = Mn + (node_iota == ank).astype(jnp.float32)
            Me = Me + (edge_iota == aek).astype(jnp.float32)

        # Gather + mask + sum over K  ==  per-graph one-hot matmul (batched MXU).
        activation3 = (
            jnp.einsum("bij,bjh->bih", Mn, cs3,
                       preferred_element_type=jnp.float32, precision=adj_precision)
            + jnp.einsum("bie,beh->bih", Me, em3,
                         preferred_element_type=jnp.float32, precision=adj_precision))

        # Flatten per-graph rows into one MXU-friendly [bb*Np, Hp] slab.
        # Np is a multiple of 8, so this merge is layout-preserving.
        R = bb * Np
        activation = activation3.reshape(R, Hp)
        cs = cs3.reshape(R, Hp)

        # Split-weight gates (no lane concatenation).  Bias folded into act_proj.
        act_proj = jnp.dot(activation, wact_ref[...],
                           preferred_element_type=jnp.float32) + b_ref[...]   # [R, 3Hp]
        cs_proj = jnp.dot(cs, wcs_ref[...],
                          preferred_element_type=jnp.float32)                 # [R, 2Hp]

        update_gate = jax.nn.sigmoid(act_proj[:, 0:Hp] + cs_proj[:, 0:Hp])
        reset_gate = jax.nn.sigmoid(act_proj[:, Hp:2 * Hp] + cs_proj[:, Hp:2 * Hp])
        new_state = jnp.tanh(
            act_proj[:, 2 * Hp:3 * Hp]
            + jnp.dot(reset_gate * cs, wh_ref[...], preferred_element_type=jnp.float32))

        out = (1.0 - update_gate) * cs + update_gate * new_state
        out_ref[...] = out.reshape(bb, Np, Hp).astype(out_ref.dtype)

    return kernel


def pack_gate_params(params, hp_emb_size):
    """One-time packing of the three [2H, H] gate weights into lane-dense,
    concatenation-free slabs.  Do this at parameter-prep time, not every step."""
    wu, bu, wr, br, wh, bh = params
    H = hp_emb_size
    Hp = _round_up(H, 128)
    pad = Hp - H

    def pad_w(w):       # [H, H] -> [Hp, Hp]
        return jnp.pad(w, ((0, pad), (0, pad))) if pad else w

    def pad_b(b):       # [1, H] -> [1, Hp]
        return jnp.pad(b, ((0, 0), (0, pad))) if pad else b

    w_act = jnp.concatenate([pad_w(wu[:H]), pad_w(wr[:H]), pad_w(wh[:H])], axis=1)  # [Hp, 3Hp]
    w_cs = jnp.concatenate([pad_w(wu[H:]), pad_w(wr[H:])], axis=1)                  # [Hp, 2Hp]
    w_h = pad_w(wh[H:])                                                             # [Hp, Hp]
    b_all = jnp.concatenate([pad_b(bu), pad_b(br), pad_b(bh)], axis=1)              # [1, 3Hp]
    # TODO(synk): on v7x store w_act/w_cs/w_h in bfloat16 (halves resident weight
    # VMEM, MXU-native input rate) and accumulate in f32 inside the kernel.
    return w_act, w_cs, w_h, b_all


def pack_adjacency(A_nodes, A_edges, nodes_padded):
    """Graph-local neighbour indices with a -1 sentinel for masked (index 0) and
    for padded node rows.  Do this once per graph, not per propagation step."""
    an = jnp.where(A_nodes != 0, A_nodes.astype(jnp.int32), -1)
    ae = jnp.where(A_edges != 0, A_edges.astype(jnp.int32), -1)
    idx = jnp.concatenate([an, ae], axis=-1)                     # [B, N, 2K]
    pad_rows = nodes_padded - idx.shape[1]
    if pad_rows:
        idx = jnp.pad(idx, ((0, 0), (0, pad_rows), (0, 0)), constant_values=-1)
    return idx


def gated_propagation_packed(cs_padded, em_padded, idx, packed_weights, *, block_batch=None):
    """cs_padded: [B, Np, Hp], em_padded: [B, Ep, Hp], idx: [B, Np, 2K] (pack_adjacency),
    packed_weights: output of pack_gate_params.  Returns [B, Np, Hp] float32."""
    B, Np, Hp = cs_padded.shape
    Ep = em_padded.shape[1]
    K = idx.shape[-1] // 2
    w_act, w_cs, w_h, b_all = packed_weights
    assert Np % 8 == 0 and Ep % 8 == 0 and Hp % 128 == 0

    vmem_cap = _tpu_vmem_capacity_bytes()
    if block_batch is None:
        bb = _choose_block_batch(B, Np, Ep, Hp, K, vmem_budget=int(0.65 * vmem_cap))
    else:
        bb = block_batch
    assert B % bb == 0, "block_batch must divide the batch size"
    G = B // bb

    vmem_limit = max(32 * 1024 * 1024,
                     min(int(1.4 * _estimate_vmem_bytes(bb, Np, Ep, Hp, K)),
                         int(0.85 * vmem_cap)))

    def run(adj_precision, single_buffer_weights):
        kernel = _make_kernel(K, Hp, adj_precision)

        def weight_spec(shape):
            if single_buffer_weights:
                return pl.BlockSpec(shape, lambda g: (0,) * len(shape),
                                    pipeline_mode=pl.Buffered(1))
            return pl.BlockSpec(shape, lambda g: (0,) * len(shape))

        return pl.pallas_call(
            kernel,
            out_shape=jax.ShapeDtypeStruct((B, Np, Hp), jnp.float32),
            grid=(G,),
            in_specs=[
                pl.BlockSpec((bb, Np, Hp), lambda g: (g, 0, 0)),     # current_state block
                pl.BlockSpec((bb, Ep, Hp), lambda g: (g, 0, 0)),     # edge block
                pl.BlockSpec((bb, Np, 2 * K), lambda g: (g, 0, 0)),  # packed indices
                weight_spec((Hp, 3 * Hp)),                           # W_act (grid-resident)
                weight_spec((Hp, 2 * Hp)),                           # W_cs  (grid-resident)
                weight_spec((Hp, Hp)),                               # W_h   (grid-resident)
                weight_spec((1, 3 * Hp)),                            # packed biases
            ],
            out_specs=pl.BlockSpec((bb, Np, Hp), lambda g: (g, 0, 0)),
            compiler_params=pltpu.CompilerParams(
                dimension_semantics=("parallel",),
                vmem_limit_bytes=vmem_limit,
            ),
        )(cs_padded, em_padded, idx, w_act, w_cs, w_h, b_all)

    try:
        out = run(jax.lax.Precision.HIGHEST, single_buffer_weights=True)
        jax.block_until_ready(out)
        return out
    except Exception:
        # TODO(synk): this JAX build rejected pl.Buffered(1) single-buffered weights
        # and/or Precision.HIGHEST in-kernel matmuls; fall back to the default-buffered,
        # default-precision configuration (previously validated to compile).
        return run(None, single_buffer_weights=False)


def gated_propagation(current_state, edges_m, A_nodes, A_edges, params, *, block_batch=None):
    """Drop-in equivalent of GatedPropagationModel.forward."""
    B, N, H = current_state.shape
    E = edges_m.shape[1]
    Hp = _round_up(H, 128)
    Np = _round_up(N, 8)
    Ep = _round_up(E, 8)

    # NOTE: for recurrent propagation, hoist the packing/padding below out of the
    # step loop (pack once; keep states persistently padded to [Np, Hp]).
    packed_w = pack_gate_params(params, H)
    idx = pack_adjacency(A_nodes, A_edges, Np)
    cs_p = jnp.pad(current_state, ((0, 0), (0, Np - N), (0, Hp - H)))
    em_p = jnp.pad(edges_m, ((0, 0), (0, Ep - E), (0, Hp - H)))

    out = gated_propagation_packed(cs_p, em_p, idx, packed_w, block_batch=block_batch)
    return out[:, :N, :H]


def reference(current_state, edges_m, A_nodes, A_edges, params):
    """Pure-JAX re-implementation of the PyTorch forward for verification."""
    wu, bu, wr, br, wh, bh = params
    nodes = jax.vmap(lambda cs_b, an_b: cs_b[an_b])(current_state, A_nodes)   # [B,N,K,H]
    edges = jax.vmap(lambda em_b, ae_b: em_b[ae_b])(edges_m, A_edges)         # [B,N,K,H]
    nmask = (A_nodes != 0).astype(jnp.float32)[..., None]
    emask = (A_edges != 0).astype(jnp.float32)[..., None]
    activation = (nodes * nmask + edges * emask).sum(axis=2)                  # [B,N,H]
    x1 = jnp.concatenate([activation, current_state], axis=-1)
    u = jax.nn.sigmoid(x1 @ wu + bu)
    r = jax.nn.sigmoid(x1 @ wr + br)
    x2 = jnp.concatenate([activation, r * current_state], axis=-1)
    h = jnp.tanh(x2 @ wh + bh)
    return (1.0 - u) * current_state + u * h


if __name__ == "__main__":
    B, N, E, K, H = 2, 8, 16, 4, 32   # batch, nodes/graph, edges/graph, edges/node, hp_emb_size

    key = jax.random.PRNGKey(0)
    k_cs, k_em, k_an, k_ae, kwu, kbu, kwr, kbr, kwh, kbh = jax.random.split(key, 10)

    current_state = jax.random.normal(k_cs, (B, N, H), dtype=jnp.float32)
    edges_m = jax.random.normal(k_em, (B, E, H), dtype=jnp.float32)
    A_nodes = jax.random.randint(k_an, (B, N, K), 0, N, dtype=jnp.int32)
    A_edges = jax.random.randint(k_ae, (B, N, K), 0, E, dtype=jnp.int32)

    # Deterministic parameter init (Linear: in=2H, out=H; stored as [2H, H] so y = x @ W + b).
    params = (
        0.1 * jax.random.normal(kwu, (2 * H, H), dtype=jnp.float32),
        0.1 * jax.random.normal(kbu, (1, H), dtype=jnp.float32),
        0.1 * jax.random.normal(kwr, (2 * H, H), dtype=jnp.float32),
        0.1 * jax.random.normal(kbr, (1, H), dtype=jnp.float32),
        0.1 * jax.random.normal(kwh, (2 * H, H), dtype=jnp.float32),
        0.1 * jax.random.normal(kbh, (1, H), dtype=jnp.float32),
    )

    out = gated_propagation(current_state, edges_m, A_nodes, A_edges, params)
    out = jax.block_until_ready(out)

    ref = jax.block_until_ready(
        reference(current_state, edges_m, A_nodes, A_edges, params))

    np.testing.assert_allclose(np.asarray(out), np.asarray(ref), rtol=1e-4, atol=1e-4)
    print("KERNEL_OK")
</pallas_src>

<mosaic_0001>
module attributes {stable_mosaic.version = 11 : i64} {
  func.func @kernel(%arg0: i32, %arg1: memref<1x8x128xf32, #tpu.memory_space<vmem>>, %arg2: memref<1x16x128xf32, #tpu.memory_space<vmem>>, %arg3: memref<1x8x8xi32, #tpu.memory_space<vmem>>, %arg4: memref<128x384xf32, #tpu.memory_space<vmem>>, %arg5: memref<128x256xf32, #tpu.memory_space<vmem>>, %arg6: memref<128x128xf32, #tpu.memory_space<vmem>>, %arg7: memref<1x384xf32, #tpu.memory_space<vmem>>, %arg8: memref<1x8x128xf32, #tpu.memory_space<vmem>>) attributes {dimension_semantics = [#tpu.dimension_semantics<parallel>], iteration_bounds = array<i64: 2>, scalar_prefetch = 0 : i64, scratch_operands = 0 : i64, tpu.core_type = #tpu.core_type<tc>, window_params = [{transform_indices = @transform_0, window_bounds = array<i64: 1, 8, 128>}, {transform_indices = @transform_1, window_bounds = array<i64: 1, 16, 128>}, {transform_indices = @transform_2, window_bounds = array<i64: 1, 8, 8>}, {pipeline_mode = #tpu.pipeline_mode<synchronous>, transform_indices = @transform_3, window_bounds = array<i64: 128, 384>}, {pipeline_mode = #tpu.pipeline_mode<synchronous>, transform_indices = @transform_4, window_bounds = array<i64: 128, 256>}, {pipeline_mode = #tpu.pipeline_mode<synchronous>, transform_indices = @transform_5, window_bounds = array<i64: 128, 128>}, {pipeline_mode = #tpu.pipeline_mode<synchronous>, transform_indices = @transform_6, window_bounds = array<i64: 1, 384>}, {transform_indices = @transform_7, window_bounds = array<i64: 1, 8, 128>}]} {
    %c0 = arith.constant 0 : index
    %c0_0 = arith.constant 0 : index
    %c0_1 = arith.constant 0 : index
    %0 = vector.load %arg1[%c0, %c0_0, %c0_1] : memref<1x8x128xf32, #tpu.memory_space<vmem>>, vector<1x8x128xf32>
    %c0_2 = arith.constant 0 : index
    %c0_3 = arith.constant 0 : index
    %c0_4 = arith.constant 0 : index
    %1 = vector.load %arg2[%c0_2, %c0_3, %c0_4] : memref<1x16x128xf32, #tpu.memory_space<vmem>>, vector<1x16x128xf32>
    %c0_5 = arith.constant 0 : index
    %c0_6 = arith.constant 0 : index
    %c0_7 = arith.constant 0 : index
    %2 = vector.load %arg3[%c0_5, %c0_6, %c0_7] : memref<1x8x8xi32, #tpu.memory_space<vmem>>, vector<1x8x8xi32>
    %3 = tpu.iota {dimensions = array<i32: 2>} : vector<1x8x8xi32>
    %4 = tpu.iota {dimensions = array<i32: 2>} : vector<1x8x16xi32>
    %cst = arith.constant 0.000000e+00 : f32
    %5 = vector.broadcast %cst : f32 to vector<1x8x8xf32>
    %cst_8 = arith.constant 0.000000e+00 : f32
    %6 = vector.broadcast %cst_8 : f32 to vector<1x8x16xf32>
    %7 = vector.extract_strided_slice %2 {offsets = [0, 0, 0], sizes = [1, 8, 1], strides = [1, 1, 1]} : vector<1x8x8xi32> to vector<1x8x1xi32>
    %8 = vector.extract_strided_slice %2 {offsets = [0, 0, 4], sizes = [1, 8, 1], strides = [1, 1, 1]} : vector<1x8x8xi32> to vector<1x8x1xi32>
    %9 = vector.broadcast %7 : vector<1x8x1xi32> to vector<1x8x8xi32>
    %10 = arith.cmpi eq, %3, %9 : vector<1x8x8xi32>
    %11 = arith.extui %10 : vector<1x8x8xi1> to vector<1x8x8xi32>
    %12 = arith.sitofp %11 : vector<1x8x8xi32> to vector<1x8x8xf32>
    %13 = arith.addf %5, %12 : vector<1x8x8xf32>
    %14 = vector.broadcast %8 : vector<1x8x1xi32> to vector<1x8x16xi32>
    %15 = arith.cmpi eq, %4, %14 : vector<1x8x16xi32>
    %16 = arith.extui %15 : vector<1x8x16xi1> to vector<1x8x16xi32>
    %17 = arith.sitofp %16 : vector<1x8x16xi32> to vector<1x8x16xf32>
    %18 = arith.addf %6, %17 : vector<1x8x16xf32>
    %19 = vector.extract_strided_slice %2 {offsets = [0, 0, 1], sizes = [1, 8, 1], strides = [1, 1, 1]} : vector<1x8x8xi32> to vector<1x8x1xi32>
    %20 = vector.extract_strided_slice %2 {offsets = [0, 0, 5], sizes = [1, 8, 1], strides = [1, 1, 1]} : vector<1x8x8xi32> to vector<1x8x1xi32>
    %21 = vector.broadcast %19 : vector<1x8x1xi32> to vector<1x8x8xi32>
    %22 = arith.cmpi eq, %3, %21 : vector<1x8x8xi32>
    %23 = arith.extui %22 : vector<1x8x8xi1> to vector<1x8x8xi32>
    %24 = arith.sitofp %23 : vector<1x8x8xi32> to vector<1x8x8xf32>
    %25 = arith.addf %13, %24 : vector<1x8x8xf32>
    %26 = vector.broadcast %20 : vector<1x8x1xi32> to vector<1x8x16xi32>
    %27 = arith.cmpi eq, %4, %26 : vector<1x8x16xi32>
    %28 = arith.extui %27 : vector<1x8x16xi1> to vector<1x8x16xi32>
    %29 = arith.sitofp %28 : vector<1x8x16xi32> to vector<1x8x16xf32>
    %30 = arith.addf %18, %29 : vector<1x8x16xf32>
    %31 = vector.extract_strided_slice %2 {offsets = [0, 0, 2], sizes = [1, 8, 1], strides = [1, 1, 1]} : vector<1x8x8xi32> to vector<1x8x1xi32>
    %32 = vector.extract_strided_slice %2 {offsets = [0, 0, 6], sizes = [1, 8, 1], strides = [1, 1, 1]} : vector<1x8x8xi32> to vector<1x8x1xi32>
    %33 = vector.broadcast %31 : vector<1x8x1xi32> to vector<1x8x8xi32>
    %34 = arith.cmpi eq, %3, %33 : vector<1x8x8xi32>
    %35 = arith.extui %34 : vector<1x8x8xi1> to vector<1x8x8xi32>
    %36 = arith.sitofp %35 : vector<1x8x8xi32> to vector<1x8x8xf32>
    %37 = arith.addf %25, %36 : vector<1x8x8xf32>
    %38 = vector.broadcast %32 : vector<1x8x1xi32> to vector<1x8x16xi32>
    %39 = arith.cmpi eq, %4, %38 : vector<1x8x16xi32>
    %40 = arith.extui %39 : vector<1x8x16xi1> to vector<1x8x16xi32>
    %41 = arith.sitofp %40 : vector<1x8x16xi32> to vector<1x8x16xf32>
    %42 = arith.addf %30, %41 : vector<1x8x16xf32>
    %43 = vector.extract_strided_slice %2 {offsets = [0, 0, 3], sizes = [1, 8, 1], strides = [1, 1, 1]} : vector<1x8x8xi32> to vector<1x8x1xi32>
    %44 = vector.extract_strided_slice %2 {offsets = [0, 0, 7], sizes = [1, 8, 1], strides = [1, 1, 1]} : vector<1x8x8xi32> to vector<1x8x1xi32>
    %45 = vector.broadcast %43 : vector<1x8x1xi32> to vector<1x8x8xi32>
    %46 = arith.cmpi eq, %3, %45 : vector<1x8x8xi32>
    %47 = arith.extui %46 : vector<1x8x8xi1> to vector<1x8x8xi32>
    %48 = arith.sitofp %47 : vector<1x8x8xi32> to vector<1x8x8xf32>
    %49 = arith.addf %37, %48 : vector<1x8x8xf32>
    %50 = vector.broadcast %44 : vector<1x8x1xi32> to vector<1x8x16xi32>
    %51 = arith.cmpi eq, %4, %50 : vector<1x8x16xi32>
    %52 = arith.extui %51 : vector<1x8x16xi1> to vector<1x8x16xi32>
    %53 = arith.sitofp %52 : vector<1x8x16xi32> to vector<1x8x16xf32>
    %54 = arith.addf %42, %53 : vector<1x8x16xf32>
    "tpu.trace_start"() <{level = 10 : i32, message = "bij,bjh->bih"}> : () -> ()
    %cst_9 = arith.constant dense<0.000000e+00> : vector<1x8x128xf32>
    %55 = tpu.matmul %49, %0, %cst_9 {dimension_numbers = #tpu.dot_dimension_numbers<[2], [1], [1], [2], [0, 0, 0, 1, 1, 2], [0], [0]>, precision = #tpu.contract_precision<fp32>} : vector<1x8x8xf32>, vector<1x8x128xf32>, vector<1x8x128xf32> -> vector<1x8x128xf32>
    "tpu.trace_stop"() : () -> ()
    "tpu.trace_start"() <{level = 10 : i32, message = "bie,beh->bih"}> : () -> ()
    %cst_10 = arith.constant dense<0.000000e+00> : vector<1x8x128xf32>
    %56 = tpu.matmul %54, %1, %cst_10 {dimension_numbers = #tpu.dot_dimension_numbers<[2], [1], [1], [2], [0, 0, 0, 1, 1, 2], [0], [0]>, precision = #tpu.contract_precision<fp32>} : vector<1x8x16xf32>, vector<1x16x128xf32>, vector<1x8x128xf32> -> vector<1x8x128xf32>
    "tpu.trace_stop"() : () -> ()
    %57 = arith.addf %55, %56 : vector<1x8x128xf32>
    %58 = vector.shape_cast %57 : vector<1x8x128xf32> to vector<8x128xf32>
    %59 = vector.shape_cast %0 : vector<1x8x128xf32> to vector<8x128xf32>
    %c0_11 = arith.constant 0 : index
    %c0_12 = arith.constant 0 : index
    %60 = vector.load %arg4[%c0_11, %c0_12] : memref<128x384xf32, #tpu.memory_space<vmem>>, vector<128x384xf32>
    %cst_13 = arith.constant dense<0.000000e+00> : vector<8x384xf32>
    %61 = tpu.matmul %58, %60, %cst_13 {dimension_numbers = #tpu.dot_dimension_numbers<[1], [0], [0], [1], [0, 0, 1, 1], [], []>} : vector<8x128xf32>, vector<128x384xf32>, vector<8x384xf32> -> vector<8x384xf32>
    %c0_14 = arith.constant 0 : index
    %c0_15 = arith.constant 0 : index
    %62 = vector.load %arg7[%c0_14, %c0_15] : memref<1x384xf32, #tpu.memory_space<vmem>>, vector<1x384xf32>
    %63 = vector.broadcast %62 : vector<1x384xf32> to vector<8x384xf32>
    %64 = arith.addf %61, %63 : vector<8x384xf32>
    %c0_16 = arith.constant 0 : index
    %c0_17 = arith.constant 0 : index
    %65 = vector.load %arg5[%c0_16, %c0_17] : memref<128x256xf32, #tpu.memory_space<vmem>>, vector<128x256xf32>
    %cst_18 = arith.constant dense<0.000000e+00> : vector<8x256xf32>
    %66 = tpu.matmul %59, %65, %cst_18 {dimension_numbers = #tpu.dot_dimension_numbers<[1], [0], [0], [1], [0, 0, 1, 1], [], []>} : vector<8x128xf32>, vector<128x256xf32>, vector<8x256xf32> -> vector<8x256xf32>
    %67 = vector.extract_strided_slice %64 {offsets = [0, 0], sizes = [8, 128], strides = [1, 1]} : vector<8x384xf32> to vector<8x128xf32>
    %68 = vector.extract_strided_slice %66 {offsets = [0, 0], sizes = [8, 128], strides = [1, 1]} : vector<8x256xf32> to vector<8x128xf32>
    %69 = arith.addf %67, %68 : vector<8x128xf32>
    %70 = arith.negf %69 : vector<8x128xf32>
    %71 = math.exp %70 : vector<8x128xf32>
    %cst_19 = arith.constant 1.000000e+00 : f32
    %72 = vector.broadcast %cst_19 : f32 to vector<8x128xf32>
    %73 = arith.addf %72, %71 : vector<8x128xf32>
    %74 = arith.divf %72, %73 : vector<8x128xf32>
    %75 = vector.extract_strided_slice %64 {offsets = [0, 128], sizes = [8, 128], strides = [1, 1]} : vector<8x384xf32> to vector<8x128xf32>
    %76 = vector.extract_strided_slice %66 {offsets = [0, 128], sizes = [8, 128], strides = [1, 1]} : vector<8x256xf32> to vector<8x128xf32>
    %77 = arith.addf %75, %76 : vector<8x128xf32>
    %78 = arith.negf %77 : vector<8x128xf32>
    %79 = math.exp %78 : vector<8x128xf32>
    %cst_20 = arith.constant 1.000000e+00 : f32
    %80 = vector.broadcast %cst_20 : f32 to vector<8x128xf32>
    %81 = arith.addf %80, %79 : vector<8x128xf32>
    %82 = arith.divf %80, %81 : vector<8x128xf32>
    %83 = vector.extract_strided_slice %64 {offsets = [0, 256], sizes = [8, 128], strides = [1, 1]} : vector<8x384xf32> to vector<8x128xf32>
    %84 = arith.mulf %82, %59 : vector<8x128xf32>
    %c0_21 = arith.constant 0 : index
    %c0_22 = arith.constant 0 : index
    %85 = vector.load %arg6[%c0_21, %c0_22] : memref<128x128xf32, #tpu.memory_space<vmem>>, vector<128x128xf32>
    %cst_23 = arith.constant dense<0.000000e+00> : vector<8x128xf32>
    %86 = tpu.matmul %84, %85, %cst_23 {dimension_numbers = #tpu.dot_dimension_numbers<[1], [0], [0], [1], [0, 0, 1, 1], [], []>} : vector<8x128xf32>, vector<128x128xf32>, vector<8x128xf32> -> vector<8x128xf32>
    %87 = arith.addf %83, %86 : vector<8x128xf32>
    %88 = math.tanh %87 : vector<8x128xf32>
    %cst_24 = arith.constant 1.000000e+00 : f32
    %89 = vector.broadcast %cst_24 : f32 to vector<8x128xf32>
    %90 = arith.subf %89, %74 : vector<8x128xf32>
    %91 = arith.mulf %90, %59 : vector<8x128xf32>
    %92 = arith.mulf %74, %88 : vector<8x128xf32>
    %93 = arith.addf %91, %92 : vector<8x128xf32>
    %94 = vector.shape_cast %93 : vector<8x128xf32> to vector<1x8x128xf32>
    %c0_25 = arith.constant 0 : index
    %c0_26 = arith.constant 0 : index
    %c0_27 = arith.constant 0 : index
    %95 = vector.load %arg8[%c0_25, %c0_26, %c0_27] : memref<1x8x128xf32, #tpu.memory_space<vmem>>, vector<1x8x128xf32>
    tpu.vector_store %arg8[%c0_25, %c0_26, %c0_27], %94 {strides = array<i32>} : memref<1x8x128xf32, #tpu.memory_space<vmem>>, vector<1x8x128xf32>,
    return
  }
  func.func @transform_0(%arg0: i32) -> (i32, i32, i32) {
    %c0_i32 = arith.constant 0 : i32
    %c0_i32_0 = arith.constant 0 : i32
    %c0_i32_1 = arith.constant 0 : i32
    return %arg0, %c0_i32, %c0_i32_0 : i32, i32, i32
  }
  func.func @transform_1(%arg0: i32) -> (i32, i32, i32) {
    %c0_i32 = arith.constant 0 : i32
    %c0_i32_0 = arith.constant 0 : i32
    %c0_i32_1 = arith.constant 0 : i32
    return %arg0, %c0_i32, %c0_i32_0 : i32, i32, i32
  }
  func.func @transform_2(%arg0: i32) -> (i32, i32, i32) {
    %c0_i32 = arith.constant 0 : i32
    %c0_i32_0 = arith.constant 0 : i32
    %c0_i32_1 = arith.constant 0 : i32
    return %arg0, %c0_i32, %c0_i32_0 : i32, i32, i32
  }
  func.func @transform_3(%arg0: i32) -> (i32, i32) {
    %c0_i32 = arith.constant 0 : i32
    %c0_i32_0 = arith.constant 0 : i32
    %c0_i32_1 = arith.constant 0 : i32
    return %c0_i32, %c0_i32_0 : i32, i32
  }
  func.func @transform_4(%arg0: i32) -> (i32, i32) {
    %c0_i32 = arith.constant 0 : i32
    %c0_i32_0 = arith.constant 0 : i32
    %c0_i32_1 = arith.constant 0 : i32
    return %c0_i32, %c0_i32_0 : i32, i32
  }
  func.func @transform_5(%arg0: i32) -> (i32, i32) {
    %c0_i32 = arith.constant 0 : i32
    %c0_i32_0 = arith.constant 0 : i32
    %c0_i32_1 = arith.constant 0 : i32
    return %c0_i32, %c0_i32_0 : i32, i32
  }
  func.func @transform_6(%arg0: i32) -> (i32, i32) {
    %c0_i32 = arith.constant 0 : i32
    %c0_i32_0 = arith.constant 0 : i32
    %c0_i32_1 = arith.constant 0 : i32
    return %c0_i32, %c0_i32_0 : i32, i32
  }
  func.func @transform_7(%arg0: i32) -> (i32, i32, i32) {
    %c0_i32 = arith.constant 0 : i32
    %c0_i32_0 = arith.constant 0 : i32
    %c0_i32_1 = arith.constant 0 : i32
    return %arg0, %c0_i32, %c0_i32_0 : i32, i32, i32
  }
}

module attributes {stable_mosaic.version = 11 : i64} {
  func.func @kernel(%arg0: i32, %arg1: memref<1x8x128xf32, #tpu.memory_space<vmem>>, %arg2: memref<1x16x128xf32, #tpu.memory_space<vmem>>, %arg3: memref<1x8x8xi32, #tpu.memory_space<vmem>>, %arg4: memref<128x384xf32, #tpu.memory_space<vmem>>, %arg5: memref<128x256xf32, #tpu.memory_space<vmem>>, %arg6: memref<128x128xf32, #tpu.memory_space<vmem>>, %arg7: memref<1x384xf32, #tpu.memory_space<vmem>>, %arg8: memref<1x8x128xf32, #tpu.memory_space<vmem>>) attributes {dimension_semantics = [#tpu.dimension_semantics<parallel>], iteration_bounds = array<i64: 2>, scalar_prefetch = 0 : i64, scratch_operands = 0 : i64, tpu.core_type = #tpu.core_type<tc>, window_params = [{transform_indices = @transform_0, window_bounds = array<i64: 1, 8, 128>}, {transform_indices = @transform_1, window_bounds = array<i64: 1, 16, 128>}, {transform_indices = @transform_2, window_bounds = array<i64: 1, 8, 8>}, {pipeline_mode = #tpu.pipeline_mode<synchronous>, transform_indices = @transform_3, window_bounds = array<i64: 128, 384>}, {pipeline_mode = #tpu.pipeline_mode<synchronous>, transform_indices = @transform_4, window_bounds = array<i64: 128, 256>}, {pipeline_mode = #tpu.pipeline_mode<synchronous>, transform_indices = @transform_5, window_bounds = array<i64: 128, 128>}, {pipeline_mode = #tpu.pipeline_mode<synchronous>, transform_indices = @transform_6, window_bounds = array<i64: 1, 384>}, {transform_indices = @transform_7, window_bounds = array<i64: 1, 8, 128>}]} {
    %c0 = arith.constant 0 : index
    %c0_0 = arith.constant 0 : index
    %c0_1 = arith.constant 0 : index
    %0 = vector.load %arg1[%c0, %c0_0, %c0_1] : memref<1x8x128xf32, #tpu.memory_space<vmem>>, vector<1x8x128xf32>
    %c0_2 = arith.constant 0 : index
    %c0_3 = arith.constant 0 : index
    %c0_4 = arith.constant 0 : index
    %1 = vector.load %arg2[%c0_2, %c0_3, %c0_4] : memref<1x16x128xf32, #tpu.memory_space<vmem>>, vector<1x16x128xf32>
    %c0_5 = arith.constant 0 : index
    %c0_6 = arith.constant 0 : index
    %c0_7 = arith.constant 0 : index
    %2 = vector.load %arg3[%c0_5, %c0_6, %c0_7] : memref<1x8x8xi32, #tpu.memory_space<vmem>>, vector<1x8x8xi32>
    %3 = tpu.iota {dimensions = array<i32: 2>} : vector<1x8x8xi32>
    %4 = tpu.iota {dimensions = array<i32: 2>} : vector<1x8x16xi32>
    %cst = arith.constant 0.000000e+00 : f32
    %5 = vector.broadcast %cst : f32 to vector<1x8x8xf32>
    %cst_8 = arith.constant 0.000000e+00 : f32
    %6 = vector.broadcast %cst_8 : f32 to vector<1x8x16xf32>
    %7 = vector.extract_strided_slice %2 {offsets = [0, 0, 0], sizes = [1, 8, 1], strides = [1, 1, 1]} : vector<1x8x8xi32> to vector<1x8x1xi32>
    %8 = vector.extract_strided_slice %2 {offsets = [0, 0, 4], sizes = [1, 8, 1], strides = [1, 1, 1]} : vector<1x8x8xi32> to vector<1x8x1xi32>
    %9 = vector.broadcast %7 : vector<1x8x1xi32> to vector<1x8x8xi32>
    %10 = arith.cmpi eq, %3, %9 : vector<1x8x8xi32>
    %11 = arith.extui %10 : vector<1x8x8xi1> to vector<1x8x8xi32>
    %12 = arith.sitofp %11 : vector<1x8x8xi32> to vector<1x8x8xf32>
    %13 = arith.addf %5, %12 : vector<1x8x8xf32>
    %14 = vector.broadcast %8 : vector<1x8x1xi32> to vector<1x8x16xi32>
    %15 = arith.cmpi eq, %4, %14 : vector<1x8x16xi32>
    %16 = arith.extui %15 : vector<1x8x16xi1> to vector<1x8x16xi32>
    %17 = arith.sitofp %16 : vector<1x8x16xi32> to vector<1x8x16xf32>
    %18 = arith.addf %6, %17 : vector<1x8x16xf32>
    %19 = vector.extract_strided_slice %2 {offsets = [0, 0, 1], sizes = [1, 8, 1], strides = [1, 1, 1]} : vector<1x8x8xi32> to vector<1x8x1xi32>
    %20 = vector.extract_strided_slice %2 {offsets = [0, 0, 5], sizes = [1, 8, 1], strides = [1, 1, 1]} : vector<1x8x8xi32> to vector<1x8x1xi32>
    %21 = vector.broadcast %19 : vector<1x8x1xi32> to vector<1x8x8xi32>
    %22 = arith.cmpi eq, %3, %21 : vector<1x8x8xi32>
    %23 = arith.extui %22 : vector<1x8x8xi1> to vector<1x8x8xi32>
    %24 = arith.sitofp %23 : vector<1x8x8xi32> to vector<1x8x8xf32>
    %25 = arith.addf %13, %24 : vector<1x8x8xf32>
    %26 = vector.broadcast %20 : vector<1x8x1xi32> to vector<1x8x16xi32>
    %27 = arith.cmpi eq, %4, %26 : vector<1x8x16xi32>
    %28 = arith.extui %27 : vector<1x8x16xi1> to vector<1x8x16xi32>
    %29 = arith.sitofp %28 : vector<1x8x16xi32> to vector<1x8x16xf32>
    %30 = arith.addf %18, %29 : vector<1x8x16xf32>
    %31 = vector.extract_strided_slice %2 {offsets = [0, 0, 2], sizes = [1, 8, 1], strides = [1, 1, 1]} : vector<1x8x8xi32> to vector<1x8x1xi32>
    %32 = vector.extract_strided_slice %2 {offsets = [0, 0, 6], sizes = [1, 8, 1], strides = [1, 1, 1]} : vector<1x8x8xi32> to vector<1x8x1xi32>
    %33 = vector.broadcast %31 : vector<1x8x1xi32> to vector<1x8x8xi32>
    %34 = arith.cmpi eq, %3, %33 : vector<1x8x8xi32>
    %35 = arith.extui %34 : vector<1x8x8xi1> to vector<1x8x8xi32>
    %36 = arith.sitofp %35 : vector<1x8x8xi32> to vector<1x8x8xf32>
    %37 = arith.addf %25, %36 : vector<1x8x8xf32>
    %38 = vector.broadcast %32 : vector<1x8x1xi32> to vector<1x8x16xi32>
    %39 = arith.cmpi eq, %4, %38 : vector<1x8x16xi32>
    %40 = arith.extui %39 : vector<1x8x16xi1> to vector<1x8x16xi32>
    %41 = arith.sitofp %40 : vector<1x8x16xi32> to vector<1x8x16xf32>
    %42 = arith.addf %30, %41 : vector<1x8x16xf32>
    %43 = vector.extract_strided_slice %2 {offsets = [0, 0, 3], sizes = [1, 8, 1], strides = [1, 1, 1]} : vector<1x8x8xi32> to vector<1x8x1xi32>
    %44 = vector.extract_strided_slice %2 {offsets = [0, 0, 7], sizes = [1, 8, 1], strides = [1, 1, 1]} : vector<1x8x8xi32> to vector<1x8x1xi32>
    %45 = vector.broadcast %43 : vector<1x8x1xi32> to vector<1x8x8xi32>
    %46 = arith.cmpi eq, %3, %45 : vector<1x8x8xi32>
    %47 = arith.extui %46 : vector<1x8x8xi1> to vector<1x8x8xi32>
    %48 = arith.sitofp %47 : vector<1x8x8xi32> to vector<1x8x8xf32>
    %49 = arith.addf %37, %48 : vector<1x8x8xf32>
    %50 = vector.broadcast %44 : vector<1x8x1xi32> to vector<1x8x16xi32>
    %51 = arith.cmpi eq, %4, %50 : vector<1x8x16xi32>
    %52 = arith.extui %51 : vector<1x8x16xi1> to vector<1x8x16xi32>
    %53 = arith.sitofp %52 : vector<1x8x16xi32> to vector<1x8x16xf32>
    %54 = arith.addf %42, %53 : vector<1x8x16xf32>
    "tpu.trace_start"() <{level = 10 : i32, message = "bij,bjh->bih"}> : () -> ()
    %cst_9 = arith.constant dense<0.000000e+00> : vector<1x8x128xf32>
    %55 = tpu.matmul %49, %0, %cst_9 {dimension_numbers = #tpu.dot_dimension_numbers<[2], [1], [1], [2], [0, 0, 0, 1, 1, 2], [0], [0]>} : vector<1x8x8xf32>, vector<1x8x128xf32>, vector<1x8x128xf32> -> vector<1x8x128xf32>
    "tpu.trace_stop"() : () -> ()
    "tpu.trace_start"() <{level = 10 : i32, message = "bie,beh->bih"}> : () -> ()
    %cst_10 = arith.constant dense<0.000000e+00> : vector<1x8x128xf32>
    %56 = tpu.matmul %54, %1, %cst_10 {dimension_numbers = #tpu.dot_dimension_numbers<[2], [1], [1], [2], [0, 0, 0, 1, 1, 2], [0], [0]>} : vector<1x8x16xf32>, vector<1x16x128xf32>, vector<1x8x128xf32> -> vector<1x8x128xf32>
    "tpu.trace_stop"() : () -> ()
    %57 = arith.addf %55, %56 : vector<1x8x128xf32>
    %58 = vector.shape_cast %57 : vector<1x8x128xf32> to vector<8x128xf32>
    %59 = vector.shape_cast %0 : vector<1x8x128xf32> to vector<8x128xf32>
    %c0_11 = arith.constant 0 : index
    %c0_12 = arith.constant 0 : index
    %60 = vector.load %arg4[%c0_11, %c0_12] : memref<128x384xf32, #tpu.memory_space<vmem>>, vector<128x384xf32>
    %cst_13 = arith.constant dense<0.000000e+00> : vector<8x384xf32>
    %61 = tpu.matmul %58, %60, %cst_13 {dimension_numbers = #tpu.dot_dimension_numbers<[1], [0], [0], [1], [0, 0, 1, 1], [], []>} : vector<8x128xf32>, vector<128x384xf32>, vector<8x384xf32> -> vector<8x384xf32>
    %c0_14 = arith.constant 0 : index
    %c0_15 = arith.constant 0 : index
    %62 = vector.load %arg7[%c0_14, %c0_15] : memref<1x384xf32, #tpu.memory_space<vmem>>, vector<1x384xf32>
    %63 = vector.broadcast %62 : vector<1x384xf32> to vector<8x384xf32>
    %64 = arith.addf %61, %63 : vector<8x384xf32>
    %c0_16 = arith.constant 0 : index
    %c0_17 = arith.constant 0 : index
    %65 = vector.load %arg5[%c0_16, %c0_17] : memref<128x256xf32, #tpu.memory_space<vmem>>, vector<128x256xf32>
    %cst_18 = arith.constant dense<0.000000e+00> : vector<8x256xf32>
    %66 = tpu.matmul %59, %65, %cst_18 {dimension_numbers = #tpu.dot_dimension_numbers<[1], [0], [0], [1], [0, 0, 1, 1], [], []>} : vector<8x128xf32>, vector<128x256xf32>, vector<8x256xf32> -> vector<8x256xf32>
    %67 = vector.extract_strided_slice %64 {offsets = [0, 0], sizes = [8, 128], strides = [1, 1]} : vector<8x384xf32> to vector<8x128xf32>
    %68 = vector.extract_strided_slice %66 {offsets = [0, 0], sizes = [8, 128], strides = [1, 1]} : vector<8x256xf32> to vector<8x128xf32>
    %69 = arith.addf %67, %68 : vector<8x128xf32>
    %70 = arith.negf %69 : vector<8x128xf32>
    %71 = math.exp %70 : vector<8x128xf32>
    %cst_19 = arith.constant 1.000000e+00 : f32
    %72 = vector.broadcast %cst_19 : f32 to vector<8x128xf32>
    %73 = arith.addf %72, %71 : vector<8x128xf32>
    %74 = arith.divf %72, %73 : vector<8x128xf32>
    %75 = vector.extract_strided_slice %64 {offsets = [0, 128], sizes = [8, 128], strides = [1, 1]} : vector<8x384xf32> to vector<8x128xf32>
    %76 = vector.extract_strided_slice %66 {offsets = [0, 128], sizes = [8, 128], strides = [1, 1]} : vector<8x256xf32> to vector<8x128xf32>
    %77 = arith.addf %75, %76 : vector<8x128xf32>
    %78 = arith.negf %77 : vector<8x128xf32>
    %79 = math.exp %78 : vector<8x128xf32>
    %cst_20 = arith.constant 1.000000e+00 : f32
    %80 = vector.broadcast %cst_20 : f32 to vector<8x128xf32>
    %81 = arith.addf %80, %79 : vector<8x128xf32>
    %82 = arith.divf %80, %81 : vector<8x128xf32>
    %83 = vector.extract_strided_slice %64 {offsets = [0, 256], sizes = [8, 128], strides = [1, 1]} : vector<8x384xf32> to vector<8x128xf32>
    %84 = arith.mulf %82, %59 : vector<8x128xf32>
    %c0_21 = arith.constant 0 : index
    %c0_22 = arith.constant 0 : index
    %85 = vector.load %arg6[%c0_21, %c0_22] : memref<128x128xf32, #tpu.memory_space<vmem>>, vector<128x128xf32>
    %cst_23 = arith.constant dense<0.000000e+00> : vector<8x128xf32>
    %86 = tpu.matmul %84, %85, %cst_23 {dimension_numbers = #tpu.dot_dimension_numbers<[1], [0], [0], [1], [0, 0, 1, 1], [], []>} : vector<8x128xf32>, vector<128x128xf32>, vector<8x128xf32> -> vector<8x128xf32>
    %87 = arith.addf %83, %86 : vector<8x128xf32>
    %88 = math.tanh %87 : vector<8x128xf32>
    %cst_24 = arith.constant 1.000000e+00 : f32
    %89 = vector.broadcast %cst_24 : f32 to vector<8x128xf32>
    %90 = arith.subf %89, %74 : vector<8x128xf32>
    %91 = arith.mulf %90, %59 : vector<8x128xf32>
    %92 = arith.mulf %74, %88 : vector<8x128xf32>
    %93 = arith.addf %91, %92 : vector<8x128xf32>
    %94 = vector.shape_cast %93 : vector<8x128xf32> to vector<1x8x128xf32>
    %c0_25 = arith.constant 0 : index
    %c0_26 = arith.constant 0 : index
    %c0_27 = arith.constant 0 : index
    %95 = vector.load %arg8[%c0_25, %c0_26, %c0_27] : memref<1x8x128xf32, #tpu.memory_space<vmem>>, vector<1x8x128xf32>
    tpu.vector_store %arg8[%c0_25, %c0_26, %c0_27], %94 {strides = array<i32>} : memref<1x8x128xf32, #tpu.memory_space<vmem>>, vector<1x8x128xf32>,
    return
  }
  func.func @transform_0(%arg0: i32) -> (i32, i32, i32) {
    %c0_i32 = arith.constant 0 : i32
    %c0_i32_0 = arith.constant 0 : i32
    %c0_i32_1 = arith.constant 0 : i32
    return %arg0, %c0_i32, %c0_i32_0 : i32, i32, i32
  }
  func.func @transform_1(%arg0: i32) -> (i32, i32, i32) {
    %c0_i32 = arith.constant 0 : i32
    %c0_i32_0 = arith.constant 0 : i32
    %c0_i32_1 = arith.constant 0 : i32
    return %arg0, %c0_i32, %c0_i32_0 : i32, i32, i32
  }
  func.func @transform_2(%arg0: i32) -> (i32, i32, i32) {
    %c0_i32 = arith.constant 0 : i32
    %c0_i32_0 = arith.constant 0 : i32
    %c0_i32_1 = arith.constant 0 : i32
    return %arg0, %c0_i32, %c0_i32_0 : i32, i32, i32
  }
  func.func @transform_3(%arg0: i32) -> (i32, i32) {
    %c0_i32 = arith.constant 0 : i32
    %c0_i32_0 = arith.constant 0 : i32
    %c0_i32_1 = arith.constant 0 : i32
    return %c0_i32, %c0_i32_0 : i32, i32
  }
  func.func @transform_4(%arg0: i32) -> (i32, i32) {
    %c0_i32 = arith.constant 0 : i32
    %c0_i32_0 = arith.constant 0 : i32
    %c0_i32_1 = arith.constant 0 : i32
    return %c0_i32, %c0_i32_0 : i32, i32
  }
  func.func @transform_5(%arg0: i32) -> (i32, i32) {
    %c0_i32 = arith.constant 0 : i32
    %c0_i32_0 = arith.constant 0 : i32
    %c0_i32_1 = arith.constant 0 : i32
    return %c0_i32, %c0_i32_0 : i32, i32
  }
  func.func @transform_6(%arg0: i32) -> (i32, i32) {
    %c0_i32 = arith.constant 0 : i32
    %c0_i32_0 = arith.constant 0 : i32
    %c0_i32_1 = arith.constant 0 : i32
    return %c0_i32, %c0_i32_0 : i32, i32
  }
  func.func @transform_7(%arg0: i32) -> (i32, i32, i32) {
    %c0_i32 = arith.constant 0 : i32
    %c0_i32_0 = arith.constant 0 : i32
    %c0_i32_1 = arith.constant 0 : i32
    return %arg0, %c0_i32, %c0_i32_0 : i32, i32, i32
  }
}

</mosaic_0001>

<llo_original>
// kernel: tpu_custom_call.1
$region0: #{tpu_custom_call.1}
  #allocation0 [shape = 'u32[]', space=smem, size = 0x4, offset = 0x4, fixed_abs, tag = 'smem constant byte address 0x4 - core index']
  #allocation1 [shape = 'u32[144,128]{1,0:T(1,128)}', space=vmem, size = 0x12000, scoped, tag = 'internal scratch']
  %s0 = inlined_call_operand.hbm [shape: f32[2,8,128], index: 0, kind: input, shape index: {}]
  %s1 = inlined_call_operand.hbm [shape: f32[2,16,128], index: 1, kind: input, shape index: {}]
  %s2 = inlined_call_operand.hbm [shape: s32[2,8,8], index: 2, kind: input, shape index: {}]
  %s3 = inlined_call_operand.hbm [shape: f32[128,384], index: 3, kind: input, shape index: {}]
  %s4 = inlined_call_operand.hbm [shape: f32[128,256], index: 4, kind: input, shape index: {}]
  %s5 = inlined_call_operand.hbm [shape: f32[128,128], index: 5, kind: input, shape index: {}]
  %s6 = inlined_call_operand.vmem [shape: f32[1,384], index: 6, kind: input, shape index: {}]
  %s7 = inlined_call_operand.hbm [shape: f32[2,8,128], index: 7, kind: output, shape index: {}]
  %s8 = sld [smem:[#allocation0]]
  $region85: #{tpu_custom_call.1} parent=0
    _
  %s10 = ssub.s32 1, %s8
  %s11 = scalar_select 0, %s10, %s8
  $region1: #{tpu_custom_call.1} parent=0
    #allocation2 [shape = 'u8[8192]{0}', space=vmem, size = 0x2000, scoped, tag = 'input window, operand 0']
    #allocation3 [shape = 's32[2]{0}', space=sflag, size = 0x8, scoped, tag = 'scoped memory for tpu_custom_call.1']
    #allocation4 [shape = 's32[2]{0}', space=sflag, size = 0x8, scoped, tag = 'scoped memory for tpu_custom_call.1']
    #allocation5 [shape = 'u8[16384]{0}', space=vmem, size = 0x4000, scoped, tag = 'input window, operand 1']
    #allocation6 [shape = 's32[2]{0}', space=sflag, size = 0x8, scoped, tag = 'scoped memory for tpu_custom_call.1']
    #allocation7 [shape = 'u8[8192]{0}', space=vmem, size = 0x2000, scoped, tag = 'input window, operand 2']
    #allocation8 [shape = 'u8[196608]{0}', space=vmem, size = 0x30000, scoped, tag = 'input window, operand 3, single buffered']
    #allocation9 [shape = 's32[1]{0}', space=sflag, size = 0x4, scoped, tag = 'scoped memory for tpu_custom_call.1']
    #allocation10 [shape = 'u8[131072]{0}', space=vmem, size = 0x20000, scoped, tag = 'input window, operand 4, single buffered']
    #allocation11 [shape = 'u8[65536]{0}', space=vmem, size = 0x10000, scoped, tag = 'input window, operand 5, single buffered']
    #allocation12 [shape = 's32[1]{0}', space=sflag, size = 0x4, scoped, tag = 'scoped memory for tpu_custom_call.1']
    #allocation13 [shape = 'u8[8192]{0}', space=vmem, size = 0x2000, scoped, tag = 'output window, operand 0']
    %12 = vsyncpa [#allocation3], 0
    %s13 = scalar_lea.sflag [#allocation3], 1
    %14 = vsyncpa %s13, 0
    %15 = vsyncpa [#allocation6], 0
    %s16 = scalar_lea.sflag [#allocation6], 1
    %17 = vsyncpa %s16, 0
    %18 = vsyncpa [#allocation9], 0
    %19 = vsyncpa [#allocation12], 0
    %20 = vsyncpa [#allocation4], 0
    %s21 = scalar_lea.sflag [#allocation4], 1
    %22 = vsyncpa %s21, 0
    loop: start=0, step=1, limit=4
    $region2: #{tpu_custom_call.1} parent=1 // loop_pre_header
      _
    $region3: #{tpu_custom_call.1} parent=1 // loop_header
      %s24 = sphi 0, %s28
      %p25 = scmp.ge.s32.totalorder %s24, 4
      %s34 = sphi 0, %s36
      %s37 = sphi 0, %s34
      %s38 = sphi 0, %s37
      %s54 = sphi 0, %s38
      %s60 = sphi 0, %s62
      %s63 = sphi 0, %s60
      %s64 = sphi 0, %s63
      %s80 = sphi 0, %s64
      %s86 = sphi 0, %s88
      %s89 = sphi 0, %s86
      %s90 = sphi 0, %s89
      %s106 = sphi 0, %s90
      %s110 = sphi 0, %s110
      %s112 = sphi 0, %s110
      %s113 = sphi 0, %s112
      %s127 = sphi 0, %s113
      %s131 = sphi 0, %s131
      %s133 = sphi 0, %s131
      %s134 = sphi 0, %s133
      %s148 = sphi 0, %s134
      %s152 = sphi 0, %s152
      %s154 = sphi 0, %s152
      %s155 = sphi 0, %s154
      %s169 = sphi 0, %s155
      %s173 = sphi 0, %s173
      %s175 = sphi 0, %s173
      %s176 = sphi 0, %s175
      %s190 = sphi 0, %s176
      %s196 = sphi 0, %s198
      %s199 = sphi 0, %s196
      %s200 = sphi 0, %s199
      %s216 = sphi 0, %s200
    $region4: #{tpu_custom_call.1} parent=1 // loop_header_branch
      %27 = sbr.rel (%p25) target = $region8
    $region5: #{tpu_custom_call.1} parent=1 // loop_body
      %s29 = ssub.s32 %s24, 1
      %s30 = ssub.s32 %s24, 2
      %s31 = sadd.s32 %s24, 1
      %s32 = ssub.s32 %s24, %s31
      %p33 = scmp.eq.s32.totalorder %s32, 0
      %s35 = sadd.s32 %s34, 1
      %s36 = scalar_select %p33, %s34, %s35
      %p39 = pneg %p33
      %p40 = scmp.eq.s32.totalorder %s24, 1
      %p41 = por %p39, %p40
      %p42 = scmp.ne.s32.totalorder %s34, %s37
      %p43 = scmp.eq.s32.totalorder %s24, 0
      %p44 = por %p42, %p43
      %p45 = scmp.ne.s32.totalorder %s34, %s37
      %p46 = scmp.eq.s32.totalorder %s29, 1
      %p47 = por %p45, %p46
      %p48 = scmp.ne.s32.totalorder %s37, %s38
      %p49 = scmp.eq.s32.totalorder %s29, 0
      %p50 = por %p48, %p49
      %p51 = scmp.ne.s32.totalorder %s37, %s38
      %p52 = scmp.eq.s32.totalorder %s30, 1
      %p53 = por %p51, %p52
      %p55 = scmp.ne.s32.totalorder %s38, %s54
      %p56 = scmp.eq.s32.totalorder %s30, 0
      %p57 = por %p55, %p56
      %s58 = ssub.s32 %s24, %s31
      %p59 = scmp.eq.s32.totalorder %s58, 0
      %s61 = sadd.s32 %s60, 1
      %s62 = scalar_select %p59, %s60, %s61
      %p65 = pneg %p59
      %p66 = scmp.eq.s32.totalorder %s24, 1
      %p67 = por %p65, %p66
      %p68 = scmp.ne.s32.totalorder %s60, %s63
      %p69 = scmp.eq.s32.totalorder %s24, 0
      %p70 = por %p68, %p69
      %p71 = scmp.ne.s32.totalorder %s60, %s63
      %p72 = scmp.eq.s32.totalorder %s29, 1
      %p73 = por %p71, %p72
      %p74 = scmp.ne.s32.totalorder %s63, %s64
      %p75 = scmp.eq.s32.totalorder %s29, 0
      %p76 = por %p74, %p75
      %p77 = scmp.ne.s32.totalorder %s63, %s64
      %p78 = scmp.eq.s32.totalorder %s30, 1
      %p79 = por %p77, %p78
      %p81 = scmp.ne.s32.totalorder %s64, %s80
      %p82 = scmp.eq.s32.totalorder %s30, 0
      %p83 = por %p81, %p82
      %s84 = ssub.s32 %s24, %s31
      %p85 = scmp.eq.s32.totalorder %s84, 0
      %s87 = sadd.s32 %s86, 1
      %s88 = scalar_select %p85, %s86, %s87
      %p91 = pneg %p85
      %p92 = scmp.eq.s32.totalorder %s24, 1
      %p93 = por %p91, %p92
      %p94 = scmp.ne.s32.totalorder %s86, %s89
      %p95 = scmp.eq.s32.totalorder %s24, 0
      %p96 = por %p94, %p95
      %p97 = scmp.ne.s32.totalorder %s86, %s89
      %p98 = scmp.eq.s32.totalorder %s29, 1
      %p99 = por %p97, %p98
      %p100 = scmp.ne.s32.totalorder %s89, %s90
      %p101 = scmp.eq.s32.totalorder %s29, 0
      %p102 = por %p100, %p101
      %p103 = scmp.ne.s32.totalorder %s89, %s90
      %p104 = scmp.eq.s32.totalorder %s30, 1
      %p105 = por %p103, %p104
      %p107 = scmp.ne.s32.totalorder %s90, %s106
      %p108 = scmp.eq.s32.totalorder %s30, 0
      %p109 = por %p107, %p108
      %s111 = sadd.s32 %s110, 1
      %p114 = scmp.eq.s32.totalorder %s24, 1
      %p115 = scmp.ne.s32.totalorder %s110, %s112
      %p116 = scmp.eq.s32.totalorder %s24, 0
      %p117 = por %p115, %p116
      %p118 = scmp.ne.s32.totalorder %s110, %s112
      %p119 = scmp.eq.s32.totalorder %s29, 1
      %p120 = por %p118, %p119
      %p121 = scmp.ne.s32.totalorder %s112, %s113
      %p122 = scmp.eq.s32.totalorder %s29, 0
      %p123 = por %p121, %p122
      %p124 = scmp.ne.s32.totalorder %s112, %s113
      %p125 = scmp.eq.s32.totalorder %s30, 1
      %p126 = por %p124, %p125
      %p128 = scmp.ne.s32.totalorder %s113, %s127
      %p129 = scmp.eq.s32.totalorder %s30, 0
      %p130 = por %p128, %p129
      %s132 = sadd.s32 %s131, 1
      %p135 = scmp.eq.s32.totalorder %s24, 1
      %p136 = scmp.ne.s32.totalorder %s131, %s133
      %p137 = scmp.eq.s32.totalorder %s24, 0
      %p138 = por %p136, %p137
      %p139 = scmp.ne.s32.totalorder %s131, %s133
      %p140 = scmp.eq.s32.totalorder %s29, 1
      %p141 = por %p139, %p140
      %p142 = scmp.ne.s32.totalorder %s133, %s134
      %p143 = scmp.eq.s32.totalorder %s29, 0
      %p144 = por %p142, %p143
      %p145 = scmp.ne.s32.totalorder %s133, %s134
      %p146 = scmp.eq.s32.totalorder %s30, 1
      %p147 = por %p145, %p146
      %p149 = scmp.ne.s32.totalorder %s134, %s148
      %p150 = scmp.eq.s32.totalorder %s30, 0
      %p151 = por %p149, %p150
      %s153 = sadd.s32 %s152, 1
      %p156 = scmp.eq.s32.totalorder %s24, 1
      %p157 = scmp.ne.s32.totalorder %s152, %s154
      %p158 = scmp.eq.s32.totalorder %s24, 0
      %p159 = por %p157, %p158
      %p160 = scmp.ne.s32.totalorder %s152, %s154
      %p161 = scmp.eq.s32.totalorder %s29, 1
      %p162 = por %p160, %p161
      %p163 = scmp.ne.s32.totalorder %s154, %s155
      %p164 = scmp.eq.s32.totalorder %s29, 0
      %p165 = por %p163, %p164
      %p166 = scmp.ne.s32.totalorder %s154, %s155
      %p167 = scmp.eq.s32.totalorder %s30, 1
      %p168 = por %p166, %p167
      %p170 = scmp.ne.s32.totalorder %s155, %s169
      %p171 = scmp.eq.s32.totalorder %s30, 0
      %p172 = por %p170, %p171
      %s174 = sadd.s32 %s173, 1
      %p177 = scmp.eq.s32.totalorder %s24, 1
      %p178 = scmp.ne.s32.totalorder %s173, %s175
      %p179 = scmp.eq.s32.totalorder %s24, 0
      %p180 = por %p178, %p179
      %p181 = scmp.ne.s32.totalorder %s173, %s175
      %p182 = scmp.eq.s32.totalorder %s29, 1
      %p183 = por %p181, %p182
      %p184 = scmp.ne.s32.totalorder %s175, %s176
      %p185 = scmp.eq.s32.totalorder %s29, 0
      %p186 = por %p184, %p185
      %p187 = scmp.ne.s32.totalorder %s175, %s176
      %p188 = scmp.eq.s32.totalorder %s30, 1
      %p189 = por %p187, %p188
      %p191 = scmp.ne.s32.totalorder %s176, %s190
      %p192 = scmp.eq.s32.totalorder %s30, 0
      %p193 = por %p191, %p192
      %s194 = ssub.s32 %s24, %s31
      %p195 = scmp.eq.s32.totalorder %s194, 0
      %s197 = sadd.s32 %s196, 1
      %s198 = scalar_select %p195, %s196, %s197
      %p201 = pneg %p195
      %p202 = scmp.eq.s32.totalorder %s24, 1
      %p203 = por %p201, %p202
      %p204 = scmp.ne.s32.totalorder %s196, %s199
      %p205 = scmp.eq.s32.totalorder %s24, 0
      %p206 = por %p204, %p205
      %p207 = scmp.ne.s32.totalorder %s196, %s199
      %p208 = scmp.eq.s32.totalorder %s29, 1
      %p209 = por %p207, %p208
      %p210 = scmp.ne.s32.totalorder %s199, %s200
      %p211 = scmp.eq.s32.totalorder %s29, 0
      %p212 = por %p210, %p211
      %p213 = scmp.ne.s32.totalorder %s199, %s200
      %p214 = scmp.eq.s32.totalorder %s30, 1
      %p215 = por %p213, %p214
      %p217 = scmp.ne.s32.totalorder %s200, %s216
      %p218 = scmp.eq.s32.totalorder %s30, 0
      %p219 = por %p217, %p218
      %p220 = scmp.le.s32.totalorder 1, %s24
      %p221 = scmp.lt.s32.totalorder %s24, 3
      %p222 = pnand %p220, %p221
      %p223 = pneg %p222
      // Predicated region
      $region9: #{tpu_custom_call.1} parent=5 // pred_check
        _
      $region10: #{tpu_custom_call.1} parent=5 // pred_check_branch
        %225 = sbr.rel (%p222) target = $region12
      $region11: #{tpu_custom_call.1} parent=5 // pred_region
        %s226 = ssub.s32 %s24, 1
        // Predicated region
        $region13: #{tpu_custom_call.1} parent=11 // pred_check
          %p227 = pneg %p123
        $region14: #{tpu_custom_call.1} parent=11 // pred_check_branch
          %229 = sbr.rel (%p227) target = $region16
        $region15: #{tpu_custom_call.1} parent=11 // pred_region
          %s231 = ssub.s32 6144, 6144
          %232 = vsyncadd [#allocation9], %s231
          %s233 = sshll.u32 [#allocation8], 4
          %s234 = int_to_ptr.vmem [resolvable:$true] %s233
          %239 = dma.hbm_to_vmem [thread:$0]  %s3, 6144, %s234, [#allocation9], 384, 384, 24
        $region16: #{tpu_custom_call.1} parent=11 // pred_fallthru
          _
        // Predicated region
        $region17: #{tpu_custom_call.1} parent=11 // pred_check
          %p240 = pneg %p144
        $region18: #{tpu_custom_call.1} parent=11 // pred_check_branch
          %242 = sbr.rel (%p240) target = $region20
        $region19: #{tpu_custom_call.1} parent=11 // pred_region
          %s244 = ssub.s32 4096, 4096
          %245 = vsyncadd [#allocation9], %s244
          %s246 = sshll.u32 [#allocation10], 4
          %s247 = int_to_ptr.vmem [resolvable:$true] %s246
          %252 = dma.hbm_to_vmem [thread:$0]  %s4, 4096, %s247, [#allocation9], 256, 256, 16
        $region20: #{tpu_custom_call.1} parent=11 // pred_fallthru
          _
        // Predicated region
        $region21: #{tpu_custom_call.1} parent=11 // pred_check
          %p253 = pneg %p165
        $region22: #{tpu_custom_call.1} parent=11 // pred_check_branch
          %255 = sbr.rel (%p253) target = $region24
        $region23: #{tpu_custom_call.1} parent=11 // pred_region
          %s257 = ssub.s32 2048, 2048
          %258 = vsyncadd [#allocation12], %s257
          %s259 = sshll.u32 [#allocation11], 4
          %s260 = int_to_ptr.vmem [resolvable:$true] %s259
          %265 = dma.hbm_to_vmem [thread:$0]  %s5, 2048, %s260, [#allocation12], 128, 128, 8
        $region24: #{tpu_custom_call.1} parent=11 // pred_fallthru
          _
        // Predicated region
        $region25: #{tpu_custom_call.1} parent=11 // pred_check
          %p266 = pneg %p186
        $region26: #{tpu_custom_call.1} parent=11 // pred_check_branch
          %268 = sbr.rel (%p266) target = $region28
        $region27: #{tpu_custom_call.1} parent=11 // pred_region
          _
        $region28: #{tpu_custom_call.1} parent=11 // pred_fallthru
          _
      $region12: #{tpu_custom_call.1} parent=5 // pred_fallthru
        _
      %p269 = scmp.lt.s32.totalorder %s24, 2
      // Predicated region
      $region29: #{tpu_custom_call.1} parent=5 // pred_check
        %p270 = pneg %p269
      $region30: #{tpu_custom_call.1} parent=5 // pred_check_branch
        %272 = sbr.rel (%p270) target = $region32
      $region31: #{tpu_custom_call.1} parent=5 // pred_region
        // Predicated region
        $region33: #{tpu_custom_call.1} parent=31 // pred_check
          %p273 = pneg %p44
        $region34: #{tpu_custom_call.1} parent=31 // pred_check_branch
          %275 = sbr.rel (%p273) target = $region36
        $region35: #{tpu_custom_call.1} parent=31 // pred_region
          %s276 = sand.u32 %s34, 1
          %s277 = scalar_lea.sflag [#allocation3], %s276
          %s278 = sand.u32 %s34, 1
          %s279 = smul.addr %s278, 8
          %s280 = scalar_lea.vmem [#allocation2], %s279
          %s282 = ssub.s32 128, 128
          %283 = vsyncadd %s277, %s282
          %s284 = smul.addr %s24, 128
          %s285 = scalar_lea.hbm %s0, %s284
          %s287 = sshll.u32 %s280, 4
          %s288 = int_to_ptr.vmem [resolvable:$true] %s287
          %290 = dma.hbm_to_vmem [thread:$0]  %s285, 128, %s288, %s277
        $region36: #{tpu_custom_call.1} parent=31 // pred_fallthru
          _
        // Predicated region
        $region37: #{tpu_custom_call.1} parent=31 // pred_check
          %p291 = pneg %p70
        $region38: #{tpu_custom_call.1} parent=31 // pred_check_branch
          %293 = sbr.rel (%p291) target = $region40
        $region39: #{tpu_custom_call.1} parent=31 // pred_region
          %s294 = sand.u32 %s24, 1
          %s295 = scalar_lea.sflag [#allocation6], %s294
          %s296 = sand.u32 %s60, 1
          %s297 = smul.addr %s296, 16
          %s298 = scalar_lea.vmem [#allocation5], %s297
          %s300 = ssub.s32 256, 256
          %301 = vsyncadd %s295, %s300
          %s302 = smul.addr %s24, 2
          %s303 = smul.addr %s302, 128
          %s304 = scalar_lea.hbm %s1, %s303
          %s305 = sshll.u32 %s298, 4
          %s306 = int_to_ptr.vmem [resolvable:$true] %s305
          %311 = dma.hbm_to_vmem [thread:$0]  %s304, 256, %s306, %s295, 128, 128, 8
        $region40: #{tpu_custom_call.1} parent=31 // pred_fallthru
          _
        // Predicated region
        $region41: #{tpu_custom_call.1} parent=31 // pred_check
          %p312 = pneg %p96
        $region42: #{tpu_custom_call.1} parent=31 // pred_check_branch
          %314 = sbr.rel (%p312) target = $region44
        $region43: #{tpu_custom_call.1} parent=31 // pred_region
          %s315 = sand.u32 %s24, 1
          %s316 = scalar_lea.sflag [#allocation6], %s315
          %s317 = sand.u32 %s86, 1
          %s318 = smul.addr %s317, 8
          %s319 = scalar_lea.vmem [#allocation7], %s318
          %s321 = ssub.s32 128, 128
          %322 = vsyncadd %s316, %s321
          %s323 = smul.addr %s24, 128
          %s324 = scalar_lea.hbm %s2, %s323
          %s326 = sshll.u32 %s319, 4
          %s327 = int_to_ptr.vmem [resolvable:$true] %s326
          %329 = dma.hbm_to_vmem [thread:$0]  %s324, 128, %s327, %s316
        $region44: #{tpu_custom_call.1} parent=31 // pred_fallthru
          _
      $region32: #{tpu_custom_call.1} parent=5 // pred_fallthru
        _
      %p330 = scmp.le.s32.totalorder 1, %s24
      %p331 = scmp.lt.s32.totalorder %s24, 3
      %p332 = pnand %p330, %p331
      %p333 = pneg %p332
      // Predicated region
      $region45: #{tpu_custom_call.1} parent=5 // pred_check
        _
      $region46: #{tpu_custom_call.1} parent=5 // pred_check_branch
        %335 = sbr.rel (%p332) target = $region48
      $region47: #{tpu_custom_call.1} parent=5 // pred_region
        %s336 = ssub.s32 %s24, 1
        %s337 = sand.u32 %s37, 1
        %s338 = scalar_lea.sflag [#allocation3], %s337
        %s339 = sand.u32 %s37, 1
        %s340 = smul.addr %s339, 8
        %s341 = scalar_lea.vmem [#allocation2], %s340
        // Predicated region
        $region49: #{tpu_custom_call.1} parent=47 // pred_check
          %p342 = pneg %p50
        $region50: #{tpu_custom_call.1} parent=47 // pred_check_branch
          %344 = sbr.rel (%p342) target = $region52
        $region51: #{tpu_custom_call.1} parent=47 // pred_region
          %345 = dma.done %s338, 128
        $region52: #{tpu_custom_call.1} parent=47 // pred_fallthru
          _
        %s346 = sand.u32 %s29, 1
        %s347 = scalar_lea.sflag [#allocation6], %s346
        %s348 = sand.u32 %s63, 1
        %s349 = smul.addr %s348, 16
        %s350 = scalar_lea.vmem [#allocation5], %s349
        // Predicated region
        $region53: #{tpu_custom_call.1} parent=47 // pred_check
          %p351 = pneg %p76
        $region54: #{tpu_custom_call.1} parent=47 // pred_check_branch
          %353 = sbr.rel (%p351) target = $region56
        $region55: #{tpu_custom_call.1} parent=47 // pred_region
          %354 = dma.done %s347, 256
        $region56: #{tpu_custom_call.1} parent=47 // pred_fallthru
          _
        %s355 = sand.u32 %s29, 1
        %s356 = scalar_lea.sflag [#allocation6], %s355
        %s357 = sand.u32 %s89, 1
        %s358 = smul.addr %s357, 8
        %s359 = scalar_lea.vmem [#allocation7], %s358
        // Predicated region
        $region57: #{tpu_custom_call.1} parent=47 // pred_check
          %p360 = pneg %p102
        $region58: #{tpu_custom_call.1} parent=47 // pred_check_branch
          %362 = sbr.rel (%p360) target = $region60
        $region59: #{tpu_custom_call.1} parent=47 // pred_region
          %363 = dma.done %s356, 128
        $region60: #{tpu_custom_call.1} parent=47 // pred_fallthru
          _
        // Predicated region
        $region61: #{tpu_custom_call.1} parent=47 // pred_check
          %p364 = pneg %p123
        $region62: #{tpu_custom_call.1} parent=47 // pred_check_branch
          %366 = sbr.rel (%p364) target = $region64
        $region63: #{tpu_custom_call.1} parent=47 // pred_region
          %367 = dma.done [#allocation9], 6144
        $region64: #{tpu_custom_call.1} parent=47 // pred_fallthru
          _
        // Predicated region
        $region65: #{tpu_custom_call.1} parent=47 // pred_check
          %p368 = pneg %p144
        $region66: #{tpu_custom_call.1} parent=47 // pred_check_branch
          %370 = sbr.rel (%p368) target = $region68
        $region67: #{tpu_custom_call.1} parent=47 // pred_region
          %371 = dma.done [#allocation9], 4096
        $region68: #{tpu_custom_call.1} parent=47 // pred_fallthru
          _
        // Predicated region
        $region69: #{tpu_custom_call.1} parent=47 // pred_check
          %p372 = pneg %p165
        $region70: #{tpu_custom_call.1} parent=47 // pred_check_branch
          %374 = sbr.rel (%p372) target = $region72
        $region71: #{tpu_custom_call.1} parent=47 // pred_region
          %375 = dma.done [#allocation12], 2048
        $region72: #{tpu_custom_call.1} parent=47 // pred_fallthru
          _
        %s376 = sand.u32 %s37, 1
        %s377 = scalar_lea.sflag [#allocation3], %s376
        %s378 = sand.u32 %s37, 1
        %s379 = smul.addr %s378, 8
        %s380 = scalar_lea.vmem [#allocation2], %s379
        %p381 = pneg %p50
        %p382 = pneg %p47
        %s383 = sand.u32 %s29, 1
        %s384 = scalar_lea.sflag [#allocation6], %s383
        %s385 = sand.u32 %s63, 1
        %s386 = smul.addr %s385, 16
        %s387 = scalar_lea.vmem [#allocation5], %s386
        %p388 = pneg %p76
        %p389 = pneg %p73
        %s390 = sand.u32 %s29, 1
        %s391 = scalar_lea.sflag [#allocation6], %s390
        %s392 = sand.u32 %s89, 1
        %s393 = smul.addr %s392, 8
        %s394 = scalar_lea.vmem [#allocation7], %s393
        %p395 = pneg %p102
        %p396 = pneg %p99
        %p397 = pneg %p123
        %p398 = pneg %p120
        %p399 = pneg %p144
        %p400 = pneg %p141
        %p401 = pneg %p165
        %p402 = pneg %p162
        %p403 = pneg %p186
        %p404 = pneg %p183
        %p405 = pneg %p212
        %p406 = pneg %p209
        %s407 = sand.u32 %s199, 1
        %s408 = scalar_lea.sflag [#allocation4], %s407
        %s409 = sand.u32 %s199, 1
        %s410 = smul.addr %s409, 8
        %s411 = scalar_lea.vmem [#allocation13], %s410
        %v412 = vld [vmem:[%s341] sm:$0xff]
        %v413 = vld [vmem:[%s350] sm:$0xff]
        %v414 = vld [vmem:[%s350 + $0x8] sm:$0xff]
        %v415 = vld [vmem:[%s359] sm:$0xff]
        %v416 = vlaneseq
        %v417 = vand.u32 %v416, 127
        %418 = vset.pattern.permute.xlu0 0
        %419 = vperm.xlu0 %418, %v415
        %v420 = vpop.permute.xlu0 %419
        %vm421 = vcmp.eq.s32.totalorder %v417, %v420
        %v422 = vsel %vm421, 1, 0
        %v423 = vcvt.s32.f32 %v422
        %v424 = vadd.f32 %v423, 0.0
        %425 = vset.pattern.permute.xlu0 4
        %426 = vperm.xlu0 %425, %v415
        %v427 = vpop.permute.xlu0 %426
        %vm428 = vcmp.eq.s32.totalorder %v417, %v427
        %v429 = vsel %vm428, 1, 0
        %v430 = vcvt.s32.f32 %v429
        %v431 = vadd.f32 %v430, 0.0
        %432 = vset.pattern.permute.xlu0 1
        %433 = vperm.xlu0 %432, %v415
        %v434 = vpop.permute.xlu0 %433
        %vm435 = vcmp.eq.s32.totalorder %v417, %v434
        %v436 = vsel %vm435, 1, 0
        %v437 = vcvt.s32.f32 %v436
        %v438 = vadd.f32 %v424, %v437
        %439 = vset.pattern.permute.xlu0 5
        %440 = vperm.xlu0 %439, %v415
        %v441 = vpop.permute.xlu0 %440
        %vm442 = vcmp.eq.s32.totalorder %v417, %v441
        %v443 = vsel %vm442, 1, 0
        %v444 = vcvt.s32.f32 %v443
        %v445 = vadd.f32 %v431, %v444
        %446 = vset.pattern.permute.xlu0 2
        %447 = vperm.xlu0 %446, %v415
        %v448 = vpop.permute.xlu0 %447
        %vm449 = vcmp.eq.s32.totalorder %v417, %v448
        %v450 = vsel %vm449, 1, 0
        %v451 = vcvt.s32.f32 %v450
        %v452 = vadd.f32 %v438, %v451
        %453 = vset.pattern.permute.xlu0 6
        %454 = vperm.xlu0 %453, %v415
        %v455 = vpop.permute.xlu0 %454
        %vm456 = vcmp.eq.s32.totalorder %v417, %v455
        %v457 = vsel %vm456, 1, 0
        %v458 = vcvt.s32.f32 %v457
        %v459 = vadd.f32 %v445, %v458
        %460 = vset.pattern.permute.xlu0 3
        %461 = vperm.xlu0 %460, %v415
        %v462 = vpop.permute.xlu0 %461
        %vm463 = vcmp.eq.s32.totalorder %v417, %v462
        %v464 = vsel %vm463, 1, 0
        %v465 = vcvt.s32.f32 %v464
        %v466 = vadd.f32 %v452, %v465
        %467 = vset.pattern.permute.xlu0 7
        %468 = vperm.xlu0 %467, %v415
        %v469 = vpop.permute.xlu0 %468
        %vm470 = vcmp.eq.s32.totalorder %v417, %v469
        %v471 = vsel %vm470, 1, 0
        %v472 = vcvt.s32.f32 %v471
        %v473 = vadd.f32 %v459, %v472
        %vm474 = vcmask 130048
        %v476 = vsel %vm474, %v473, 0
        %478 = vmatprep.subr.mxu0 0.0
        %v479 = vand.u32 %v413, 4294901760
        %480 = vmatpush1.msra.mxu0 %v479
        %481 = vmatprep.subr.mxu0 0.0
        %v482 = vand.u32 %v414, 4294901760
        %483 = vmatpush1.msra.mxu0 %v482
        %484 = vmatprep.subr.mxu0 0.0
        %485 = vmatpush1.msra.mxu0 0.0
        %486 = vmatprep.subr.mxu0 0.0
        %487 = vmatpush1.msra.mxu0 0.0
        %488 = vmatprep.subr.mxu0 0.0
        %489 = vmatpush1.msra.mxu0 0.0
        %490 = vmatprep.subr.mxu0 0.0
        %491 = vmatpush1.msra.mxu0 0.0
        %492 = vmatprep.subr.mxu0 0.0
        %493 = vmatpush1.msra.mxu0 0.0
        %494 = vmatprep.subr.mxu0 0.0
        %495 = vmatpush1.msra.mxu0 0.0
        %496 = vmatprep.subr.mxu0 0.0
        %497 = vmatpush1.msra.mxu0 0.0
        %498 = vmatprep.subr.mxu0 0.0
        %499 = vmatpush1.msra.mxu0 0.0
        %500 = vmatprep.subr.mxu0 0.0
        %501 = vmatpush1.msra.mxu0 0.0
        %502 = vmatprep.subr.mxu0 0.0
        %503 = vmatpush1.msra.mxu0 0.0
        %504 = vmatprep.subr.mxu0 0.0
        %505 = vmatpush1.msra.mxu0 0.0
        %506 = vmatprep.subr.mxu0 0.0
        %507 = vmatpush1.msra.mxu0 0.0
        %508 = vmatprep.subr.mxu0 0.0
        %509 = vmatpush1.msra.mxu0 0.0
        %510 = vmatprep.subr.mxu0 0.0
        %511 = vmatpush1.msra.mxu0 0.0
        %512 = vmatprep.subr.mxu0 0.0
        %513 = vmatpush1.msra.mxu0 0.0
        %514 = vmatprep.subr.mxu0 0.0
        %515 = vmatpush1.msra.mxu0 0.0
        %516 = vmatprep.subr.mxu0 0.0
        %517 = vmatpush1.msra.mxu0 0.0
        %518 = vmatprep.subr.mxu0 0.0
        %519 = vmatpush1.msra.mxu0 0.0
        %520 = vmatprep.subr.mxu0 0.0
        %521 = vmatpush1.msra.mxu0 0.0
        %522 = vmatprep.subr.mxu0 0.0
        %523 = vmatpush1.msra.mxu0 0.0
        %524 = vmatprep.subr.mxu0 0.0
        %525 = vmatpush1.msra.mxu0 0.0
        %526 = vmatprep.subr.mxu0 0.0
        %527 = vmatpush1.msra.mxu0 0.0
        %528 = vmatprep.subr.mxu0 0.0
        %529 = vmatpush1.msra.mxu0 0.0
        %530 = vmatprep.subr.mxu0 0.0
        %531 = vmatpush1.msra.mxu0 0.0
        %532 = vmatprep.subr.mxu0 0.0
        %533 = vmatpush1.msra.mxu0 0.0
        %534 = vmatprep.subr.mxu0 0.0
        %535 = vmatpush1.msra.mxu0 0.0
        %536 = vmatprep.subr.mxu0 0.0
        %537 = vmatpush1.msra.mxu0 0.0
        %538 = vmatprep.subr.mxu0 0.0
        %539 = vmatpush1.msra.mxu0 0.0
        %540 = vmatprep.subr.mxu0 0.0
        %541 = vmatpush1.msra.mxu0 0.0
        %542 = vmatprep.subr.mxu0 0.0
        %543 = vmatpush1.msra.mxu0 0.0
        %544 = vmatprep.mubr.f32.mxu0 0.0
        %v545 = vand.u32 %v476, 4294901760
        %v546 = vsub.f32 %v476, %v545
        %v547 = vand.u32 %v546, 4294901760
        %v548 = vsub.f32 %v546, %v547
        %v549 = vand.u32 %v548, 4294901760
        %550 = vmatmul.mubr.f32.gmra.mrb[0].mxu0 %v549
        %v551 = vpop.f32.mrb[0].mxu0
        %v552 = vadd.f32 0.0, %v551
        %v553 = vpop.f32.mrb[0].mxu0
        %554 = vdwg.mxu0
        %555 = vmatprep.subr.mxu0 0.0
        %v556 = vand.u32 %v413, 4294901760
        %v557 = vsub.f32 %v413, %v556
        %v558 = vand.u32 %v557, 4294901760
        %v559 = vsub.f32 %v557, %v558
        %v560 = vand.u32 %v559, 4294901760
        %561 = vmatpush1.msra.mxu0 %v560
        %562 = vmatprep.subr.mxu0 0.0
        %v563 = vand.u32 %v414, 4294901760
        %v564 = vsub.f32 %v414, %v563
        %v565 = vand.u32 %v564, 4294901760
        %v566 = vsub.f32 %v564, %v565
        %v567 = vand.u32 %v566, 4294901760
        %568 = vmatpush1.msra.mxu0 %v567
        %569 = vmatprep.subr.mxu0 0.0
        %570 = vmatpush1.msra.mxu0 0.0
        %571 = vmatprep.subr.mxu0 0.0
        %572 = vmatpush1.msra.mxu0 0.0
        %573 = vmatprep.subr.mxu0 0.0
        %574 = vmatpush1.msra.mxu0 0.0
        %575 = vmatprep.subr.mxu0 0.0
        %576 = vmatpush1.msra.mxu0 0.0
        %577 = vmatprep.subr.mxu0 0.0
        %578 = vmatpush1.msra.mxu0 0.0
        %579 = vmatprep.subr.mxu0 0.0
        %580 = vmatpush1.msra.mxu0 0.0
        %581 = vmatprep.subr.mxu0 0.0
        %582 = vmatpush1.msra.mxu0 0.0
        %583 = vmatprep.subr.mxu0 0.0
        %584 = vmatpush1.msra.mxu0 0.0
        %585 = vmatprep.subr.mxu0 0.0
        %586 = vmatpush1.msra.mxu0 0.0
        %587 = vmatprep.subr.mxu0 0.0
        %588 = vmatpush1.msra.mxu0 0.0
        %589 = vmatprep.subr.mxu0 0.0
        %590 = vmatpush1.msra.mxu0 0.0
        %591 = vmatprep.subr.mxu0 0.0
        %592 = vmatpush1.msra.mxu0 0.0
        %593 = vmatprep.subr.mxu0 0.0
        %594 = vmatpush1.msra.mxu0 0.0
        %595 = vmatprep.subr.mxu0 0.0
        %596 = vmatpush1.msra.mxu0 0.0
        %597 = vmatprep.subr.mxu0 0.0
        %598 = vmatpush1.msra.mxu0 0.0
        %599 = vmatprep.subr.mxu0 0.0
        %600 = vmatpush1.msra.mxu0 0.0
        %601 = vmatprep.subr.mxu0 0.0
        %602 = vmatpush1.msra.mxu0 0.0
        %603 = vmatprep.subr.mxu0 0.0
        %604 = vmatpush1.msra.mxu0 0.0
        %605 = vmatprep.subr.mxu0 0.0
        %606 = vmatpush1.msra.mxu0 0.0
        %607 = vmatprep.subr.mxu0 0.0
        %608 = vmatpush1.msra.mxu0 0.0
        %609 = vmatprep.subr.mxu0 0.0
        %610 = vmatpush1.msra.mxu0 0.0
        %611 = vmatprep.subr.mxu0 0.0
        %612 = vmatpush1.msra.mxu0 0.0
        %613 = vmatprep.subr.mxu0 0.0
        %614 = vmatpush1.msra.mxu0 0.0
        %615 = vmatprep.subr.mxu0 0.0
        %616 = vmatpush1.msra.mxu0 0.0
        %617 = vmatprep.subr.mxu0 0.0
        %618 = vmatpush1.msra.mxu0 0.0
        %619 = vmatprep.subr.mxu0 0.0
        %620 = vmatpush1.msra.mxu0 0.0
        %621 = vmatprep.subr.mxu0 0.0
        %622 = vmatpush1.msra.mxu0 0.0
        %623 = vmatprep.subr.mxu0 0.0
        %624 = vmatpush1.msra.mxu0 0.0
        %625 = vmatprep.subr.mxu0 0.0
        %626 = vmatpush1.msra.mxu0 0.0
        %627 = vmatprep.subr.mxu0 0.0
        %628 = vmatpush1.msra.mxu0 0.0
        %629 = vmatprep.mubr.f32.mxu0 0.0
        %v630 = vand.u32 %v476, 4294901760
        %631 = vmatmul.mubr.f32.gmra.mrb[0].mxu0 %v630
        %v632 = vpop.f32.mrb[0].mxu0
        %v633 = vadd.f32 %v552, %v632
        %v634 = vpop.f32.mrb[0].mxu0
        %635 = vdwg.mxu0
        %636 = vmatprep.subr.mxu0 0.0
        %v637 = vand.u32 %v413, 4294901760
        %v638 = vsub.f32 %v413, %v637
        %639 = vmatpush1.msra.mxu0 %v638
        %640 = vmatprep.subr.mxu0 0.0
        %v641 = vand.u32 %v414, 4294901760
        %v642 = vsub.f32 %v414, %v641
        %643 = vmatpush1.msra.mxu0 %v642
        %644 = vmatprep.subr.mxu0 0.0
        %645 = vmatpush1.msra.mxu0 0.0
        %646 = vmatprep.subr.mxu0 0.0
        %647 = vmatpush1.msra.mxu0 0.0
        %648 = vmatprep.subr.mxu0 0.0
        %649 = vmatpush1.msra.mxu0 0.0
        %650 = vmatprep.subr.mxu0 0.0
        %651 = vmatpush1.msra.mxu0 0.0
        %652 = vmatprep.subr.mxu0 0.0
        %653 = vmatpush1.msra.mxu0 0.0
        %654 = vmatprep.subr.mxu0 0.0
        %655 = vmatpush1.msra.mxu0 0.0
        %656 = vmatprep.subr.mxu0 0.0
        %657 = vmatpush1.msra.mxu0 0.0
        %658 = vmatprep.subr.mxu0 0.0
        %659 = vmatpush1.msra.mxu0 0.0
        %660 = vmatprep.subr.mxu0 0.0
        %661 = vmatpush1.msra.mxu0 0.0
        %662 = vmatprep.subr.mxu0 0.0
        %663 = vmatpush1.msra.mxu0 0.0
        %664 = vmatprep.subr.mxu0 0.0
        %665 = vmatpush1.msra.mxu0 0.0
        %666 = vmatprep.subr.mxu0 0.0
        %667 = vmatpush1.msra.mxu0 0.0
        %668 = vmatprep.subr.mxu0 0.0
        %669 = vmatpush1.msra.mxu0 0.0
        %670 = vmatprep.subr.mxu0 0.0
        %671 = vmatpush1.msra.mxu0 0.0
        %672 = vmatprep.subr.mxu0 0.0
        %673 = vmatpush1.msra.mxu0 0.0
        %674 = vmatprep.subr.mxu0 0.0
        %675 = vmatpush1.msra.mxu0 0.0
        %676 = vmatprep.subr.mxu0 0.0
        %677 = vmatpush1.msra.mxu0 0.0
        %678 = vmatprep.subr.mxu0 0.0
        %679 = vmatpush1.msra.mxu0 0.0
        %680 = vmatprep.subr.mxu0 0.0
        %681 = vmatpush1.msra.mxu0 0.0
        %682 = vmatprep.subr.mxu0 0.0
        %683 = vmatpush1.msra.mxu0 0.0
        %684 = vmatprep.subr.mxu0 0.0
        %685 = vmatpush1.msra.mxu0 0.0
        %686 = vmatprep.subr.mxu0 0.0
        %687 = vmatpush1.msra.mxu0 0.0
        %688 = vmatprep.subr.mxu0 0.0
        %689 = vmatpush1.msra.mxu0 0.0
        %690 = vmatprep.subr.mxu0 0.0
        %691 = vmatpush1.msra.mxu0 0.0
        %692 = vmatprep.subr.mxu0 0.0
        %693 = vmatpush1.msra.mxu0 0.0
        %694 = vmatprep.subr.mxu0 0.0
        %695 = vmatpush1.msra.mxu0 0.0
        %696 = vmatprep.subr.mxu0 0.0
        %697 = vmatpush1.msra.mxu0 0.0
        %698 = vmatprep.subr.mxu0 0.0
        %699 = vmatpush1.msra.mxu0 0.0
        %700 = vmatprep.subr.mxu0 0.0
        %701 = vmatpush1.msra.mxu0 0.0
        %702 = vmatprep.subr.mxu0 0.0
        %703 = vmatpush1.msra.mxu0 0.0
        %704 = vmatprep.mubr.f32.mxu0 0.0
        %v705 = vand.u32 %v476, 4294901760
        %v706 = vsub.f32 %v476, %v705
        %707 = vmatmul.mubr.f32.gmra.mrb[0].mxu0 %v706
        %v708 = vpop.f32.mrb[0].mxu0
        %v709 = vadd.f32 %v633, %v708
        %v710 = vpop.f32.mrb[0].mxu0
        %711 = vdwg.mxu0
        %712 = vmatprep.subr.mxu0 0.0
        %v713 = vand.u32 %v413, 4294901760
        %714 = vmatpush1.msra.mxu0 %v713
        %715 = vmatprep.subr.mxu0 0.0
        %v716 = vand.u32 %v414, 4294901760
        %717 = vmatpush1.msra.mxu0 %v716
        %718 = vmatprep.subr.mxu0 0.0
        %719 = vmatpush1.msra.mxu0 0.0
        %720 = vmatprep.subr.mxu0 0.0
        %721 = vmatpush1.msra.mxu0 0.0
        %722 = vmatprep.subr.mxu0 0.0
        %723 = vmatpush1.msra.mxu0 0.0
        %724 = vmatprep.subr.mxu0 0.0
        %725 = vmatpush1.msra.mxu0 0.0
        %726 = vmatprep.subr.mxu0 0.0
        %727 = vmatpush1.msra.mxu0 0.0
        %728 = vmatprep.subr.mxu0 0.0
        %729 = vmatpush1.msra.mxu0 0.0
        %730 = vmatprep.subr.mxu0 0.0
        %731 = vmatpush1.msra.mxu0 0.0
        %732 = vmatprep.subr.mxu0 0.0
        %733 = vmatpush1.msra.mxu0 0.0
        %734 = vmatprep.subr.mxu0 0.0
        %735 = vmatpush1.msra.mxu0 0.0
        %736 = vmatprep.subr.mxu0 0.0
        %737 = vmatpush1.msra.mxu0 0.0
        %738 = vmatprep.subr.mxu0 0.0
        %739 = vmatpush1.msra.mxu0 0.0
        %740 = vmatprep.subr.mxu0 0.0
        %741 = vmatpush1.msra.mxu0 0.0
        %742 = vmatprep.subr.mxu0 0.0
        %743 = vmatpush1.msra.mxu0 0.0
        %744 = vmatprep.subr.mxu0 0.0
        %745 = vmatpush1.msra.mxu0 0.0
        %746 = vmatprep.subr.mxu0 0.0
        %747 = vmatpush1.msra.mxu0 0.0
        %748 = vmatprep.subr.mxu0 0.0
        %749 = vmatpush1.msra.mxu0 0.0
        %750 = vmatprep.subr.mxu0 0.0
        %751 = vmatpush1.msra.mxu0 0.0
        %752 = vmatprep.subr.mxu0 0.0
        %753 = vmatpush1.msra.mxu0 0.0
        %754 = vmatprep.subr.mxu0 0.0
        %755 = vmatpush1.msra.mxu0 0.0
        %756 = vmatprep.subr.mxu0 0.0
        %757 = vmatpush1.msra.mxu0 0.0
        %758 = vmatprep.subr.mxu0 0.0
        %759 = vmatpush1.msra.mxu0 0.0
        %760 = vmatprep.subr.mxu0 0.0
        %761 = vmatpush1.msra.mxu0 0.0
        %762 = vmatprep.subr.mxu0 0.0
        %763 = vmatpush1.msra.mxu0 0.0
        %764 = vmatprep.subr.mxu0 0.0
        %765 = vmatpush1.msra.mxu0 0.0
        %766 = vmatprep.subr.mxu0 0.0
        %767 = vmatpush1.msra.mxu0 0.0
        %768 = vmatprep.subr.mxu0 0.0
        %769 = vmatpush1.msra.mxu0 0.0
        %770 = vmatprep.subr.mxu0 0.0
        %771 = vmatpush1.msra.mxu0 0.0
        %772 = vmatprep.subr.mxu0 0.0
        %773 = vmatpush1.msra.mxu0 0.0
        %774 = vmatprep.subr.mxu0 0.0
        %775 = vmatpush1.msra.mxu0 0.0
        %776 = vmatprep.subr.mxu0 0.0
        %777 = vmatpush1.msra.mxu0 0.0
        %778 = vmatprep.mubr.f32.mxu0 0.0
        %v779 = vand.u32 %v476, 4294901760
        %v780 = vsub.f32 %v476, %v779
        %v781 = vand.u32 %v780, 4294901760
        %782 = vmatmul.mubr.f32.gmra.mrb[0].mxu0 %v781
        %v783 = vpop.f32.mrb[0].mxu0
        %v784 = vadd.f32 %v709, %v783
        %v785 = vpop.f32.mrb[0].mxu0
        %786 = vdwg.mxu0
        %787 = vmatprep.subr.mxu0 0.0
        %v788 = vand.u32 %v413, 4294901760
        %v789 = vsub.f32 %v413, %v788
        %v790 = vand.u32 %v789, 4294901760
        %791 = vmatpush1.msra.mxu0 %v790
        %792 = vmatprep.subr.mxu0 0.0
        %v793 = vand.u32 %v414, 4294901760
        %v794 = vsub.f32 %v414, %v793
        %v795 = vand.u32 %v794, 4294901760
        %796 = vmatpush1.msra.mxu0 %v795
        %797 = vmatprep.subr.mxu0 0.0
        %798 = vmatpush1.msra.mxu0 0.0
        %799 = vmatprep.subr.mxu0 0.0
        %800 = vmatpush1.msra.mxu0 0.0
        %801 = vmatprep.subr.mxu0 0.0
        %802 = vmatpush1.msra.mxu0 0.0
        %803 = vmatprep.subr.mxu0 0.0
        %804 = vmatpush1.msra.mxu0 0.0
        %805 = vmatprep.subr.mxu0 0.0
        %806 = vmatpush1.msra.mxu0 0.0
        %807 = vmatprep.subr.mxu0 0.0
        %808 = vmatpush1.msra.mxu0 0.0
        %809 = vmatprep.subr.mxu0 0.0
        %810 = vmatpush1.msra.mxu0 0.0
        %811 = vmatprep.subr.mxu0 0.0
        %812 = vmatpush1.msra.mxu0 0.0
        %813 = vmatprep.subr.mxu0 0.0
        %814 = vmatpush1.msra.mxu0 0.0
        %815 = vmatprep.subr.mxu0 0.0
        %816 = vmatpush1.msra.mxu0 0.0
        %817 = vmatprep.subr.mxu0 0.0
        %818 = vmatpush1.msra.mxu0 0.0
        %819 = vmatprep.subr.mxu0 0.0
        %820 = vmatpush1.msra.mxu0 0.0
        %821 = vmatprep.subr.mxu0 0.0
        %822 = vmatpush1.msra.mxu0 0.0
        %823 = vmatprep.subr.mxu0 0.0
        %824 = vmatpush1.msra.mxu0 0.0
        %825 = vmatprep.subr.mxu0 0.0
        %826 = vmatpush1.msra.mxu0 0.0
        %827 = vmatprep.subr.mxu0 0.0
        %828 = vmatpush1.msra.mxu0 0.0
        %829 = vmatprep.subr.mxu0 0.0
        %830 = vmatpush1.msra.mxu0 0.0
        %831 = vmatprep.subr.mxu0 0.0
        %832 = vmatpush1.msra.mxu0 0.0
        %833 = vmatprep.subr.mxu0 0.0
        %834 = vmatpush1.msra.mxu0 0.0
        %835 = vmatprep.subr.mxu0 0.0
        %836 = vmatpush1.msra.mxu0 0.0
        %837 = vmatprep.subr.mxu0 0.0
        %838 = vmatpush1.msra.mxu0 0.0
        %839 = vmatprep.subr.mxu0 0.0
        %840 = vmatpush1.msra.mxu0 0.0
        %841 = vmatprep.subr.mxu0 0.0
        %842 = vmatpush1.msra.mxu0 0.0
        %843 = vmatprep.subr.mxu0 0.0
        %844 = vmatpush1.msra.mxu0 0.0
        %845 = vmatprep.subr.mxu0 0.0
        %846 = vmatpush1.msra.mxu0 0.0
        %847 = vmatprep.subr.mxu0 0.0
        %848 = vmatpush1.msra.mxu0 0.0
        %849 = vmatprep.subr.mxu0 0.0
        %850 = vmatpush1.msra.mxu0 0.0
        %851 = vmatprep.subr.mxu0 0.0
        %852 = vmatpush1.msra.mxu0 0.0
        %853 = vmatprep.subr.mxu0 0.0
        %854 = vmatpush1.msra.mxu0 0.0
        %855 = vmatprep.subr.mxu0 0.0
        %856 = vmatpush1.msra.mxu0 0.0
        %857 = vmatprep.mubr.f32.mxu0 0.0
        %v858 = vand.u32 %v476, 4294901760
        %859 = vmatmul.mubr.f32.gmra.mrb[0].mxu0 %v858
        %v860 = vpop.f32.mrb[0].mxu0
        %v861 = vadd.f32 %v784, %v860
        %v862 = vpop.f32.mrb[0].mxu0
        %863 = vdwg.mxu0
        %864 = vmatprep.subr.mxu0 0.0
        %v865 = vand.u32 %v413, 4294901760
        %866 = vmatpush1.msra.mxu0 %v865
        %867 = vmatprep.subr.mxu0 0.0
        %v868 = vand.u32 %v414, 4294901760
        %869 = vmatpush1.msra.mxu0 %v868
        %870 = vmatprep.subr.mxu0 0.0
        %871 = vmatpush1.msra.mxu0 0.0
        %872 = vmatprep.subr.mxu0 0.0
        %873 = vmatpush1.msra.mxu0 0.0
        %874 = vmatprep.subr.mxu0 0.0
        %875 = vmatpush1.msra.mxu0 0.0
        %876 = vmatprep.subr.mxu0 0.0
        %877 = vmatpush1.msra.mxu0 0.0
        %878 = vmatprep.subr.mxu0 0.0
        %879 = vmatpush1.msra.mxu0 0.0
        %880 = vmatprep.subr.mxu0 0.0
        %881 = vmatpush1.msra.mxu0 0.0
        %882 = vmatprep.subr.mxu0 0.0
        %883 = vmatpush1.msra.mxu0 0.0
        %884 = vmatprep.subr.mxu0 0.0
        %885 = vmatpush1.msra.mxu0 0.0
        %886 = vmatprep.subr.mxu0 0.0
        %887 = vmatpush1.msra.mxu0 0.0
        %888 = vmatprep.subr.mxu0 0.0
        %889 = vmatpush1.msra.mxu0 0.0
        %890 = vmatprep.subr.mxu0 0.0
        %891 = vmatpush1.msra.mxu0 0.0
        %892 = vmatprep.subr.mxu0 0.0
        %893 = vmatpush1.msra.mxu0 0.0
        %894 = vmatprep.subr.mxu0 0.0
        %895 = vmatpush1.msra.mxu0 0.0
        %896 = vmatprep.subr.mxu0 0.0
        %897 = vmatpush1.msra.mxu0 0.0
        %898 = vmatprep.subr.mxu0 0.0
        %899 = vmatpush1.msra.mxu0 0.0
        %900 = vmatprep.subr.mxu0 0.0
        %901 = vmatpush1.msra.mxu0 0.0
        %902 = vmatprep.subr.mxu0 0.0
        %903 = vmatpush1.msra.mxu0 0.0
        %904 = vmatprep.subr.mxu0 0.0
        %905 = vmatpush1.msra.mxu0 0.0
        %906 = vmatprep.subr.mxu0 0.0
        %907 = vmatpush1.msra.mxu0 0.0
        %908 = vmatprep.subr.mxu0 0.0
        %909 = vmatpush1.msra.mxu0 0.0
        %910 = vmatprep.subr.mxu0 0.0
        %911 = vmatpush1.msra.mxu0 0.0
        %912 = vmatprep.subr.mxu0 0.0
        %913 = vmatpush1.msra.mxu0 0.0
        %914 = vmatprep.subr.mxu0 0.0
        %915 = vmatpush1.msra.mxu0 0.0
        %916 = vmatprep.subr.mxu0 0.0
        %917 = vmatpush1.msra.mxu0 0.0
        %918 = vmatprep.subr.mxu0 0.0
        %919 = vmatpush1.msra.mxu0 0.0
        %920 = vmatprep.subr.mxu0 0.0
        %921 = vmatpush1.msra.mxu0 0.0
        %922 = vmatprep.subr.mxu0 0.0
        %923 = vmatpush1.msra.mxu0 0.0
        %924 = vmatprep.subr.mxu0 0.0
        %925 = vmatpush1.msra.mxu0 0.0
        %926 = vmatprep.subr.mxu0 0.0
        %927 = vmatpush1.msra.mxu0 0.0
        %928 = vmatprep.subr.mxu0 0.0
        %929 = vmatpush1.msra.mxu0 0.0
        %930 = vmatprep.mubr.f32.mxu0 0.0
        %v931 = vand.u32 %v476, 4294901760
        %932 = vmatmul.mubr.f32.gmra.mrb[0].mxu0 %v931
        %v933 = vpop.f32.mrb[0].mxu0
        %v934 = vadd.f32 %v861, %v933
        %v935 = vpop.f32.mrb[0].mxu0
        %936 = vdwg.mxu0
        %vm937 = vcmask 64512
        %v939 = vsel %vm937, %v466, 0
        %941 = vmatprep.subr.mxu0 0.0
        %v942 = vand.u32 %v412, 4294901760
        %943 = vmatpush1.msra.mxu0 %v942
        %944 = vmatprep.subr.mxu0 0.0
        %945 = vmatpush1.msra.mxu0 0.0
        %946 = vmatprep.subr.mxu0 0.0
        %947 = vmatpush1.msra.mxu0 0.0
        %948 = vmatprep.subr.mxu0 0.0
        %949 = vmatpush1.msra.mxu0 0.0
        %950 = vmatprep.subr.mxu0 0.0
        %951 = vmatpush1.msra.mxu0 0.0
        %952 = vmatprep.subr.mxu0 0.0
        %953 = vmatpush1.msra.mxu0 0.0
        %954 = vmatprep.subr.mxu0 0.0
        %955 = vmatpush1.msra.mxu0 0.0
        %956 = vmatprep.subr.mxu0 0.0
        %957 = vmatpush1.msra.mxu0 0.0
        %958 = vmatprep.subr.mxu0 0.0
        %959 = vmatpush1.msra.mxu0 0.0
        %960 = vmatprep.subr.mxu0 0.0
        %961 = vmatpush1.msra.mxu0 0.0
        %962 = vmatprep.subr.mxu0 0.0
        %963 = vmatpush1.msra.mxu0 0.0
        %964 = vmatprep.subr.mxu0 0.0
        %965 = vmatpush1.msra.mxu0 0.0
        %966 = vmatprep.subr.mxu0 0.0
        %967 = vmatpush1.msra.mxu0 0.0
        %968 = vmatprep.subr.mxu0 0.0
        %969 = vmatpush1.msra.mxu0 0.0
        %970 = vmatprep.subr.mxu0 0.0
        %971 = vmatpush1.msra.mxu0 0.0
        %972 = vmatprep.subr.mxu0 0.0
        %973 = vmatpush1.msra.mxu0 0.0
        %974 = vmatprep.subr.mxu0 0.0
        %975 = vmatpush1.msra.mxu0 0.0
        %976 = vmatprep.subr.mxu0 0.0
        %977 = vmatpush1.msra.mxu0 0.0
        %978 = vmatprep.subr.mxu0 0.0
        %979 = vmatpush1.msra.mxu0 0.0
        %980 = vmatprep.subr.mxu0 0.0
        %981 = vmatpush1.msra.mxu0 0.0
        %982 = vmatprep.subr.mxu0 0.0
        %983 = vmatpush1.msra.mxu0 0.0
        %984 = vmatprep.subr.mxu0 0.0
        %985 = vmatpush1.msra.mxu0 0.0
        %986 = vmatprep.subr.mxu0 0.0
        %987 = vmatpush1.msra.mxu0 0.0
        %988 = vmatprep.subr.mxu0 0.0
        %989 = vmatpush1.msra.mxu0 0.0
        %990 = vmatprep.subr.mxu0 0.0
        %991 = vmatpush1.msra.mxu0 0.0
        %992 = vmatprep.subr.mxu0 0.0
        %993 = vmatpush1.msra.mxu0 0.0
        %994 = vmatprep.subr.mxu0 0.0
        %995 = vmatpush1.msra.mxu0 0.0
        %996 = vmatprep.subr.mxu0 0.0
        %997 = vmatpush1.msra.mxu0 0.0
        %998 = vmatprep.subr.mxu0 0.0
        %999 = vmatpush1.msra.mxu0 0.0
        %1000 = vmatprep.subr.mxu0 0.0
        %1001 = vmatpush1.msra.mxu0 0.0
        %1002 = vmatprep.subr.mxu0 0.0
        %1003 = vmatpush1.msra.mxu0 0.0
        %1004 = vmatprep.subr.mxu0 0.0
        %1005 = vmatpush1.msra.mxu0 0.0
        %1006 = vmatprep.mubr.f32.mxu0 0.0
        %v1007 = vand.u32 %v939, 4294901760
        %v1008 = vsub.f32 %v939, %v1007
        %v1009 = vand.u32 %v1008, 4294901760
        %v1010 = vsub.f32 %v1008, %v1009
        %v1011 = vand.u32 %v1010, 4294901760
        %1012 = vmatmul.mubr.f32.gmra.mrb[0].mxu0 %v1011
        %v1013 = vpop.f32.mrb[0].mxu0
        %v1014 = vadd.f32 %v934, %v1013
        %v1015 = vpop.f32.mrb[0].mxu0
        %1016 = vdwg.mxu0
        %1017 = vmatprep.subr.mxu0 0.0
        %v1018 = vand.u32 %v412, 4294901760
        %v1019 = vsub.f32 %v412, %v1018
        %v1020 = vand.u32 %v1019, 4294901760
        %v1021 = vsub.f32 %v1019, %v1020
        %v1022 = vand.u32 %v1021, 4294901760
        %1023 = vmatpush1.msra.mxu0 %v1022
        %1024 = vmatprep.subr.mxu0 0.0
        %1025 = vmatpush1.msra.mxu0 0.0
        %1026 = vmatprep.subr.mxu0 0.0
        %1027 = vmatpush1.msra.mxu0 0.0
        %1028 = vmatprep.subr.mxu0 0.0
        %1029 = vmatpush1.msra.mxu0 0.0
        %1030 = vmatprep.subr.mxu0 0.0
        %1031 = vmatpush1.msra.mxu0 0.0
        %1032 = vmatprep.subr.mxu0 0.0
        %1033 = vmatpush1.msra.mxu0 0.0
        %1034 = vmatprep.subr.mxu0 0.0
        %1035 = vmatpush1.msra.mxu0 0.0
        %1036 = vmatprep.subr.mxu0 0.0
        %1037 = vmatpush1.msra.mxu0 0.0
        %1038 = vmatprep.subr.mxu0 0.0
        %1039 = vmatpush1.msra.mxu0 0.0
        %1040 = vmatprep.subr.mxu0 0.0
        %1041 = vmatpush1.msra.mxu0 0.0
        %1042 = vmatprep.subr.mxu0 0.0
        %1043 = vmatpush1.msra.mxu0 0.0
        %1044 = vmatprep.subr.mxu0 0.0
        %1045 = vmatpush1.msra.mxu0 0.0
        %1046 = vmatprep.subr.mxu0 0.0
        %1047 = vmatpush1.msra.mxu0 0.0
        %1048 = vmatprep.subr.mxu0 0.0
        %1049 = vmatpush1.msra.mxu0 0.0
        %1050 = vmatprep.subr.mxu0 0.0
        %1051 = vmatpush1.msra.mxu0 0.0
        %1052 = vmatprep.subr.mxu0 0.0
        %1053 = vmatpush1.msra.mxu0 0.0
        %1054 = vmatprep.subr.mxu0 0.0
        %1055 = vmatpush1.msra.mxu0 0.0
        %1056 = vmatprep.subr.mxu0 0.0
        %1057 = vmatpush1.msra.mxu0 0.0
        %1058 = vmatprep.subr.mxu0 0.0
        %1059 = vmatpush1.msra.mxu0 0.0
        %1060 = vmatprep.subr.mxu0 0.0
        %1061 = vmatpush1.msra.mxu0 0.0
        %1062 = vmatprep.subr.mxu0 0.0
        %1063 = vmatpush1.msra.mxu0 0.0
        %1064 = vmatprep.subr.mxu0 0.0
        %1065 = vmatpush1.msra.mxu0 0.0
        %1066 = vmatprep.subr.mxu0 0.0
        %1067 = vmatpush1.msra.mxu0 0.0
        %1068 = vmatprep.subr.mxu0 0.0
        %1069 = vmatpush1.msra.mxu0 0.0
        %1070 = vmatprep.subr.mxu0 0.0
        %1071 = vmatpush1.msra.mxu0 0.0
        %1072 = vmatprep.subr.mxu0 0.0
        %1073 = vmatpush1.msra.mxu0 0.0
        %1074 = vmatprep.subr.mxu0 0.0
        %1075 = vmatpush1.msra.mxu0 0.0
        %1076 = vmatprep.subr.mxu0 0.0
        %1077 = vmatpush1.msra.mxu0 0.0
        %1078 = vmatprep.subr.mxu0 0.0
        %1079 = vmatpush1.msra.mxu0 0.0
        %1080 = vmatprep.subr.mxu0 0.0
        %1081 = vmatpush1.msra.mxu0 0.0
        %1082 = vmatprep.subr.mxu0 0.0
        %1083 = vmatpush1.msra.mxu0 0.0
        %1084 = vmatprep.subr.mxu0 0.0
        %1085 = vmatpush1.msra.mxu0 0.0
        %1086 = vmatprep.mubr.f32.mxu0 0.0
        %v1087 = vand.u32 %v939, 4294901760
        %1088 = vmatmul.mubr.f32.gmra.mrb[0].mxu0 %v1087
        %v1089 = vpop.f32.mrb[0].mxu0
        %v1090 = vadd.f32 %v1014, %v1089
        %v1091 = vpop.f32.mrb[0].mxu0
        %1092 = vdwg.mxu0
        %1093 = vmatprep.subr.mxu0 0.0
        %v1094 = vand.u32 %v412, 4294901760
        %v1095 = vsub.f32 %v412, %v1094
        %1096 = vmatpush1.msra.mxu0 %v1095
        %1097 = vmatprep.subr.mxu0 0.0
        %1098 = vmatpush1.msra.mxu0 0.0
        %1099 = vmatprep.subr.mxu0 0.0
        %1100 = vmatpush1.msra.mxu0 0.0
        %1101 = vmatprep.subr.mxu0 0.0
        %1102 = vmatpush1.msra.mxu0 0.0
        %1103 = vmatprep.subr.mxu0 0.0
        %1104 = vmatpush1.msra.mxu0 0.0
        %1105 = vmatprep.subr.mxu0 0.0
        %1106 = vmatpush1.msra.mxu0 0.0
        %1107 = vmatprep.subr.mxu0 0.0
        %1108 = vmatpush1.msra.mxu0 0.0
        %1109 = vmatprep.subr.mxu0 0.0
        %1110 = vmatpush1.msra.mxu0 0.0
        %1111 = vmatprep.subr.mxu0 0.0
        %1112 = vmatpush1.msra.mxu0 0.0
        %1113 = vmatprep.subr.mxu0 0.0
        %1114 = vmatpush1.msra.mxu0 0.0
        %1115 = vmatprep.subr.mxu0 0.0
        %1116 = vmatpush1.msra.mxu0 0.0
        %1117 = vmatprep.subr.mxu0 0.0
        %1118 = vmatpush1.msra.mxu0 0.0
        %1119 = vmatprep.subr.mxu0 0.0
        %1120 = vmatpush1.msra.mxu0 0.0
        %1121 = vmatprep.subr.mxu0 0.0
        %1122 = vmatpush1.msra.mxu0 0.0
        %1123 = vmatprep.subr.mxu0 0.0
        %1124 = vmatpush1.msra.mxu0 0.0
        %1125 = vmatprep.subr.mxu0 0.0
        %1126 = vmatpush1.msra.mxu0 0.0
        %1127 = vmatprep.subr.mxu0 0.0
        %1128 = vmatpush1.msra.mxu0 0.0
        %1129 = vmatprep.subr.mxu0 0.0
        %1130 = vmatpush1.msra.mxu0 0.0
        %1131 = vmatprep.subr.mxu0 0.0
        %1132 = vmatpush1.msra.mxu0 0.0
        %1133 = vmatprep.subr.mxu0 0.0
        %1134 = vmatpush1.msra.mxu0 0.0
        %1135 = vmatprep.subr.mxu0 0.0
        %1136 = vmatpush1.msra.mxu0 0.0
        %1137 = vmatprep.subr.mxu0 0.0
        %1138 = vmatpush1.msra.mxu0 0.0
        %1139 = vmatprep.subr.mxu0 0.0
        %1140 = vmatpush1.msra.mxu0 0.0
        %1141 = vmatprep.subr.mxu0 0.0
        %1142 = vmatpush1.msra.mxu0 0.0
        %1143 = vmatprep.subr.mxu0 0.0
        %1144 = vmatpush1.msra.mxu0 0.0
        %1145 = vmatprep.subr.mxu0 0.0
        %1146 = vmatpush1.msra.mxu0 0.0
        %1147 = vmatprep.subr.mxu0 0.0
        %1148 = vmatpush1.msra.mxu0 0.0
        %1149 = vmatprep.subr.mxu0 0.0
        %1150 = vmatpush1.msra.mxu0 0.0
        %1151 = vmatprep.subr.mxu0 0.0
        %1152 = vmatpush1.msra.mxu0 0.0
        %1153 = vmatprep.subr.mxu0 0.0
        %1154 = vmatpush1.msra.mxu0 0.0
        %1155 = vmatprep.subr.mxu0 0.0
        %1156 = vmatpush1.msra.mxu0 0.0
        %1157 = vmatprep.subr.mxu0 0.0
        %1158 = vmatpush1.msra.mxu0 0.0
        %1159 = vmatprep.mubr.f32.mxu0 0.0
        %v1160 = vand.u32 %v939, 4294901760
        %v1161 = vsub.f32 %v939, %v1160
        %1162 = vmatmul.mubr.f32.gmra.mrb[0].mxu0 %v1161
        %v1163 = vpop.f32.mrb[0].mxu0
        %v1164 = vadd.f32 %v1090, %v1163
        %v1165 = vpop.f32.mrb[0].mxu0
        %1166 = vdwg.mxu0
        %1167 = vmatprep.subr.mxu0 0.0
        %v1168 = vand.u32 %v412, 4294901760
        %1169 = vmatpush1.msra.mxu0 %v1168
        %1170 = vmatprep.subr.mxu0 0.0
        %1171 = vmatpush1.msra.mxu0 0.0
        %1172 = vmatprep.subr.mxu0 0.0
        %1173 = vmatpush1.msra.mxu0 0.0
        %1174 = vmatprep.subr.mxu0 0.0
        %1175 = vmatpush1.msra.mxu0 0.0
        %1176 = vmatprep.subr.mxu0 0.0
        %1177 = vmatpush1.msra.mxu0 0.0
        %1178 = vmatprep.subr.mxu0 0.0
        %1179 = vmatpush1.msra.mxu0 0.0
        %1180 = vmatprep.subr.mxu0 0.0
        %1181 = vmatpush1.msra.mxu0 0.0
        %1182 = vmatprep.subr.mxu0 0.0
        %1183 = vmatpush1.msra.mxu0 0.0
        %1184 = vmatprep.subr.mxu0 0.0
        %1185 = vmatpush1.msra.mxu0 0.0
        %1186 = vmatprep.subr.mxu0 0.0
        %1187 = vmatpush1.msra.mxu0 0.0
        %1188 = vmatprep.subr.mxu0 0.0
        %1189 = vmatpush1.msra.mxu0 0.0
        %1190 = vmatprep.subr.mxu0 0.0
        %1191 = vmatpush1.msra.mxu0 0.0
        %1192 = vmatprep.subr.mxu0 0.0
        %1193 = vmatpush1.msra.mxu0 0.0
        %1194 = vmatprep.subr.mxu0 0.0
        %1195 = vmatpush1.msra.mxu0 0.0
        %1196 = vmatprep.subr.mxu0 0.0
        %1197 = vmatpush1.msra.mxu0 0.0
        %1198 = vmatprep.subr.mxu0 0.0
        %1199 = vmatpush1.msra.mxu0 0.0
        %1200 = vmatprep.subr.mxu0 0.0
        %1201 = vmatpush1.msra.mxu0 0.0
        %1202 = vmatprep.subr.mxu0 0.0
        %1203 = vmatpush1.msra.mxu0 0.0
        %1204 = vmatprep.subr.mxu0 0.0
        %1205 = vmatpush1.msra.mxu0 0.0
        %1206 = vmatprep.subr.mxu0 0.0
        %1207 = vmatpush1.msra.mxu0 0.0
        %1208 = vmatprep.subr.mxu0 0.0
        %1209 = vmatpush1.msra.mxu0 0.0
        %1210 = vmatprep.subr.mxu0 0.0
        %1211 = vmatpush1.msra.mxu0 0.0
        %1212 = vmatprep.subr.mxu0 0.0
        %1213 = vmatpush1.msra.mxu0 0.0
        %1214 = vmatprep.subr.mxu0 0.0
        %1215 = vmatpush1.msra.mxu0 0.0
        %1216 = vmatprep.subr.mxu0 0.0
        %1217 = vmatpush1.msra.mxu0 0.0
        %1218 = vmatprep.subr.mxu0 0.0
        %1219 = vmatpush1.msra.mxu0 0.0
        %1220 = vmatprep.subr.mxu0 0.0
        %1221 = vmatpush1.msra.mxu0 0.0
        %1222 = vmatprep.subr.mxu0 0.0
        %1223 = vmatpush1.msra.mxu0 0.0
        %1224 = vmatprep.subr.mxu0 0.0
        %1225 = vmatpush1.msra.mxu0 0.0
        %1226 = vmatprep.subr.mxu0 0.0
        %1227 = vmatpush1.msra.mxu0 0.0
        %1228 = vmatprep.subr.mxu0 0.0
        %1229 = vmatpush1.msra.mxu0 0.0
        %1230 = vmatprep.subr.mxu0 0.0
        %1231 = vmatpush1.msra.mxu0 0.0
        %1232 = vmatprep.mubr.f32.mxu0 0.0
        %v1233 = vand.u32 %v939, 4294901760
        %v1234 = vsub.f32 %v939, %v1233
        %v1235 = vand.u32 %v1234, 4294901760
        %1236 = vmatmul.mubr.f32.gmra.mrb[0].mxu0 %v1235
        %v1237 = vpop.f32.mrb[0].mxu0
        %v1238 = vadd.f32 %v1164, %v1237
        %v1239 = vpop.f32.mrb[0].mxu0
        %1240 = vdwg.mxu0
        %1241 = vmatprep.subr.mxu0 0.0
        %v1242 = vand.u32 %v412, 4294901760
        %v1243 = vsub.f32 %v412, %v1242
        %v1244 = vand.u32 %v1243, 4294901760
        %1245 = vmatpush1.msra.mxu0 %v1244
        %1246 = vmatprep.subr.mxu0 0.0
        %1247 = vmatpush1.msra.mxu0 0.0
        %1248 = vmatprep.subr.mxu0 0.0
        %1249 = vmatpush1.msra.mxu0 0.0
        %1250 = vmatprep.subr.mxu0 0.0
        %1251 = vmatpush1.msra.mxu0 0.0
        %1252 = vmatprep.subr.mxu0 0.0
        %1253 = vmatpush1.msra.mxu0 0.0
        %1254 = vmatprep.subr.mxu0 0.0
        %1255 = vmatpush1.msra.mxu0 0.0
        %1256 = vmatprep.subr.mxu0 0.0
        %1257 = vmatpush1.msra.mxu0 0.0
        %1258 = vmatprep.subr.mxu0 0.0
        %1259 = vmatpush1.msra.mxu0 0.0
        %1260 = vmatprep.subr.mxu0 0.0
        %1261 = vmatpush1.msra.mxu0 0.0
        %1262 = vmatprep.subr.mxu0 0.0
        %1263 = vmatpush1.msra.mxu0 0.0
        %1264 = vmatprep.subr.mxu0 0.0
        %1265 = vmatpush1.msra.mxu0 0.0
        %1266 = vmatprep.subr.mxu0 0.0
        %1267 = vmatpush1.msra.mxu0 0.0
        %1268 = vmatprep.subr.mxu0 0.0
        %1269 = vmatpush1.msra.mxu0 0.0
        %1270 = vmatprep.subr.mxu0 0.0
        %1271 = vmatpush1.msra.mxu0 0.0
        %1272 = vmatprep.subr.mxu0 0.0
        %1273 = vmatpush1.msra.mxu0 0.0
        %1274 = vmatprep.subr.mxu0 0.0
        %1275 = vmatpush1.msra.mxu0 0.0
        %1276 = vmatprep.subr.mxu0 0.0
        %1277 = vmatpush1.msra.mxu0 0.0
        %1278 = vmatprep.subr.mxu0 0.0
        %1279 = vmatpush1.msra.mxu0 0.0
        %1280 = vmatprep.subr.mxu0 0.0
        %1281 = vmatpush1.msra.mxu0 0.0
        %1282 = vmatprep.subr.mxu0 0.0
        %1283 = vmatpush1.msra.mxu0 0.0
        %1284 = vmatprep.subr.mxu0 0.0
        %1285 = vmatpush1.msra.mxu0 0.0
        %1286 = vmatprep.subr.mxu0 0.0
        %1287 = vmatpush1.msra.mxu0 0.0
        %1288 = vmatprep.subr.mxu0 0.0
        %1289 = vmatpush1.msra.mxu0 0.0
        %1290 = vmatprep.subr.mxu0 0.0
        %1291 = vmatpush1.msra.mxu0 0.0
        %1292 = vmatprep.subr.mxu0 0.0
        %1293 = vmatpush1.msra.mxu0 0.0
        %1294 = vmatprep.subr.mxu0 0.0
        %1295 = vmatpush1.msra.mxu0 0.0
        %1296 = vmatprep.subr.mxu0 0.0
        %1297 = vmatpush1.msra.mxu0 0.0
        %1298 = vmatprep.subr.mxu0 0.0
        %1299 = vmatpush1.msra.mxu0 0.0
        %1300 = vmatprep.subr.mxu0 0.0
        %1301 = vmatpush1.msra.mxu0 0.0
        %1302 = vmatprep.subr.mxu0 0.0
        %1303 = vmatpush1.msra.mxu0 0.0
        %1304 = vmatprep.subr.mxu0 0.0
        %1305 = vmatpush1.msra.mxu0 0.0
        %1306 = vmatprep.subr.mxu0 0.0
        %1307 = vmatpush1.msra.mxu0 0.0
        %1308 = vmatprep.mubr.f32.mxu0 0.0
        %v1309 = vand.u32 %v939, 4294901760
        %1310 = vmatmul.mubr.f32.gmra.mrb[0].mxu0 %v1309
        %v1311 = vpop.f32.mrb[0].mxu0
        %v1312 = vadd.f32 %v1238, %v1311
        %v1313 = vpop.f32.mrb[0].mxu0
        %1314 = vdwg.mxu0
        %1315 = vmatprep.subr.mxu0 0.0
        %v1316 = vand.u32 %v412, 4294901760
        %1317 = vmatpush1.msra.mxu0 %v1316
        %1318 = vmatprep.subr.mxu0 0.0
        %1319 = vmatpush1.msra.mxu0 0.0
        %1320 = vmatprep.subr.mxu0 0.0
        %1321 = vmatpush1.msra.mxu0 0.0
        %1322 = vmatprep.subr.mxu0 0.0
        %1323 = vmatpush1.msra.mxu0 0.0
        %1324 = vmatprep.subr.mxu0 0.0
        %1325 = vmatpush1.msra.mxu0 0.0
        %1326 = vmatprep.subr.mxu0 0.0
        %1327 = vmatpush1.msra.mxu0 0.0
        %1328 = vmatprep.subr.mxu0 0.0
        %1329 = vmatpush1.msra.mxu0 0.0
        %1330 = vmatprep.subr.mxu0 0.0
        %1331 = vmatpush1.msra.mxu0 0.0
        %1332 = vmatprep.subr.mxu0 0.0
        %1333 = vmatpush1.msra.mxu0 0.0
        %1334 = vmatprep.subr.mxu0 0.0
        %1335 = vmatpush1.msra.mxu0 0.0
        %1336 = vmatprep.subr.mxu0 0.0
        %1337 = vmatpush1.msra.mxu0 0.0
        %1338 = vmatprep.subr.mxu0 0.0
        %1339 = vmatpush1.msra.mxu0 0.0
        %1340 = vmatprep.subr.mxu0 0.0
        %1341 = vmatpush1.msra.mxu0 0.0
        %1342 = vmatprep.subr.mxu0 0.0
        %1343 = vmatpush1.msra.mxu0 0.0
        %1344 = vmatprep.subr.mxu0 0.0
        %1345 = vmatpush1.msra.mxu0 0.0
        %1346 = vmatprep.subr.mxu0 0.0
        %1347 = vmatpush1.msra.mxu0 0.0
        %1348 = vmatprep.subr.mxu0 0.0
        %1349 = vmatpush1.msra.mxu0 0.0
        %1350 = vmatprep.subr.mxu0 0.0
        %1351 = vmatpush1.msra.mxu0 0.0
        %1352 = vmatprep.subr.mxu0 0.0
        %1353 = vmatpush1.msra.mxu0 0.0
        %1354 = vmatprep.subr.mxu0 0.0
        %1355 = vmatpush1.msra.mxu0 0.0
        %1356 = vmatprep.subr.mxu0 0.0
        %1357 = vmatpush1.msra.mxu0 0.0
        %1358 = vmatprep.subr.mxu0 0.0
        %1359 = vmatpush1.msra.mxu0 0.0
        %1360 = vmatprep.subr.mxu0 0.0
        %1361 = vmatpush1.msra.mxu0 0.0
        %1362 = vmatprep.subr.mxu0 0.0
        %1363 = vmatpush1.msra.mxu0 0.0
        %1364 = vmatprep.subr.mxu0 0.0
        %1365 = vmatpush1.msra.mxu0 0.0
        %1366 = vmatprep.subr.mxu0 0.0
        %1367 = vmatpush1.msra.mxu0 0.0
        %1368 = vmatprep.subr.mxu0 0.0
        %1369 = vmatpush1.msra.mxu0 0.0
        %1370 = vmatprep.subr.mxu0 0.0
        %1371 = vmatpush1.msra.mxu0 0.0
        %1372 = vmatprep.subr.mxu0 0.0
        %1373 = vmatpush1.msra.mxu0 0.0
        %1374 = vmatprep.subr.mxu0 0.0
        %1375 = vmatpush1.msra.mxu0 0.0
        %1376 = vmatprep.subr.mxu0 0.0
        %1377 = vmatpush1.msra.mxu0 0.0
        %1378 = vmatprep.subr.mxu0 0.0
        %1379 = vmatpush1.msra.mxu0 0.0
        %1380 = vmatprep.mubr.f32.mxu0 0.0
        %v1381 = vand.u32 %v939, 4294901760
        %1382 = vmatmul.mubr.f32.gmra.mrb[0].mxu0 %v1381
        %v1383 = vpop.f32.mrb[0].mxu0
        %v1384 = vadd.f32 %v1312, %v1383
        %v1385 = vpop.f32.mrb[0].mxu0
        %1386 = vdwg.mxu0
        %v1387 = vld [vmem:[#allocation8] sm:$0xff]
        %v1388 = vld [vmem:[#allocation8 + $0x8] sm:$0xff]
        %v1389 = vld [vmem:[#allocation8 + $0x10] sm:$0xff]
        %v1390 = vld [vmem:[#allocation8 + $0x18] sm:$0xff]
        %v1391 = vld [vmem:[#allocation8 + $0x20] sm:$0xff]
        %v1392 = vld [vmem:[#allocation8 + $0x28] sm:$0xff]
        %v1393 = vld [vmem:[#allocation8 + $0x30] sm:$0xff]
        %v1394 = vld [vmem:[#allocation8 + $0x38] sm:$0xff]
        %v1395 = vld [vmem:[#allocation8 + $0x40] sm:$0xff]
        %v1396 = vld [vmem:[#allocation8 + $0x48] sm:$0xff]
        %v1397 = vld [vmem:[#allocation8 + $0x50] sm:$0xff]
        %v1398 = vld [vmem:[#allocation8 + $0x58] sm:$0xff]
        %v1399 = vld [vmem:[#allocation8 + $0x60] sm:$0xff]
        %v1400 = vld [vmem:[#allocation8 + $0x68] sm:$0xff]
        %v1401 = vld [vmem:[#allocation8 + $0x70] sm:$0xff]
        %v1402 = vld [vmem:[#allocation8 + $0x78] sm:$0xff]
        %v1403 = vld [vmem:[#allocation8 + $0x80] sm:$0xff]
        %v1404 = vld [vmem:[#allocation8 + $0x88] sm:$0xff]
        %v1405 = vld [vmem:[#allocation8 + $0x90] sm:$0xff]
        %v1406 = vld [vmem:[#allocation8 + $0x98] sm:$0xff]
        %v1407 = vld [vmem:[#allocation8 + $0xa0] sm:$0xff]
        %v1408 = vld [vmem:[#allocation8 + $0xa8] sm:$0xff]
        %v1409 = vld [vmem:[#allocation8 + $0xb0] sm:$0xff]
        %v1410 = vld [vmem:[#allocation8 + $0xb8] sm:$0xff]
        %v1411 = vld [vmem:[#allocation8 + $0xc0] sm:$0xff]
        %v1412 = vld [vmem:[#allocation8 + $0xc8] sm:$0xff]
        %v1413 = vld [vmem:[#allocation8 + $0xd0] sm:$0xff]
        %v1414 = vld [vmem:[#allocation8 + $0xd8] sm:$0xff]
        %v1415 = vld [vmem:[#allocation8 + $0xe0] sm:$0xff]
        %v1416 = vld [vmem:[#allocation8 + $0xe8] sm:$0xff]
        %v1417 = vld [vmem:[#allocation8 + $0xf0] sm:$0xff]
        %v1418 = vld [vmem:[#allocation8 + $0xf8] sm:$0xff]
        %v1419 = vld [vmem:[#allocation8 + $0x100] sm:$0xff]
        %v1420 = vld [vmem:[#allocation8 + $0x108] sm:$0xff]
        %v1421 = vld [vmem:[#allocation8 + $0x110] sm:$0xff]
        %v1422 = vld [vmem:[#allocation8 + $0x118] sm:$0xff]
        %v1423 = vld [vmem:[#allocation8 + $0x120] sm:$0xff]
        %v1424 = vld [vmem:[#allocation8 + $0x128] sm:$0xff]
        %v1425 = vld [vmem:[#allocation8 + $0x130] sm:$0xff]
        %v1426 = vld [vmem:[#allocation8 + $0x138] sm:$0xff]
        %v1427 = vld [vmem:[#allocation8 + $0x140] sm:$0xff]
        %v1428 = vld [vmem:[#allocation8 + $0x148] sm:$0xff]
        %v1429 = vld [vmem:[#allocation8 + $0x150] sm:$0xff]
        %v1430 = vld [vmem:[#allocation8 + $0x158] sm:$0xff]
        %v1431 = vld [vmem:[#allocation8 + $0x160] sm:$0xff]
        %v1432 = vld [vmem:[#allocation8 + $0x168] sm:$0xff]
        %v1433 = vld [vmem:[#allocation8 + $0x170] sm:$0xff]
        %v1434 = vld [vmem:[#allocation8 + $0x178] sm:$0xff]
        %v1435 = vld [vmem:[%s6] sm:$0x7]
        %v1437 = vlaneseq
        %v1438 = vshrl.u32 %v1437, 7
        %v1439 = vsub.s32 0, %v1438
        %v1440 = vrot.slane %v1435, %v1439
        %v1441 = vlaneseq
        %v1442 = vshrl.u32 %v1441, 7
        %v1443 = vsub.s32 1, %v1442
        %v1444 = vrot.slane %v1435, %v1443
        %v1445 = vlaneseq
        %v1446 = vshrl.u32 %v1445, 7
        %v1447 = vsub.s32 2, %v1446
        %v1448 = vrot.slane %v1435, %v1447
        %1452 = vmatprep.subr.mxu0 %v1388
        %1453 = vmatpush1.msra.mxu0 %v1387
        %1454 = vmatprep.subr.mxu0 %v1391
        %1455 = vmatpush1.msra.mxu0 %v1390
        %1456 = vmatprep.subr.mxu0 %v1394
        %1457 = vmatpush1.msra.mxu0 %v1393
        %1458 = vmatprep.subr.mxu0 %v1397
        %1459 = vmatpush1.msra.mxu0 %v1396
        %1460 = vmatprep.subr.mxu0 %v1400
        %1461 = vmatpush1.msra.mxu0 %v1399
        %1462 = vmatprep.subr.mxu0 %v1403
        %1463 = vmatpush1.msra.mxu0 %v1402
        %1464 = vmatprep.subr.mxu0 %v1406
        %1465 = vmatpush1.msra.mxu0 %v1405
        %1466 = vmatprep.subr.mxu0 %v1409
        %1467 = vmatpush1.msra.mxu0 %v1408
        %1468 = vmatprep.subr.mxu0 %v1412
        %1469 = vmatpush1.msra.mxu0 %v1411
        %1470 = vmatprep.subr.mxu0 %v1415
        %1471 = vmatpush1.msra.mxu0 %v1414
        %1472 = vmatprep.subr.mxu0 %v1418
        %1473 = vmatpush1.msra.mxu0 %v1417
        %1474 = vmatprep.subr.mxu0 %v1421
        %1475 = vmatpush1.msra.mxu0 %v1420
        %1476 = vmatprep.subr.mxu0 %v1424
        %1477 = vmatpush1.msra.mxu0 %v1423
        %1478 = vmatprep.subr.mxu0 %v1427
        %1479 = vmatpush1.msra.mxu0 %v1426
        %1480 = vmatprep.subr.mxu0 %v1430
        %1481 = vmatpush1.msra.mxu0 %v1429
        %1482 = vmatprep.subr.mxu0 %v1433
        %1483 = vmatpush1.msra.mxu0 %v1432
        %1484 = vmatprep.subr.mxu0 0.0
        %1485 = vmatpush1.msra.mxu0 0.0
        %1486 = vmatprep.subr.mxu0 0.0
        %1487 = vmatpush1.msra.mxu0 0.0
        %1488 = vmatprep.subr.mxu0 0.0
        %1489 = vmatpush1.msra.mxu0 0.0
        %1490 = vmatprep.subr.mxu0 0.0
        %1491 = vmatpush1.msra.mxu0 0.0
        %1492 = vmatprep.subr.mxu0 0.0
        %1493 = vmatpush1.msra.mxu0 0.0
        %1494 = vmatprep.subr.mxu0 0.0
        %1495 = vmatpush1.msra.mxu0 0.0
        %1496 = vmatprep.subr.mxu0 0.0
        %1497 = vmatpush1.msra.mxu0 0.0
        %1498 = vmatprep.subr.mxu0 0.0
        %1499 = vmatpush1.msra.mxu0 0.0
        %1500 = vmatprep.subr.mxu0 0.0
        %1501 = vmatpush1.msra.mxu0 0.0
        %1502 = vmatprep.subr.mxu0 0.0
        %1503 = vmatpush1.msra.mxu0 0.0
        %1504 = vmatprep.subr.mxu0 0.0
        %1505 = vmatpush1.msra.mxu0 0.0
        %1506 = vmatprep.subr.mxu0 0.0
        %1507 = vmatpush1.msra.mxu0 0.0
        %1508 = vmatprep.subr.mxu0 0.0
        %1509 = vmatpush1.msra.mxu0 0.0
        %1510 = vmatprep.subr.mxu0 0.0
        %1511 = vmatpush1.msra.mxu0 0.0
        %1512 = vmatprep.subr.mxu0 0.0
        %1513 = vmatpush1.msra.mxu0 0.0
        %1514 = vmatprep.subr.mxu0 0.0
        %1515 = vmatpush1.msra.mxu0 0.0
        %1516 = vmatprep.mubr.f32.mxu0 0.0
        %1517 = vmatmul.mubr.f32.gmra.mrb[0].mxu0 %v1384
        %v1518 = vpop.f32.mrb[0].mxu0
        %v1519 = vadd.f32 %v1440, %v1518
        %v1520 = vpop.f32.mrb[0].mxu0
        %v1521 = vadd.f32 %v1444, %v1520
        %1522 = vdwg.mxu0
        %1523 = vmatprep.subr.mxu0 0.0
        %1524 = vmatpush1.msra.mxu0 %v1389
        %1525 = vmatprep.subr.mxu0 0.0
        %1526 = vmatpush1.msra.mxu0 %v1392
        %1527 = vmatprep.subr.mxu0 0.0
        %1528 = vmatpush1.msra.mxu0 %v1395
        %1529 = vmatprep.subr.mxu0 0.0
        %1530 = vmatpush1.msra.mxu0 %v1398
        %1531 = vmatprep.subr.mxu0 0.0
        %1532 = vmatpush1.msra.mxu0 %v1401
        %1533 = vmatprep.subr.mxu0 0.0
        %1534 = vmatpush1.msra.mxu0 %v1404
        %1535 = vmatprep.subr.mxu0 0.0
        %1536 = vmatpush1.msra.mxu0 %v1407
        %1537 = vmatprep.subr.mxu0 0.0
        %1538 = vmatpush1.msra.mxu0 %v1410
        %1539 = vmatprep.subr.mxu0 0.0
        %1540 = vmatpush1.msra.mxu0 %v1413
        %1541 = vmatprep.subr.mxu0 0.0
        %1542 = vmatpush1.msra.mxu0 %v1416
        %1543 = vmatprep.subr.mxu0 0.0
        %1544 = vmatpush1.msra.mxu0 %v1419
        %1545 = vmatprep.subr.mxu0 0.0
        %1546 = vmatpush1.msra.mxu0 %v1422
        %1547 = vmatprep.subr.mxu0 0.0
        %1548 = vmatpush1.msra.mxu0 %v1425
        %1549 = vmatprep.subr.mxu0 0.0
        %1550 = vmatpush1.msra.mxu0 %v1428
        %1551 = vmatprep.subr.mxu0 0.0
        %1552 = vmatpush1.msra.mxu0 %v1431
        %1553 = vmatprep.subr.mxu0 0.0
        %1554 = vmatpush1.msra.mxu0 %v1434
        %1555 = vmatprep.subr.mxu0 0.0
        %1556 = vmatpush1.msra.mxu0 0.0
        %1557 = vmatprep.subr.mxu0 0.0
        %1558 = vmatpush1.msra.mxu0 0.0
        %1559 = vmatprep.subr.mxu0 0.0
        %1560 = vmatpush1.msra.mxu0 0.0
        %1561 = vmatprep.subr.mxu0 0.0
        %1562 = vmatpush1.msra.mxu0 0.0
        %1563 = vmatprep.subr.mxu0 0.0
        %1564 = vmatpush1.msra.mxu0 0.0
        %1565 = vmatprep.subr.mxu0 0.0
        %1566 = vmatpush1.msra.mxu0 0.0
        %1567 = vmatprep.subr.mxu0 0.0
        %1568 = vmatpush1.msra.mxu0 0.0
        %1569 = vmatprep.subr.mxu0 0.0
        %1570 = vmatpush1.msra.mxu0 0.0
        %1571 = vmatprep.subr.mxu0 0.0
        %1572 = vmatpush1.msra.mxu0 0.0
        %1573 = vmatprep.subr.mxu0 0.0
        %1574 = vmatpush1.msra.mxu0 0.0
        %1575 = vmatprep.subr.mxu0 0.0
        %1576 = vmatpush1.msra.mxu0 0.0
        %1577 = vmatprep.subr.mxu0 0.0
        %1578 = vmatpush1.msra.mxu0 0.0
        %1579 = vmatprep.subr.mxu0 0.0
        %1580 = vmatpush1.msra.mxu0 0.0
        %1581 = vmatprep.subr.mxu0 0.0
        %1582 = vmatpush1.msra.mxu0 0.0
        %1583 = vmatprep.subr.mxu0 0.0
        %1584 = vmatpush1.msra.mxu0 0.0
        %1585 = vmatprep.subr.mxu0 0.0
        %1586 = vmatpush1.msra.mxu0 0.0
        %1587 = vmatprep.mubr.f32.mxu0 0.0
        %1588 = vmatmul.mubr.f32.gmra.mrb[0].mxu0 %v1384
        %v1589 = vpop.f32.mrb[0].mxu0
        %v1590 = vadd.f32 %v1448, %v1589
        %v1591 = vpop.f32.mrb[0].mxu0
        %1592 = vdwg.mxu0
        %v1593 = vld [vmem:[#allocation10] sm:$0xff]
        %v1594 = vld [vmem:[#allocation10 + $0x8] sm:$0xff]
        %v1595 = vld [vmem:[#allocation10 + $0x10] sm:$0xff]
        %v1596 = vld [vmem:[#allocation10 + $0x18] sm:$0xff]
        %v1597 = vld [vmem:[#allocation10 + $0x20] sm:$0xff]
        %v1598 = vld [vmem:[#allocation10 + $0x28] sm:$0xff]
        %v1599 = vld [vmem:[#allocation10 + $0x30] sm:$0xff]
        %v1600 = vld [vmem:[#allocation10 + $0x38] sm:$0xff]
        %v1601 = vld [vmem:[#allocation10 + $0x40] sm:$0xff]
        %v1602 = vld [vmem:[#allocation10 + $0x48] sm:$0xff]
        %v1603 = vld [vmem:[#allocation10 + $0x50] sm:$0xff]
        %v1604 = vld [vmem:[#allocation10 + $0x58] sm:$0xff]
        %v1605 = vld [vmem:[#allocation10 + $0x60] sm:$0xff]
        %v1606 = vld [vmem:[#allocation10 + $0x68] sm:$0xff]
        %v1607 = vld [vmem:[#allocation10 + $0x70] sm:$0xff]
        %v1608 = vld [vmem:[#allocation10 + $0x78] sm:$0xff]
        %v1609 = vld [vmem:[#allocation10 + $0x80] sm:$0xff]
        %v1610 = vld [vmem:[#allocation10 + $0x88] sm:$0xff]
        %v1611 = vld [vmem:[#allocation10 + $0x90] sm:$0xff]
        %v1612 = vld [vmem:[#allocation10 + $0x98] sm:$0xff]
        %v1613 = vld [vmem:[#allocation10 + $0xa0] sm:$0xff]
        %v1614 = vld [vmem:[#allocation10 + $0xa8] sm:$0xff]
        %v1615 = vld [vmem:[#allocation10 + $0xb0] sm:$0xff]
        %v1616 = vld [vmem:[#allocation10 + $0xb8] sm:$0xff]
        %v1617 = vld [vmem:[#allocation10 + $0xc0] sm:$0xff]
        %v1618 = vld [vmem:[#allocation10 + $0xc8] sm:$0xff]
        %v1619 = vld [vmem:[#allocation10 + $0xd0] sm:$0xff]
        %v1620 = vld [vmem:[#allocation10 + $0xd8] sm:$0xff]
        %v1621 = vld [vmem:[#allocation10 + $0xe0] sm:$0xff]
        %v1622 = vld [vmem:[#allocation10 + $0xe8] sm:$0xff]
        %v1623 = vld [vmem:[#allocation10 + $0xf0] sm:$0xff]
        %v1624 = vld [vmem:[#allocation10 + $0xf8] sm:$0xff]
        %1625 = vmatprep.subr.mxu0 %v1594
        %1626 = vmatpush1.msra.mxu0 %v1593
        %1627 = vmatprep.subr.mxu0 %v1596
        %1628 = vmatpush1.msra.mxu0 %v1595
        %1629 = vmatprep.subr.mxu0 %v1598
        %1630 = vmatpush1.msra.mxu0 %v1597
        %1631 = vmatprep.subr.mxu0 %v1600
        %1632 = vmatpush1.msra.mxu0 %v1599
        %1633 = vmatprep.subr.mxu0 %v1602
        %1634 = vmatpush1.msra.mxu0 %v1601
        %1635 = vmatprep.subr.mxu0 %v1604
        %1636 = vmatpush1.msra.mxu0 %v1603
        %1637 = vmatprep.subr.mxu0 %v1606
        %1638 = vmatpush1.msra.mxu0 %v1605
        %1639 = vmatprep.subr.mxu0 %v1608
        %1640 = vmatpush1.msra.mxu0 %v1607
        %1641 = vmatprep.subr.mxu0 %v1610
        %1642 = vmatpush1.msra.mxu0 %v1609
        %1643 = vmatprep.subr.mxu0 %v1612
        %1644 = vmatpush1.msra.mxu0 %v1611
        %1645 = vmatprep.subr.mxu0 %v1614
        %1646 = vmatpush1.msra.mxu0 %v1613
        %1647 = vmatprep.subr.mxu0 %v1616
        %1648 = vmatpush1.msra.mxu0 %v1615
        %1649 = vmatprep.subr.mxu0 %v1618
        %1650 = vmatpush1.msra.mxu0 %v1617
        %1651 = vmatprep.subr.mxu0 %v1620
        %1652 = vmatpush1.msra.mxu0 %v1619
        %1653 = vmatprep.subr.mxu0 %v1622
        %1654 = vmatpush1.msra.mxu0 %v1621
        %1655 = vmatprep.subr.mxu0 %v1624
        %1656 = vmatpush1.msra.mxu0 %v1623
        %1657 = vmatprep.subr.mxu0 0.0
        %1658 = vmatpush1.msra.mxu0 0.0
        %1659 = vmatprep.subr.mxu0 0.0
        %1660 = vmatpush1.msra.mxu0 0.0
        %1661 = vmatprep.subr.mxu0 0.0
        %1662 = vmatpush1.msra.mxu0 0.0
        %1663 = vmatprep.subr.mxu0 0.0
        %1664 = vmatpush1.msra.mxu0 0.0
        %1665 = vmatprep.subr.mxu0 0.0
        %1666 = vmatpush1.msra.mxu0 0.0
        %1667 = vmatprep.subr.mxu0 0.0
        %1668 = vmatpush1.msra.mxu0 0.0
        %1669 = vmatprep.subr.mxu0 0.0
        %1670 = vmatpush1.msra.mxu0 0.0
        %1671 = vmatprep.subr.mxu0 0.0
        %1672 = vmatpush1.msra.mxu0 0.0
        %1673 = vmatprep.subr.mxu0 0.0
        %1674 = vmatpush1.msra.mxu0 0.0
        %1675 = vmatprep.subr.mxu0 0.0
        %1676 = vmatpush1.msra.mxu0 0.0
        %1677 = vmatprep.subr.mxu0 0.0
        %1678 = vmatpush1.msra.mxu0 0.0
        %1679 = vmatprep.subr.mxu0 0.0
        %1680 = vmatpush1.msra.mxu0 0.0
        %1681 = vmatprep.subr.mxu0 0.0
        %1682 = vmatpush1.msra.mxu0 0.0
        %1683 = vmatprep.subr.mxu0 0.0
        %1684 = vmatpush1.msra.mxu0 0.0
        %1685 = vmatprep.subr.mxu0 0.0
        %1686 = vmatpush1.msra.mxu0 0.0
        %1687 = vmatprep.subr.mxu0 0.0
        %1688 = vmatpush1.msra.mxu0 0.0
        %1689 = vmatprep.mubr.f32.mxu0 0.0
        %1690 = vmatmul.mubr.f32.gmra.mrb[0].mxu0 %v412
        %v1691 = vpop.f32.mrb[0].mxu0
        %v1692 = vadd.f32 0.0, %v1691
        %v1693 = vpop.f32.mrb[0].mxu0
        %v1694 = vadd.f32 0.0, %v1693
        %1695 = vdwg.mxu0
        %v1696 = vadd.f32 %v1519, %v1692
        %v1697 = vxor.u32 %v1696, 2147483648
        %v1698 = vmul.f32 %v1697, 1.442695
        %v1699 = vpow.pop %v1698
        %v1700 = vadd.f32 %v1699, 1.0
        %v1701 = vrcp.pop %v1700
        %v1702 = vmul.f32 1.0, %v1701
        %v1703 = vadd.f32 %v1521, %v1694
        %v1704 = vxor.u32 %v1703, 2147483648
        %v1705 = vmul.f32 %v1704, 1.442695
        %v1706 = vpow.pop %v1705
        %v1707 = vadd.f32 %v1706, 1.0
        %v1708 = vrcp.pop %v1707
        %v1709 = vmul.f32 1.0, %v1708
        %v1710 = vmul.f32 %v1709, %v412
        %v1711 = vld [vmem:[#allocation11] sm:$0xff]
        %v1712 = vld [vmem:[#allocation11 + $0x8] sm:$0xff]
        %v1713 = vld [vmem:[#allocation11 + $0x10] sm:$0xff]
        %v1714 = vld [vmem:[#allocation11 + $0x18] sm:$0xff]
        %v1715 = vld [vmem:[#allocation11 + $0x20] sm:$0xff]
        %v1716 = vld [vmem:[#allocation11 + $0x28] sm:$0xff]
        %v1717 = vld [vmem:[#allocation11 + $0x30] sm:$0xff]
        %v1718 = vld [vmem:[#allocation11 + $0x38] sm:$0xff]
        %v1719 = vld [vmem:[#allocation11 + $0x40] sm:$0xff]
        %v1720 = vld [vmem:[#allocation11 + $0x48] sm:$0xff]
        %v1721 = vld [vmem:[#allocation11 + $0x50] sm:$0xff]
        %v1722 = vld [vmem:[#allocation11 + $0x58] sm:$0xff]
        %v1723 = vld [vmem:[#allocation11 + $0x60] sm:$0xff]
        %v1724 = vld [vmem:[#allocation11 + $0x68] sm:$0xff]
        %v1725 = vld [vmem:[#allocation11 + $0x70] sm:$0xff]
        %v1726 = vld [vmem:[#allocation11 + $0x78] sm:$0xff]
        %1727 = vmatprep.subr.mxu0 0.0
        %1728 = vmatpush1.msra.mxu0 %v1711
        %1729 = vmatprep.subr.mxu0 0.0
        %1730 = vmatpush1.msra.mxu0 %v1712
        %1731 = vmatprep.subr.mxu0 0.0
        %1732 = vmatpush1.msra.mxu0 %v1713
        %1733 = vmatprep.subr.mxu0 0.0
        %1734 = vmatpush1.msra.mxu0 %v1714
        %1735 = vmatprep.subr.mxu0 0.0
        %1736 = vmatpush1.msra.mxu0 %v1715
        %1737 = vmatprep.subr.mxu0 0.0
        %1738 = vmatpush1.msra.mxu0 %v1716
        %1739 = vmatprep.subr.mxu0 0.0
        %1740 = vmatpush1.msra.mxu0 %v1717
        %1741 = vmatprep.subr.mxu0 0.0
        %1742 = vmatpush1.msra.mxu0 %v1718
        %1743 = vmatprep.subr.mxu0 0.0
        %1744 = vmatpush1.msra.mxu0 %v1719
        %1745 = vmatprep.subr.mxu0 0.0
        %1746 = vmatpush1.msra.mxu0 %v1720
        %1747 = vmatprep.subr.mxu0 0.0
        %1748 = vmatpush1.msra.mxu0 %v1721
        %1749 = vmatprep.subr.mxu0 0.0
        %1750 = vmatpush1.msra.mxu0 %v1722
        %1751 = vmatprep.subr.mxu0 0.0
        %1752 = vmatpush1.msra.mxu0 %v1723
        %1753 = vmatprep.subr.mxu0 0.0
        %1754 = vmatpush1.msra.mxu0 %v1724
        %1755 = vmatprep.subr.mxu0 0.0
        %1756 = vmatpush1.msra.mxu0 %v1725
        %1757 = vmatprep.subr.mxu0 0.0
        %1758 = vmatpush1.msra.mxu0 %v1726
        %1759 = vmatprep.subr.mxu0 0.0
        %1760 = vmatpush1.msra.mxu0 0.0
        %1761 = vmatprep.subr.mxu0 0.0
        %1762 = vmatpush1.msra.mxu0 0.0
        %1763 = vmatprep.subr.mxu0 0.0
        %1764 = vmatpush1.msra.mxu0 0.0
        %1765 = vmatprep.subr.mxu0 0.0
        %1766 = vmatpush1.msra.mxu0 0.0
        %1767 = vmatprep.subr.mxu0 0.0
        %1768 = vmatpush1.msra.mxu0 0.0
        %1769 = vmatprep.subr.mxu0 0.0
        %1770 = vmatpush1.msra.mxu0 0.0
        %1771 = vmatprep.subr.mxu0 0.0
        %1772 = vmatpush1.msra.mxu0 0.0
        %1773 = vmatprep.subr.mxu0 0.0
        %1774 = vmatpush1.msra.mxu0 0.0
        %1775 = vmatprep.subr.mxu0 0.0
        %1776 = vmatpush1.msra.mxu0 0.0
        %1777 = vmatprep.subr.mxu0 0.0
        %1778 = vmatpush1.msra.mxu0 0.0
        %1779 = vmatprep.subr.mxu0 0.0
        %1780 = vmatpush1.msra.mxu0 0.0
        %1781 = vmatprep.subr.mxu0 0.0
        %1782 = vmatpush1.msra.mxu0 0.0
        %1783 = vmatprep.subr.mxu0 0.0
        %1784 = vmatpush1.msra.mxu0 0.0
        %1785 = vmatprep.subr.mxu0 0.0
        %1786 = vmatpush1.msra.mxu0 0.0
        %1787 = vmatprep.subr.mxu0 0.0
        %1788 = vmatpush1.msra.mxu0 0.0
        %1789 = vmatprep.subr.mxu0 0.0
        %1790 = vmatpush1.msra.mxu0 0.0
        %1791 = vmatprep.mubr.f32.mxu0 0.0
        %1792 = vmatmul.mubr.f32.gmra.mrb[0].mxu0 %v1710
        %v1793 = vpop.f32.mrb[0].mxu0
        %v1794 = vadd.f32 0.0, %v1793
        %v1795 = vpop.f32.mrb[0].mxu0
        %1796 = vdwg.mxu0
        %v1797 = vadd.f32 %v1590, %v1794
        %v1798 = vtanh.pop %v1797
        %v1799 = vsub.f32 1.0, %v1702
        %v1800 = vmul.f32 %v1799, %v412
        %v1801 = vmul.f32 %v1702, %v1798
        %v1802 = vadd.f32 %v1800, %v1801
        %1803 = vst [vmem:[%s411] sm:$0xff] %v1802
        %s1804 = sand.u32 %s199, 1
        %s1805 = scalar_lea.sflag [#allocation4], %s1804
        %s1806 = sand.u32 %s199, 1
        %s1807 = smul.addr %s1806, 8
        %s1808 = scalar_lea.vmem [#allocation13], %s1807
        // Predicated region
        $region73: #{tpu_custom_call.1} parent=47 // pred_check
          %p1809 = pneg %p209
        $region74: #{tpu_custom_call.1} parent=47 // pred_check_branch
          %1811 = sbr.rel (%p1809) target = $region76
        $region75: #{tpu_custom_call.1} parent=47 // pred_region
          %s1813 = ssub.s32 128, 128
          %1814 = vsyncadd %s1805, %s1813
          %s1815 = smul.addr %s29, 128
          %s1816 = scalar_lea.hbm %s7, %s1815
          %s1818 = sshll.u32 %s1808, 4
          %s1819 = int_to_ptr.vmem [resolvable:$true] %s1818
          %1821 = dma.vmem_to_hbm [thread:$0]  %s1819, 128, %s1816, %s1805
        $region76: #{tpu_custom_call.1} parent=47 // pred_fallthru
          _
      $region48: #{tpu_custom_call.1} parent=5 // pred_fallthru
        _
      %p1822 = scmp.le.s32.totalorder 2, %s24
      // Predicated region
      $region77: #{tpu_custom_call.1} parent=5 // pred_check
        %p1823 = pneg %p1822
      $region78: #{tpu_custom_call.1} parent=5 // pred_check_branch
        %1825 = sbr.rel (%p1823) target = $region80
      $region79: #{tpu_custom_call.1} parent=5 // pred_region
        %s1826 = ssub.s32 %s24, 2
        // Predicated region
        $region81: #{tpu_custom_call.1} parent=79 // pred_check
          %p1827 = pneg %p215
        $region82: #{tpu_custom_call.1} parent=79 // pred_check_branch
          %1829 = sbr.rel (%p1827) target = $region84
        $region83: #{tpu_custom_call.1} parent=79 // pred_region
          %s1830 = sand.u32 %s200, 1
          %s1831 = scalar_lea.sflag [#allocation4], %s1830
          %s1832 = sand.u32 %s200, 1
          %s1833 = smul.addr %s1832, 8
          %s1834 = scalar_lea.vmem [#allocation13], %s1833
          %1835 = dma.done %s1831, 128
        $region84: #{tpu_custom_call.1} parent=79 // pred_fallthru
          _
      $region80: #{tpu_custom_call.1} parent=5 // pred_fallthru
        _
    $region6: #{tpu_custom_call.1} parent=1 // loop_footer
      %s28 = sadd.s32 1, %s24
    $region7: #{tpu_custom_call.1} parent=1 // loop_footer_branch
      %23 = sbr.rel target = $region3
    $region8: #{tpu_custom_call.1} parent=1 // loop_exit
      _
    %1836 = vsyncpa [#allocation3], 1
    %s1837 = scalar_lea.sflag [#allocation3], 1
    %1838 = vsyncpa %s1837, 1
    %1839 = vsyncpa [#allocation6], 1
    %s1840 = scalar_lea.sflag [#allocation6], 1
    %1841 = vsyncpa %s1840, 1
    %1842 = vsyncpa [#allocation9], 1
    %1843 = vsyncpa [#allocation12], 1
    %1844 = vsyncpa [#allocation4], 1
    %s1845 = scalar_lea.sflag [#allocation4], 1
    %1846 = vsyncpa %s1845, 1

// kernel: tpu_custom_call.1
$region0: #{tpu_custom_call.1}
  #allocation0 [shape = 'u32[]', space=smem, size = 0x4, offset = 0x4, fixed_abs, tag = 'smem constant byte address 0x4 - core index']
  #allocation1 [shape = 'u32[144,128]{1,0:T(1,128)}', space=vmem, size = 0x12000, scoped, tag = 'internal scratch']
  %s0 = inlined_call_operand.hbm [shape: f32[2,8,128], index: 0, kind: input, shape index: {}]
  %s1 = inlined_call_operand.hbm [shape: f32[2,16,128], index: 1, kind: input, shape index: {}]
  %s2 = inlined_call_operand.hbm [shape: s32[2,8,8], index: 2, kind: input, shape index: {}]
  %s3 = inlined_call_operand.hbm [shape: f32[128,384], index: 3, kind: input, shape index: {}]
  %s4 = inlined_call_operand.hbm [shape: f32[128,256], index: 4, kind: input, shape index: {}]
  %s5 = inlined_call_operand.hbm [shape: f32[128,128], index: 5, kind: input, shape index: {}]
  %s6 = inlined_call_operand.vmem [shape: f32[1,384], index: 6, kind: input, shape index: {}]
  %s7 = inlined_call_operand.hbm [shape: f32[2,8,128], index: 7, kind: output, shape index: {}]
  %s8 = sld [smem:[#allocation0]]
  $region85: #{tpu_custom_call.1} parent=0
    _
  %s10 = ssub.s32 1, %s8
  %s11 = scalar_select 0, %s10, %s8
  $region1: #{tpu_custom_call.1} parent=0
    #allocation2 [shape = 'u8[8192]{0}', space=vmem, size = 0x2000, scoped, tag = 'input window, operand 0']
    #allocation3 [shape = 's32[2]{0}', space=sflag, size = 0x8, scoped, tag = 'scoped memory for tpu_custom_call.1']
    #allocation4 [shape = 's32[2]{0}', space=sflag, size = 0x8, scoped, tag = 'scoped memory for tpu_custom_call.1']
    #allocation5 [shape = 'u8[16384]{0}', space=vmem, size = 0x4000, scoped, tag = 'input window, operand 1']
    #allocation6 [shape = 's32[2]{0}', space=sflag, size = 0x8, scoped, tag = 'scoped memory for tpu_custom_call.1']
    #allocation7 [shape = 'u8[8192]{0}', space=vmem, size = 0x2000, scoped, tag = 'input window, operand 2']
    #allocation8 [shape = 'u8[196608]{0}', space=vmem, size = 0x30000, scoped, tag = 'input window, operand 3, single buffered']
    #allocation9 [shape = 's32[1]{0}', space=sflag, size = 0x4, scoped, tag = 'scoped memory for tpu_custom_call.1']
    #allocation10 [shape = 'u8[131072]{0}', space=vmem, size = 0x20000, scoped, tag = 'input window, operand 4, single buffered']
    #allocation11 [shape = 'u8[65536]{0}', space=vmem, size = 0x10000, scoped, tag = 'input window, operand 5, single buffered']
    #allocation12 [shape = 's32[1]{0}', space=sflag, size = 0x4, scoped, tag = 'scoped memory for tpu_custom_call.1']
    #allocation13 [shape = 'u8[8192]{0}', space=vmem, size = 0x2000, scoped, tag = 'output window, operand 0']
    %12 = vsyncpa [#allocation3], 0
    %s13 = scalar_lea.sflag [#allocation3], 1
    %14 = vsyncpa %s13, 0
    %15 = vsyncpa [#allocation6], 0
    %s16 = scalar_lea.sflag [#allocation6], 1
    %17 = vsyncpa %s16, 0
    %18 = vsyncpa [#allocation9], 0
    %19 = vsyncpa [#allocation12], 0
    %20 = vsyncpa [#allocation4], 0
    %s21 = scalar_lea.sflag [#allocation4], 1
    %22 = vsyncpa %s21, 0
    loop: start=0, step=1, limit=4
    $region2: #{tpu_custom_call.1} parent=1 // loop_pre_header
      _
    $region3: #{tpu_custom_call.1} parent=1 // loop_header
      %s24 = sphi 0, %s28
      %p25 = scmp.ge.s32.totalorder %s24, 4
      %s34 = sphi 0, %s36
      %s37 = sphi 0, %s34
      %s38 = sphi 0, %s37
      %s54 = sphi 0, %s38
      %s60 = sphi 0, %s62
      %s63 = sphi 0, %s60
      %s64 = sphi 0, %s63
      %s80 = sphi 0, %s64
      %s86 = sphi 0, %s88
      %s89 = sphi 0, %s86
      %s90 = sphi 0, %s89
      %s106 = sphi 0, %s90
      %s110 = sphi 0, %s110
      %s112 = sphi 0, %s110
      %s113 = sphi 0, %s112
      %s127 = sphi 0, %s113
      %s131 = sphi 0, %s131
      %s133 = sphi 0, %s131
      %s134 = sphi 0, %s133
      %s148 = sphi 0, %s134
      %s152 = sphi 0, %s152
      %s154 = sphi 0, %s152
      %s155 = sphi 0, %s154
      %s169 = sphi 0, %s155
      %s173 = sphi 0, %s173
      %s175 = sphi 0, %s173
      %s176 = sphi 0, %s175
      %s190 = sphi 0, %s176
      %s196 = sphi 0, %s198
      %s199 = sphi 0, %s196
      %s200 = sphi 0, %s199
      %s216 = sphi 0, %s200
    $region4: #{tpu_custom_call.1} parent=1 // loop_header_branch
      %27 = sbr.rel (%p25) target = $region8
    $region5: #{tpu_custom_call.1} parent=1 // loop_body
      %s29 = ssub.s32 %s24, 1
      %s30 = ssub.s32 %s24, 2
      %s31 = sadd.s32 %s24, 1
      %s32 = ssub.s32 %s24, %s31
      %p33 = scmp.eq.s32.totalorder %s32, 0
      %s35 = sadd.s32 %s34, 1
      %s36 = scalar_select %p33, %s34, %s35
      %p39 = pneg %p33
      %p40 = scmp.eq.s32.totalorder %s24, 1
      %p41 = por %p39, %p40
      %p42 = scmp.ne.s32.totalorder %s34, %s37
      %p43 = scmp.eq.s32.totalorder %s24, 0
      %p44 = por %p42, %p43
      %p45 = scmp.ne.s32.totalorder %s34, %s37
      %p46 = scmp.eq.s32.totalorder %s29, 1
      %p47 = por %p45, %p46
      %p48 = scmp.ne.s32.totalorder %s37, %s38
      %p49 = scmp.eq.s32.totalorder %s29, 0
      %p50 = por %p48, %p49
      %p51 = scmp.ne.s32.totalorder %s37, %s38
      %p52 = scmp.eq.s32.totalorder %s30, 1
      %p53 = por %p51, %p52
      %p55 = scmp.ne.s32.totalorder %s38, %s54
      %p56 = scmp.eq.s32.totalorder %s30, 0
      %p57 = por %p55, %p56
      %s58 = ssub.s32 %s24, %s31
      %p59 = scmp.eq.s32.totalorder %s58, 0
      %s61 = sadd.s32 %s60, 1
      %s62 = scalar_select %p59, %s60, %s61
      %p65 = pneg %p59
      %p66 = scmp.eq.s32.totalorder %s24, 1
      %p67 = por %p65, %p66
      %p68 = scmp.ne.s32.totalorder %s60, %s63
      %p69 = scmp.eq.s32.totalorder %s24, 0
      %p70 = por %p68, %p69
      %p71 = scmp.ne.s32.totalorder %s60, %s63
      %p72 = scmp.eq.s32.totalorder %s29, 1
      %p73 = por %p71, %p72
      %p74 = scmp.ne.s32.totalorder %s63, %s64
      %p75 = scmp.eq.s32.totalorder %s29, 0
      %p76 = por %p74, %p75
      %p77 = scmp.ne.s32.totalorder %s63, %s64
      %p78 = scmp.eq.s32.totalorder %s30, 1
      %p79 = por %p77, %p78
      %p81 = scmp.ne.s32.totalorder %s64, %s80
      %p82 = scmp.eq.s32.totalorder %s30, 0
      %p83 = por %p81, %p82
      %s84 = ssub.s32 %s24, %s31
      %p85 = scmp.eq.s32.totalorder %s84, 0
      %s87 = sadd.s32 %s86, 1
      %s88 = scalar_select %p85, %s86, %s87
      %p91 = pneg %p85
      %p92 = scmp.eq.s32.totalorder %s24, 1
      %p93 = por %p91, %p92
      %p94 = scmp.ne.s32.totalorder %s86, %s89
      %p95 = scmp.eq.s32.totalorder %s24, 0
      %p96 = por %p94, %p95
      %p97 = scmp.ne.s32.totalorder %s86, %s89
      %p98 = scmp.eq.s32.totalorder %s29, 1
      %p99 = por %p97, %p98
      %p100 = scmp.ne.s32.totalorder %s89, %s90
      %p101 = scmp.eq.s32.totalorder %s29, 0
      %p102 = por %p100, %p101
      %p103 = scmp.ne.s32.totalorder %s89, %s90
      %p104 = scmp.eq.s32.totalorder %s30, 1
      %p105 = por %p103, %p104
      %p107 = scmp.ne.s32.totalorder %s90, %s106
      %p108 = scmp.eq.s32.totalorder %s30, 0
      %p109 = por %p107, %p108
      %s111 = sadd.s32 %s110, 1
      %p114 = scmp.eq.s32.totalorder %s24, 1
      %p115 = scmp.ne.s32.totalorder %s110, %s112
      %p116 = scmp.eq.s32.totalorder %s24, 0
      %p117 = por %p115, %p116
      %p118 = scmp.ne.s32.totalorder %s110, %s112
      %p119 = scmp.eq.s32.totalorder %s29, 1
      %p120 = por %p118, %p119
      %p121 = scmp.ne.s32.totalorder %s112, %s113
      %p122 = scmp.eq.s32.totalorder %s29, 0
      %p123 = por %p121, %p122
      %p124 = scmp.ne.s32.totalorder %s112, %s113
      %p125 = scmp.eq.s32.totalorder %s30, 1
      %p126 = por %p124, %p125
      %p128 = scmp.ne.s32.totalorder %s113, %s127
      %p129 = scmp.eq.s32.totalorder %s30, 0
      %p130 = por %p128, %p129
      %s132 = sadd.s32 %s131, 1
      %p135 = scmp.eq.s32.totalorder %s24, 1
      %p136 = scmp.ne.s32.totalorder %s131, %s133
      %p137 = scmp.eq.s32.totalorder %s24, 0
      %p138 = por %p136, %p137
      %p139 = scmp.ne.s32.totalorder %s131, %s133
      %p140 = scmp.eq.s32.totalorder %s29, 1
      %p141 = por %p139, %p140
      %p142 = scmp.ne.s32.totalorder %s133, %s134
      %p143 = scmp.eq.s32.totalorder %s29, 0
      %p144 = por %p142, %p143
      %p145 = scmp.ne.s32.totalorder %s133, %s134
      %p146 = scmp.eq.s32.totalorder %s30, 1
      %p147 = por %p145, %p146
      %p149 = scmp.ne.s32.totalorder %s134, %s148
      %p150 = scmp.eq.s32.totalorder %s30, 0
      %p151 = por %p149, %p150
      %s153 = sadd.s32 %s152, 1
      %p156 = scmp.eq.s32.totalorder %s24, 1
      %p157 = scmp.ne.s32.totalorder %s152, %s154
      %p158 = scmp.eq.s32.totalorder %s24, 0
      %p159 = por %p157, %p158
      %p160 = scmp.ne.s32.totalorder %s152, %s154
      %p161 = scmp.eq.s32.totalorder %s29, 1
      %p162 = por %p160, %p161
      %p163 = scmp.ne.s32.totalorder %s154, %s155
      %p164 = scmp.eq.s32.totalorder %s29, 0
      %p165 = por %p163, %p164
      %p166 = scmp.ne.s32.totalorder %s154, %s155
      %p167 = scmp.eq.s32.totalorder %s30, 1
      %p168 = por %p166, %p167
      %p170 = scmp.ne.s32.totalorder %s155, %s169
      %p171 = scmp.eq.s32.totalorder %s30, 0
      %p172 = por %p170, %p171
      %s174 = sadd.s32 %s173, 1
      %p177 = scmp.eq.s32.totalorder %s24, 1
      %p178 = scmp.ne.s32.totalorder %s173, %s175
      %p179 = scmp.eq.s32.totalorder %s24, 0
      %p180 = por %p178, %p179
      %p181 = scmp.ne.s32.totalorder %s173, %s175
      %p182 = scmp.eq.s32.totalorder %s29, 1
      %p183 = por %p181, %p182
      %p184 = scmp.ne.s32.totalorder %s175, %s176
      %p185 = scmp.eq.s32.totalorder %s29, 0
      %p186 = por %p184, %p185
      %p187 = scmp.ne.s32.totalorder %s175, %s176
      %p188 = scmp.eq.s32.totalorder %s30, 1
      %p189 = por %p187, %p188
      %p191 = scmp.ne.s32.totalorder %s176, %s190
      %p192 = scmp.eq.s32.totalorder %s30, 0
      %p193 = por %p191, %p192
      %s194 = ssub.s32 %s24, %s31
      %p195 = scmp.eq.s32.totalorder %s194, 0
      %s197 = sadd.s32 %s196, 1
      %s198 = scalar_select %p195, %s196, %s197
      %p201 = pneg %p195
      %p202 = scmp.eq.s32.totalorder %s24, 1
      %p203 = por %p201, %p202
      %p204 = scmp.ne.s32.totalorder %s196, %s199
      %p205 = scmp.eq.s32.totalorder %s24, 0
      %p206 = por %p204, %p205
      %p207 = scmp.ne.s32.totalorder %s196, %s199
      %p208 = scmp.eq.s32.totalorder %s29, 1
      %p209 = por %p207, %p208
      %p210 = scmp.ne.s32.totalorder %s199, %s200
      %p211 = scmp.eq.s32.totalorder %s29, 0
      %p212 = por %p210, %p211
      %p213 = scmp.ne.s32.totalorder %s199, %s200
      %p214 = scmp.eq.s32.totalorder %s30, 1
      %p215 = por %p213, %p214
      %p217 = scmp.ne.s32.totalorder %s200, %s216
      %p218 = scmp.eq.s32.totalorder %s30, 0
      %p219 = por %p217, %p218
      %p220 = scmp.le.s32.totalorder 1, %s24
      %p221 = scmp.lt.s32.totalorder %s24, 3
      %p222 = pnand %p220, %p221
      %p223 = pneg %p222
      // Predicated region
      $region9: #{tpu_custom_call.1} parent=5 // pred_check
        _
      $region10: #{tpu_custom_call.1} parent=5 // pred_check_branch
        %225 = sbr.rel (%p222) target = $region12
      $region11: #{tpu_custom_call.1} parent=5 // pred_region
        %s226 = ssub.s32 %s24, 1
        // Predicated region
        $region13: #{tpu_custom_call.1} parent=11 // pred_check
          %p227 = pneg %p123
        $region14: #{tpu_custom_call.1} parent=11 // pred_check_branch
          %229 = sbr.rel (%p227) target = $region16
        $region15: #{tpu_custom_call.1} parent=11 // pred_region
          %s231 = ssub.s32 6144, 6144
          %232 = vsyncadd [#allocation9], %s231
          %s233 = sshll.u32 [#allocation8], 4
          %s234 = int_to_ptr.vmem [resolvable:$true] %s233
          %239 = dma.hbm_to_vmem [thread:$0]  %s3, 6144, %s234, [#allocation9], 384, 384, 24
        $region16: #{tpu_custom_call.1} parent=11 // pred_fallthru
          _
        // Predicated region
        $region17: #{tpu_custom_call.1} parent=11 // pred_check
          %p240 = pneg %p144
        $region18: #{tpu_custom_call.1} parent=11 // pred_check_branch
          %242 = sbr.rel (%p240) target = $region20
        $region19: #{tpu_custom_call.1} parent=11 // pred_region
          %s244 = ssub.s32 4096, 4096
          %245 = vsyncadd [#allocation9], %s244
          %s246 = sshll.u32 [#allocation10], 4
          %s247 = int_to_ptr.vmem [resolvable:$true] %s246
          %252 = dma.hbm_to_vmem [thread:$0]  %s4, 4096, %s247, [#allocation9], 256, 256, 16
        $region20: #{tpu_custom_call.1} parent=11 // pred_fallthru
          _
        // Predicated region
        $region21: #{tpu_custom_call.1} parent=11 // pred_check
          %p253 = pneg %p165
        $region22: #{tpu_custom_call.1} parent=11 // pred_check_branch
          %255 = sbr.rel (%p253) target = $region24
        $region23: #{tpu_custom_call.1} parent=11 // pred_region
          %s257 = ssub.s32 2048, 2048
          %258 = vsyncadd [#allocation12], %s257
          %s259 = sshll.u32 [#allocation11], 4
          %s260 = int_to_ptr.vmem [resolvable:$true] %s259
          %265 = dma.hbm_to_vmem [thread:$0]  %s5, 2048, %s260, [#allocation12], 128, 128, 8
        $region24: #{tpu_custom_call.1} parent=11 // pred_fallthru
          _
        // Predicated region
        $region25: #{tpu_custom_call.1} parent=11 // pred_check
          %p266 = pneg %p186
        $region26: #{tpu_custom_call.1} parent=11 // pred_check_branch
          %268 = sbr.rel (%p266) target = $region28
        $region27: #{tpu_custom_call.1} parent=11 // pred_region
          _
        $region28: #{tpu_custom_call.1} parent=11 // pred_fallthru
          _
      $region12: #{tpu_custom_call.1} parent=5 // pred_fallthru
        _
      %p269 = scmp.lt.s32.totalorder %s24, 2
      // Predicated region
      $region29: #{tpu_custom_call.1} parent=5 // pred_check
        %p270 = pneg %p269
      $region30: #{tpu_custom_call.1} parent=5 // pred_check_branch
        %272 = sbr.rel (%p270) target = $region32
      $region31: #{tpu_custom_call.1} parent=5 // pred_region
        // Predicated region
        $region33: #{tpu_custom_call.1} parent=31 // pred_check
          %p273 = pneg %p44
        $region34: #{tpu_custom_call.1} parent=31 // pred_check_branch
          %275 = sbr.rel (%p273) target = $region36
        $region35: #{tpu_custom_call.1} parent=31 // pred_region
          %s276 = sand.u32 %s34, 1
          %s277 = scalar_lea.sflag [#allocation3], %s276
          %s278 = sand.u32 %s34, 1
          %s279 = smul.addr %s278, 8
          %s280 = scalar_lea.vmem [#allocation2], %s279
          %s282 = ssub.s32 128, 128
          %283 = vsyncadd %s277, %s282
          %s284 = smul.addr %s24, 128
          %s285 = scalar_lea.hbm %s0, %s284
          %s287 = sshll.u32 %s280, 4
          %s288 = int_to_ptr.vmem [resolvable:$true] %s287
          %290 = dma.hbm_to_vmem [thread:$0]  %s285, 128, %s288, %s277
        $region36: #{tpu_custom_call.1} parent=31 // pred_fallthru
          _
        // Predicated region
        $region37: #{tpu_custom_call.1} parent=31 // pred_check
          %p291 = pneg %p70
        $region38: #{tpu_custom_call.1} parent=31 // pred_check_branch
          %293 = sbr.rel (%p291) target = $region40
        $region39: #{tpu_custom_call.1} parent=31 // pred_region
          %s294 = sand.u32 %s24, 1
          %s295 = scalar_lea.sflag [#allocation6], %s294
          %s296 = sand.u32 %s60, 1
          %s297 = smul.addr %s296, 16
          %s298 = scalar_lea.vmem [#allocation5], %s297
          %s300 = ssub.s32 256, 256
          %301 = vsyncadd %s295, %s300
          %s302 = smul.addr %s24, 2
          %s303 = smul.addr %s302, 128
          %s304 = scalar_lea.hbm %s1, %s303
          %s305 = sshll.u32 %s298, 4
          %s306 = int_to_ptr.vmem [resolvable:$true] %s305
          %311 = dma.hbm_to_vmem [thread:$0]  %s304, 256, %s306, %s295, 128, 128, 8
        $region40: #{tpu_custom_call.1} parent=31 // pred_fallthru
          _
        // Predicated region
        $region41: #{tpu_custom_call.1} parent=31 // pred_check
          %p312 = pneg %p96
        $region42: #{tpu_custom_call.1} parent=31 // pred_check_branch
          %314 = sbr.rel (%p312) target = $region44
        $region43: #{tpu_custom_call.1} parent=31 // pred_region
          %s315 = sand.u32 %s24, 1
          %s316 = scalar_lea.sflag [#allocation6], %s315
          %s317 = sand.u32 %s86, 1
          %s318 = smul.addr %s317, 8
          %s319 = scalar_lea.vmem [#allocation7], %s318
          %s321 = ssub.s32 128, 128
          %322 = vsyncadd %s316, %s321
          %s323 = smul.addr %s24, 128
          %s324 = scalar_lea.hbm %s2, %s323
          %s326 = sshll.u32 %s319, 4
          %s327 = int_to_ptr.vmem [resolvable:$true] %s326
          %329 = dma.hbm_to_vmem [thread:$0]  %s324, 128, %s327, %s316
        $region44: #{tpu_custom_call.1} parent=31 // pred_fallthru
          _
      $region32: #{tpu_custom_call.1} parent=5 // pred_fallthru
        _
      %p330 = scmp.le.s32.totalorder 1, %s24
      %p331 = scmp.lt.s32.totalorder %s24, 3
      %p332 = pnand %p330, %p331
      %p333 = pneg %p332
      // Predicated region
      $region45: #{tpu_custom_call.1} parent=5 // pred_check
        _
      $region46: #{tpu_custom_call.1} parent=5 // pred_check_branch
        %335 = sbr.rel (%p332) target = $region48
      $region47: #{tpu_custom_call.1} parent=5 // pred_region
        %s336 = ssub.s32 %s24, 1
        %s337 = sand.u32 %s37, 1
        %s338 = scalar_lea.sflag [#allocation3], %s337
        %s339 = sand.u32 %s37, 1
        %s340 = smul.addr %s339, 8
        %s341 = scalar_lea.vmem [#allocation2], %s340
        // Predicated region
        $region49: #{tpu_custom_call.1} parent=47 // pred_check
          %p342 = pneg %p50
        $region50: #{tpu_custom_call.1} parent=47 // pred_check_branch
          %344 = sbr.rel (%p342) target = $region52
        $region51: #{tpu_custom_call.1} parent=47 // pred_region
          %345 = dma.done %s338, 128
        $region52: #{tpu_custom_call.1} parent=47 // pred_fallthru
          _
        %s346 = sand.u32 %s29, 1
        %s347 = scalar_lea.sflag [#allocation6], %s346
        %s348 = sand.u32 %s63, 1
        %s349 = smul.addr %s348, 16
        %s350 = scalar_lea.vmem [#allocation5], %s349
        // Predicated region
        $region53: #{tpu_custom_call.1} parent=47 // pred_check
          %p351 = pneg %p76
        $region54: #{tpu_custom_call.1} parent=47 // pred_check_branch
          %353 = sbr.rel (%p351) target = $region56
        $region55: #{tpu_custom_call.1} parent=47 // pred_region
          %354 = dma.done %s347, 256
        $region56: #{tpu_custom_call.1} parent=47 // pred_fallthru
          _
        %s355 = sand.u32 %s29, 1
        %s356 = scalar_lea.sflag [#allocation6], %s355
        %s357 = sand.u32 %s89, 1
        %s358 = smul.addr %s357, 8
        %s359 = scalar_lea.vmem [#allocation7], %s358
        // Predicated region
        $region57: #{tpu_custom_call.1} parent=47 // pred_check
          %p360 = pneg %p102
        $region58: #{tpu_custom_call.1} parent=47 // pred_check_branch
          %362 = sbr.rel (%p360) target = $region60
        $region59: #{tpu_custom_call.1} parent=47 // pred_region
          %363 = dma.done %s356, 128
        $region60: #{tpu_custom_call.1} parent=47 // pred_fallthru
          _
        // Predicated region
        $region61: #{tpu_custom_call.1} parent=47 // pred_check
          %p364 = pneg %p123
        $region62: #{tpu_custom_call.1} parent=47 // pred_check_branch
          %366 = sbr.rel (%p364) target = $region64
        $region63: #{tpu_custom_call.1} parent=47 // pred_region
          %367 = dma.done [#allocation9], 6144
        $region64: #{tpu_custom_call.1} parent=47 // pred_fallthru
          _
        // Predicated region
        $region65: #{tpu_custom_call.1} parent=47 // pred_check
          %p368 = pneg %p144
        $region66: #{tpu_custom_call.1} parent=47 // pred_check_branch
          %370 = sbr.rel (%p368) target = $region68
        $region67: #{tpu_custom_call.1} parent=47 // pred_region
          %371 = dma.done [#allocation9], 4096
        $region68: #{tpu_custom_call.1} parent=47 // pred_fallthru
          _
        // Predicated region
        $region69: #{tpu_custom_call.1} parent=47 // pred_check
          %p372 = pneg %p165
        $region70: #{tpu_custom_call.1} parent=47 // pred_check_branch
          %374 = sbr.rel (%p372) target = $region72
        $region71: #{tpu_custom_call.1} parent=47 // pred_region
          %375 = dma.done [#allocation12], 2048
        $region72: #{tpu_custom_call.1} parent=47 // pred_fallthru
          _
        %s376 = sand.u32 %s37, 1
        %s377 = scalar_lea.sflag [#allocation3], %s376
        %s378 = sand.u32 %s37, 1
        %s379 = smul.addr %s378, 8
        %s380 = scalar_lea.vmem [#allocation2], %s379
        %p381 = pneg %p50
        %p382 = pneg %p47
        %s383 = sand.u32 %s29, 1
        %s384 = scalar_lea.sflag [#allocation6], %s383
        %s385 = sand.u32 %s63, 1
        %s386 = smul.addr %s385, 16
        %s387 = scalar_lea.vmem [#allocation5], %s386
        %p388 = pneg %p76
        %p389 = pneg %p73
        %s390 = sand.u32 %s29, 1
        %s391 = scalar_lea.sflag [#allocation6], %s390
        %s392 = sand.u32 %s89, 1
        %s393 = smul.addr %s392, 8
        %s394 = scalar_lea.vmem [#allocation7], %s393
        %p395 = pneg %p102
        %p396 = pneg %p99
        %p397 = pneg %p123
        %p398 = pneg %p120
        %p399 = pneg %p144
        %p400 = pneg %p141
        %p401 = pneg %p165
        %p402 = pneg %p162
        %p403 = pneg %p186
        %p404 = pneg %p183
        %p405 = pneg %p212
        %p406 = pneg %p209
        %s407 = sand.u32 %s199, 1
        %s408 = scalar_lea.sflag [#allocation4], %s407
        %s409 = sand.u32 %s199, 1
        %s410 = smul.addr %s409, 8
        %s411 = scalar_lea.vmem [#allocation13], %s410
        %v412 = vld [vmem:[%s341] sm:$0xff]
        %v413 = vld [vmem:[%s350] sm:$0xff]
        %v414 = vld [vmem:[%s350 + $0x8] sm:$0xff]
        %v415 = vld [vmem:[%s359] sm:$0xff]
        %v416 = vlaneseq
        %v417 = vand.u32 %v416, 127
        %418 = vset.pattern.permute.xlu0 0
        %419 = vperm.xlu0 %418, %v415
        %v420 = vpop.permute.xlu0 %419
        %vm421 = vcmp.eq.s32.totalorder %v417, %v420
        %v422 = vsel %vm421, 1, 0
        %v423 = vcvt.s32.f32 %v422
        %v424 = vadd.f32 %v423, 0.0
        %425 = vset.pattern.permute.xlu0 4
        %426 = vperm.xlu0 %425, %v415
        %v427 = vpop.permute.xlu0 %426
        %vm428 = vcmp.eq.s32.totalorder %v417, %v427
        %v429 = vsel %vm428, 1, 0
        %v430 = vcvt.s32.f32 %v429
        %v431 = vadd.f32 %v430, 0.0
        %432 = vset.pattern.permute.xlu0 1
        %433 = vperm.xlu0 %432, %v415
        %v434 = vpop.permute.xlu0 %433
        %vm435 = vcmp.eq.s32.totalorder %v417, %v434
        %v436 = vsel %vm435, 1, 0
        %v437 = vcvt.s32.f32 %v436
        %v438 = vadd.f32 %v424, %v437
        %439 = vset.pattern.permute.xlu0 5
        %440 = vperm.xlu0 %439, %v415
        %v441 = vpop.permute.xlu0 %440
        %vm442 = vcmp.eq.s32.totalorder %v417, %v441
        %v443 = vsel %vm442, 1, 0
        %v444 = vcvt.s32.f32 %v443
        %v445 = vadd.f32 %v431, %v444
        %446 = vset.pattern.permute.xlu0 2
        %447 = vperm.xlu0 %446, %v415
        %v448 = vpop.permute.xlu0 %447
        %vm449 = vcmp.eq.s32.totalorder %v417, %v448
        %v450 = vsel %vm449, 1, 0
        %v451 = vcvt.s32.f32 %v450
        %v452 = vadd.f32 %v438, %v451
        %453 = vset.pattern.permute.xlu0 6
        %454 = vperm.xlu0 %453, %v415
        %v455 = vpop.permute.xlu0 %454
        %vm456 = vcmp.eq.s32.totalorder %v417, %v455
        %v457 = vsel %vm456, 1, 0
        %v458 = vcvt.s32.f32 %v457
        %v459 = vadd.f32 %v445, %v458
        %460 = vset.pattern.permute.xlu0 3
        %461 = vperm.xlu0 %460, %v415
        %v462 = vpop.permute.xlu0 %461
        %vm463 = vcmp.eq.s32.totalorder %v417, %v462
        %v464 = vsel %vm463, 1, 0
        %v465 = vcvt.s32.f32 %v464
        %v466 = vadd.f32 %v452, %v465
        %467 = vset.pattern.permute.xlu0 7
        %468 = vperm.xlu0 %467, %v415
        %v469 = vpop.permute.xlu0 %468
        %vm470 = vcmp.eq.s32.totalorder %v417, %v469
        %v471 = vsel %vm470, 1, 0
        %v472 = vcvt.s32.f32 %v471
        %v473 = vadd.f32 %v459, %v472
        %vm474 = vcmask 130048
        %v476 = vsel %vm474, %v473, 0
        %478 = vmatprep.subr.mxu0 0.0
        %479 = vmatpush1.msra.mxu0 %v413
        %480 = vmatprep.subr.mxu0 0.0
        %481 = vmatpush1.msra.mxu0 %v414
        %482 = vmatprep.subr.mxu0 0.0
        %483 = vmatpush1.msra.mxu0 0.0
        %484 = vmatprep.subr.mxu0 0.0
        %485 = vmatpush1.msra.mxu0 0.0
        %486 = vmatprep.subr.mxu0 0.0
        %487 = vmatpush1.msra.mxu0 0.0
        %488 = vmatprep.subr.mxu0 0.0
        %489 = vmatpush1.msra.mxu0 0.0
        %490 = vmatprep.subr.mxu0 0.0
        %491 = vmatpush1.msra.mxu0 0.0
        %492 = vmatprep.subr.mxu0 0.0
        %493 = vmatpush1.msra.mxu0 0.0
        %494 = vmatprep.subr.mxu0 0.0
        %495 = vmatpush1.msra.mxu0 0.0
        %496 = vmatprep.subr.mxu0 0.0
        %497 = vmatpush1.msra.mxu0 0.0
        %498 = vmatprep.subr.mxu0 0.0
        %499 = vmatpush1.msra.mxu0 0.0
        %500 = vmatprep.subr.mxu0 0.0
        %501 = vmatpush1.msra.mxu0 0.0
        %502 = vmatprep.subr.mxu0 0.0
        %503 = vmatpush1.msra.mxu0 0.0
        %504 = vmatprep.subr.mxu0 0.0
        %505 = vmatpush1.msra.mxu0 0.0
        %506 = vmatprep.subr.mxu0 0.0
        %507 = vmatpush1.msra.mxu0 0.0
        %508 = vmatprep.subr.mxu0 0.0
        %509 = vmatpush1.msra.mxu0 0.0
        %510 = vmatprep.subr.mxu0 0.0
        %511 = vmatpush1.msra.mxu0 0.0
        %512 = vmatprep.subr.mxu0 0.0
        %513 = vmatpush1.msra.mxu0 0.0
        %514 = vmatprep.subr.mxu0 0.0
        %515 = vmatpush1.msra.mxu0 0.0
        %516 = vmatprep.subr.mxu0 0.0
        %517 = vmatpush1.msra.mxu0 0.0
        %518 = vmatprep.subr.mxu0 0.0
        %519 = vmatpush1.msra.mxu0 0.0
        %520 = vmatprep.subr.mxu0 0.0
        %521 = vmatpush1.msra.mxu0 0.0
        %522 = vmatprep.subr.mxu0 0.0
        %523 = vmatpush1.msra.mxu0 0.0
        %524 = vmatprep.subr.mxu0 0.0
        %525 = vmatpush1.msra.mxu0 0.0
        %526 = vmatprep.subr.mxu0 0.0
        %527 = vmatpush1.msra.mxu0 0.0
        %528 = vmatprep.subr.mxu0 0.0
        %529 = vmatpush1.msra.mxu0 0.0
        %530 = vmatprep.subr.mxu0 0.0
        %531 = vmatpush1.msra.mxu0 0.0
        %532 = vmatprep.subr.mxu0 0.0
        %533 = vmatpush1.msra.mxu0 0.0
        %534 = vmatprep.subr.mxu0 0.0
        %535 = vmatpush1.msra.mxu0 0.0
        %536 = vmatprep.subr.mxu0 0.0
        %537 = vmatpush1.msra.mxu0 0.0
        %538 = vmatprep.subr.mxu0 0.0
        %539 = vmatpush1.msra.mxu0 0.0
        %540 = vmatprep.subr.mxu0 0.0
        %541 = vmatpush1.msra.mxu0 0.0
        %542 = vmatprep.mubr.f32.mxu0 0.0
        %543 = vmatmul.mubr.f32.gmra.mrb[0].mxu0 %v476
        %v544 = vpop.f32.mrb[0].mxu0
        %v545 = vadd.f32 0.0, %v544
        %v546 = vpop.f32.mrb[0].mxu0
        %547 = vdwg.mxu0
        %vm548 = vcmask 64512
        %v550 = vsel %vm548, %v466, 0
        %552 = vmatprep.subr.mxu0 0.0
        %553 = vmatpush1.msra.mxu0 %v412
        %554 = vmatprep.subr.mxu0 0.0
        %555 = vmatpush1.msra.mxu0 0.0
        %556 = vmatprep.subr.mxu0 0.0
        %557 = vmatpush1.msra.mxu0 0.0
        %558 = vmatprep.subr.mxu0 0.0
        %559 = vmatpush1.msra.mxu0 0.0
        %560 = vmatprep.subr.mxu0 0.0
        %561 = vmatpush1.msra.mxu0 0.0
        %562 = vmatprep.subr.mxu0 0.0
        %563 = vmatpush1.msra.mxu0 0.0
        %564 = vmatprep.subr.mxu0 0.0
        %565 = vmatpush1.msra.mxu0 0.0
        %566 = vmatprep.subr.mxu0 0.0
        %567 = vmatpush1.msra.mxu0 0.0
        %568 = vmatprep.subr.mxu0 0.0
        %569 = vmatpush1.msra.mxu0 0.0
        %570 = vmatprep.subr.mxu0 0.0
        %571 = vmatpush1.msra.mxu0 0.0
        %572 = vmatprep.subr.mxu0 0.0
        %573 = vmatpush1.msra.mxu0 0.0
        %574 = vmatprep.subr.mxu0 0.0
        %575 = vmatpush1.msra.mxu0 0.0
        %576 = vmatprep.subr.mxu0 0.0
        %577 = vmatpush1.msra.mxu0 0.0
        %578 = vmatprep.subr.mxu0 0.0
        %579 = vmatpush1.msra.mxu0 0.0
        %580 = vmatprep.subr.mxu0 0.0
        %581 = vmatpush1.msra.mxu0 0.0
        %582 = vmatprep.subr.mxu0 0.0
        %583 = vmatpush1.msra.mxu0 0.0
        %584 = vmatprep.subr.mxu0 0.0
        %585 = vmatpush1.msra.mxu0 0.0
        %586 = vmatprep.subr.mxu0 0.0
        %587 = vmatpush1.msra.mxu0 0.0
        %588 = vmatprep.subr.mxu0 0.0
        %589 = vmatpush1.msra.mxu0 0.0
        %590 = vmatprep.subr.mxu0 0.0
        %591 = vmatpush1.msra.mxu0 0.0
        %592 = vmatprep.subr.mxu0 0.0
        %593 = vmatpush1.msra.mxu0 0.0
        %594 = vmatprep.subr.mxu0 0.0
        %595 = vmatpush1.msra.mxu0 0.0
        %596 = vmatprep.subr.mxu0 0.0
        %597 = vmatpush1.msra.mxu0 0.0
        %598 = vmatprep.subr.mxu0 0.0
        %599 = vmatpush1.msra.mxu0 0.0
        %600 = vmatprep.subr.mxu0 0.0
        %601 = vmatpush1.msra.mxu0 0.0
        %602 = vmatprep.subr.mxu0 0.0
        %603 = vmatpush1.msra.mxu0 0.0
        %604 = vmatprep.subr.mxu0 0.0
        %605 = vmatpush1.msra.mxu0 0.0
        %606 = vmatprep.subr.mxu0 0.0
        %607 = vmatpush1.msra.mxu0 0.0
        %608 = vmatprep.subr.mxu0 0.0
        %609 = vmatpush1.msra.mxu0 0.0
        %610 = vmatprep.subr.mxu0 0.0
        %611 = vmatpush1.msra.mxu0 0.0
        %612 = vmatprep.subr.mxu0 0.0
        %613 = vmatpush1.msra.mxu0 0.0
        %614 = vmatprep.subr.mxu0 0.0
        %615 = vmatpush1.msra.mxu0 0.0
        %616 = vmatprep.mubr.f32.mxu0 0.0
        %617 = vmatmul.mubr.f32.gmra.mrb[0].mxu0 %v550
        %v618 = vpop.f32.mrb[0].mxu0
        %v619 = vadd.f32 %v545, %v618
        %v620 = vpop.f32.mrb[0].mxu0
        %621 = vdwg.mxu0
        %v622 = vld [vmem:[#allocation8] sm:$0xff]
        %v623 = vld [vmem:[#allocation8 + $0x8] sm:$0xff]
        %v624 = vld [vmem:[#allocation8 + $0x10] sm:$0xff]
        %v625 = vld [vmem:[#allocation8 + $0x18] sm:$0xff]
        %v626 = vld [vmem:[#allocation8 + $0x20] sm:$0xff]
        %v627 = vld [vmem:[#allocation8 + $0x28] sm:$0xff]
        %v628 = vld [vmem:[#allocation8 + $0x30] sm:$0xff]
        %v629 = vld [vmem:[#allocation8 + $0x38] sm:$0xff]
        %v630 = vld [vmem:[#allocation8 + $0x40] sm:$0xff]
        %v631 = vld [vmem:[#allocation8 + $0x48] sm:$0xff]
        %v632 = vld [vmem:[#allocation8 + $0x50] sm:$0xff]
        %v633 = vld [vmem:[#allocation8 + $0x58] sm:$0xff]
        %v634 = vld [vmem:[#allocation8 + $0x60] sm:$0xff]
        %v635 = vld [vmem:[#allocation8 + $0x68] sm:$0xff]
        %v636 = vld [vmem:[#allocation8 + $0x70] sm:$0xff]
        %v637 = vld [vmem:[#allocation8 + $0x78] sm:$0xff]
        %v638 = vld [vmem:[#allocation8 + $0x80] sm:$0xff]
        %v639 = vld [vmem:[#allocation8 + $0x88] sm:$0xff]
        %v640 = vld [vmem:[#allocation8 + $0x90] sm:$0xff]
        %v641 = vld [vmem:[#allocation8 + $0x98] sm:$0xff]
        %v642 = vld [vmem:[#allocation8 + $0xa0] sm:$0xff]
        %v643 = vld [vmem:[#allocation8 + $0xa8] sm:$0xff]
        %v644 = vld [vmem:[#allocation8 + $0xb0] sm:$0xff]
        %v645 = vld [vmem:[#allocation8 + $0xb8] sm:$0xff]
        %v646 = vld [vmem:[#allocation8 + $0xc0] sm:$0xff]
        %v647 = vld [vmem:[#allocation8 + $0xc8] sm:$0xff]
        %v648 = vld [vmem:[#allocation8 + $0xd0] sm:$0xff]
        %v649 = vld [vmem:[#allocation8 + $0xd8] sm:$0xff]
        %v650 = vld [vmem:[#allocation8 + $0xe0] sm:$0xff]
        %v651 = vld [vmem:[#allocation8 + $0xe8] sm:$0xff]
        %v652 = vld [vmem:[#allocation8 + $0xf0] sm:$0xff]
        %v653 = vld [vmem:[#allocation8 + $0xf8] sm:$0xff]
        %v654 = vld [vmem:[#allocation8 + $0x100] sm:$0xff]
        %v655 = vld [vmem:[#allocation8 + $0x108] sm:$0xff]
        %v656 = vld [vmem:[#allocation8 + $0x110] sm:$0xff]
        %v657 = vld [vmem:[#allocation8 + $0x118] sm:$0xff]
        %v658 = vld [vmem:[#allocation8 + $0x120] sm:$0xff]
        %v659 = vld [vmem:[#allocation8 + $0x128] sm:$0xff]
        %v660 = vld [vmem:[#allocation8 + $0x130] sm:$0xff]
        %v661 = vld [vmem:[#allocation8 + $0x138] sm:$0xff]
        %v662 = vld [vmem:[#allocation8 + $0x140] sm:$0xff]
        %v663 = vld [vmem:[#allocation8 + $0x148] sm:$0xff]
        %v664 = vld [vmem:[#allocation8 + $0x150] sm:$0xff]
        %v665 = vld [vmem:[#allocation8 + $0x158] sm:$0xff]
        %v666 = vld [vmem:[#allocation8 + $0x160] sm:$0xff]
        %v667 = vld [vmem:[#allocation8 + $0x168] sm:$0xff]
        %v668 = vld [vmem:[#allocation8 + $0x170] sm:$0xff]
        %v669 = vld [vmem:[#allocation8 + $0x178] sm:$0xff]
        %v670 = vld [vmem:[%s6] sm:$0x7]
        %v672 = vlaneseq
        %v673 = vshrl.u32 %v672, 7
        %v674 = vsub.s32 0, %v673
        %v675 = vrot.slane %v670, %v674
        %v676 = vlaneseq
        %v677 = vshrl.u32 %v676, 7
        %v678 = vsub.s32 1, %v677
        %v679 = vrot.slane %v670, %v678
        %v680 = vlaneseq
        %v681 = vshrl.u32 %v680, 7
        %v682 = vsub.s32 2, %v681
        %v683 = vrot.slane %v670, %v682
        %687 = vmatprep.subr.mxu0 %v623
        %688 = vmatpush1.msra.mxu0 %v622
        %689 = vmatprep.subr.mxu0 %v626
        %690 = vmatpush1.msra.mxu0 %v625
        %691 = vmatprep.subr.mxu0 %v629
        %692 = vmatpush1.msra.mxu0 %v628
        %693 = vmatprep.subr.mxu0 %v632
        %694 = vmatpush1.msra.mxu0 %v631
        %695 = vmatprep.subr.mxu0 %v635
        %696 = vmatpush1.msra.mxu0 %v634
        %697 = vmatprep.subr.mxu0 %v638
        %698 = vmatpush1.msra.mxu0 %v637
        %699 = vmatprep.subr.mxu0 %v641
        %700 = vmatpush1.msra.mxu0 %v640
        %701 = vmatprep.subr.mxu0 %v644
        %702 = vmatpush1.msra.mxu0 %v643
        %703 = vmatprep.subr.mxu0 %v647
        %704 = vmatpush1.msra.mxu0 %v646
        %705 = vmatprep.subr.mxu0 %v650
        %706 = vmatpush1.msra.mxu0 %v649
        %707 = vmatprep.subr.mxu0 %v653
        %708 = vmatpush1.msra.mxu0 %v652
        %709 = vmatprep.subr.mxu0 %v656
        %710 = vmatpush1.msra.mxu0 %v655
        %711 = vmatprep.subr.mxu0 %v659
        %712 = vmatpush1.msra.mxu0 %v658
        %713 = vmatprep.subr.mxu0 %v662
        %714 = vmatpush1.msra.mxu0 %v661
        %715 = vmatprep.subr.mxu0 %v665
        %716 = vmatpush1.msra.mxu0 %v664
        %717 = vmatprep.subr.mxu0 %v668
        %718 = vmatpush1.msra.mxu0 %v667
        %719 = vmatprep.subr.mxu0 0.0
        %720 = vmatpush1.msra.mxu0 0.0
        %721 = vmatprep.subr.mxu0 0.0
        %722 = vmatpush1.msra.mxu0 0.0
        %723 = vmatprep.subr.mxu0 0.0
        %724 = vmatpush1.msra.mxu0 0.0
        %725 = vmatprep.subr.mxu0 0.0
        %726 = vmatpush1.msra.mxu0 0.0
        %727 = vmatprep.subr.mxu0 0.0
        %728 = vmatpush1.msra.mxu0 0.0
        %729 = vmatprep.subr.mxu0 0.0
        %730 = vmatpush1.msra.mxu0 0.0
        %731 = vmatprep.subr.mxu0 0.0
        %732 = vmatpush1.msra.mxu0 0.0
        %733 = vmatprep.subr.mxu0 0.0
        %734 = vmatpush1.msra.mxu0 0.0
        %735 = vmatprep.subr.mxu0 0.0
        %736 = vmatpush1.msra.mxu0 0.0
        %737 = vmatprep.subr.mxu0 0.0
        %738 = vmatpush1.msra.mxu0 0.0
        %739 = vmatprep.subr.mxu0 0.0
        %740 = vmatpush1.msra.mxu0 0.0
        %741 = vmatprep.subr.mxu0 0.0
        %742 = vmatpush1.msra.mxu0 0.0
        %743 = vmatprep.subr.mxu0 0.0
        %744 = vmatpush1.msra.mxu0 0.0
        %745 = vmatprep.subr.mxu0 0.0
        %746 = vmatpush1.msra.mxu0 0.0
        %747 = vmatprep.subr.mxu0 0.0
        %748 = vmatpush1.msra.mxu0 0.0
        %749 = vmatprep.subr.mxu0 0.0
        %750 = vmatpush1.msra.mxu0 0.0
        %751 = vmatprep.mubr.f32.mxu0 0.0
        %752 = vmatmul.mubr.f32.gmra.mrb[0].mxu0 %v619
        %v753 = vpop.f32.mrb[0].mxu0
        %v754 = vadd.f32 %v675, %v753
        %v755 = vpop.f32.mrb[0].mxu0
        %v756 = vadd.f32 %v679, %v755
        %757 = vdwg.mxu0
        %758 = vmatprep.subr.mxu0 0.0
        %759 = vmatpush1.msra.mxu0 %v624
        %760 = vmatprep.subr.mxu0 0.0
        %761 = vmatpush1.msra.mxu0 %v627
        %762 = vmatprep.subr.mxu0 0.0
        %763 = vmatpush1.msra.mxu0 %v630
        %764 = vmatprep.subr.mxu0 0.0
        %765 = vmatpush1.msra.mxu0 %v633
        %766 = vmatprep.subr.mxu0 0.0
        %767 = vmatpush1.msra.mxu0 %v636
        %768 = vmatprep.subr.mxu0 0.0
        %769 = vmatpush1.msra.mxu0 %v639
        %770 = vmatprep.subr.mxu0 0.0
        %771 = vmatpush1.msra.mxu0 %v642
        %772 = vmatprep.subr.mxu0 0.0
        %773 = vmatpush1.msra.mxu0 %v645
        %774 = vmatprep.subr.mxu0 0.0
        %775 = vmatpush1.msra.mxu0 %v648
        %776 = vmatprep.subr.mxu0 0.0
        %777 = vmatpush1.msra.mxu0 %v651
        %778 = vmatprep.subr.mxu0 0.0
        %779 = vmatpush1.msra.mxu0 %v654
        %780 = vmatprep.subr.mxu0 0.0
        %781 = vmatpush1.msra.mxu0 %v657
        %782 = vmatprep.subr.mxu0 0.0
        %783 = vmatpush1.msra.mxu0 %v660
        %784 = vmatprep.subr.mxu0 0.0
        %785 = vmatpush1.msra.mxu0 %v663
        %786 = vmatprep.subr.mxu0 0.0
        %787 = vmatpush1.msra.mxu0 %v666
        %788 = vmatprep.subr.mxu0 0.0
        %789 = vmatpush1.msra.mxu0 %v669
        %790 = vmatprep.subr.mxu0 0.0
        %791 = vmatpush1.msra.mxu0 0.0
        %792 = vmatprep.subr.mxu0 0.0
        %793 = vmatpush1.msra.mxu0 0.0
        %794 = vmatprep.subr.mxu0 0.0
        %795 = vmatpush1.msra.mxu0 0.0
        %796 = vmatprep.subr.mxu0 0.0
        %797 = vmatpush1.msra.mxu0 0.0
        %798 = vmatprep.subr.mxu0 0.0
        %799 = vmatpush1.msra.mxu0 0.0
        %800 = vmatprep.subr.mxu0 0.0
        %801 = vmatpush1.msra.mxu0 0.0
        %802 = vmatprep.subr.mxu0 0.0
        %803 = vmatpush1.msra.mxu0 0.0
        %804 = vmatprep.subr.mxu0 0.0
        %805 = vmatpush1.msra.mxu0 0.0
        %806 = vmatprep.subr.mxu0 0.0
        %807 = vmatpush1.msra.mxu0 0.0
        %808 = vmatprep.subr.mxu0 0.0
        %809 = vmatpush1.msra.mxu0 0.0
        %810 = vmatprep.subr.mxu0 0.0
        %811 = vmatpush1.msra.mxu0 0.0
        %812 = vmatprep.subr.mxu0 0.0
        %813 = vmatpush1.msra.mxu0 0.0
        %814 = vmatprep.subr.mxu0 0.0
        %815 = vmatpush1.msra.mxu0 0.0
        %816 = vmatprep.subr.mxu0 0.0
        %817 = vmatpush1.msra.mxu0 0.0
        %818 = vmatprep.subr.mxu0 0.0
        %819 = vmatpush1.msra.mxu0 0.0
        %820 = vmatprep.subr.mxu0 0.0
        %821 = vmatpush1.msra.mxu0 0.0
        %822 = vmatprep.mubr.f32.mxu0 0.0
        %823 = vmatmul.mubr.f32.gmra.mrb[0].mxu0 %v619
        %v824 = vpop.f32.mrb[0].mxu0
        %v825 = vadd.f32 %v683, %v824
        %v826 = vpop.f32.mrb[0].mxu0
        %827 = vdwg.mxu0
        %v828 = vld [vmem:[#allocation10] sm:$0xff]
        %v829 = vld [vmem:[#allocation10 + $0x8] sm:$0xff]
        %v830 = vld [vmem:[#allocation10 + $0x10] sm:$0xff]
        %v831 = vld [vmem:[#allocation10 + $0x18] sm:$0xff]
        %v832 = vld [vmem:[#allocation10 + $0x20] sm:$0xff]
        %v833 = vld [vmem:[#allocation10 + $0x28] sm:$0xff]
        %v834 = vld [vmem:[#allocation10 + $0x30] sm:$0xff]
        %v835 = vld [vmem:[#allocation10 + $0x38] sm:$0xff]
        %v836 = vld [vmem:[#allocation10 + $0x40] sm:$0xff]
        %v837 = vld [vmem:[#allocation10 + $0x48] sm:$0xff]
        %v838 = vld [vmem:[#allocation10 + $0x50] sm:$0xff]
        %v839 = vld [vmem:[#allocation10 + $0x58] sm:$0xff]
        %v840 = vld [vmem:[#allocation10 + $0x60] sm:$0xff]
        %v841 = vld [vmem:[#allocation10 + $0x68] sm:$0xff]
        %v842 = vld [vmem:[#allocation10 + $0x70] sm:$0xff]
        %v843 = vld [vmem:[#allocation10 + $0x78] sm:$0xff]
        %v844 = vld [vmem:[#allocation10 + $0x80] sm:$0xff]
        %v845 = vld [vmem:[#allocation10 + $0x88] sm:$0xff]
        %v846 = vld [vmem:[#allocation10 + $0x90] sm:$0xff]
        %v847 = vld [vmem:[#allocation10 + $0x98] sm:$0xff]
        %v848 = vld [vmem:[#allocation10 + $0xa0] sm:$0xff]
        %v849 = vld [vmem:[#allocation10 + $0xa8] sm:$0xff]
        %v850 = vld [vmem:[#allocation10 + $0xb0] sm:$0xff]
        %v851 = vld [vmem:[#allocation10 + $0xb8] sm:$0xff]
        %v852 = vld [vmem:[#allocation10 + $0xc0] sm:$0xff]
        %v853 = vld [vmem:[#allocation10 + $0xc8] sm:$0xff]
        %v854 = vld [vmem:[#allocation10 + $0xd0] sm:$0xff]
        %v855 = vld [vmem:[#allocation10 + $0xd8] sm:$0xff]
        %v856 = vld [vmem:[#allocation10 + $0xe0] sm:$0xff]
        %v857 = vld [vmem:[#allocation10 + $0xe8] sm:$0xff]
        %v858 = vld [vmem:[#allocation10 + $0xf0] sm:$0xff]
        %v859 = vld [vmem:[#allocation10 + $0xf8] sm:$0xff]
        %860 = vmatprep.subr.mxu0 %v829
        %861 = vmatpush1.msra.mxu0 %v828
        %862 = vmatprep.subr.mxu0 %v831
        %863 = vmatpush1.msra.mxu0 %v830
        %864 = vmatprep.subr.mxu0 %v833
        %865 = vmatpush1.msra.mxu0 %v832
        %866 = vmatprep.subr.mxu0 %v835
        %867 = vmatpush1.msra.mxu0 %v834
        %868 = vmatprep.subr.mxu0 %v837
        %869 = vmatpush1.msra.mxu0 %v836
        %870 = vmatprep.subr.mxu0 %v839
        %871 = vmatpush1.msra.mxu0 %v838
        %872 = vmatprep.subr.mxu0 %v841
        %873 = vmatpush1.msra.mxu0 %v840
        %874 = vmatprep.subr.mxu0 %v843
        %875 = vmatpush1.msra.mxu0 %v842
        %876 = vmatprep.subr.mxu0 %v845
        %877 = vmatpush1.msra.mxu0 %v844
        %878 = vmatprep.subr.mxu0 %v847
        %879 = vmatpush1.msra.mxu0 %v846
        %880 = vmatprep.subr.mxu0 %v849
        %881 = vmatpush1.msra.mxu0 %v848
        %882 = vmatprep.subr.mxu0 %v851
        %883 = vmatpush1.msra.mxu0 %v850
        %884 = vmatprep.subr.mxu0 %v853
        %885 = vmatpush1.msra.mxu0 %v852
        %886 = vmatprep.subr.mxu0 %v855
        %887 = vmatpush1.msra.mxu0 %v854
        %888 = vmatprep.subr.mxu0 %v857
        %889 = vmatpush1.msra.mxu0 %v856
        %890 = vmatprep.subr.mxu0 %v859
        %891 = vmatpush1.msra.mxu0 %v858
        %892 = vmatprep.subr.mxu0 0.0
        %893 = vmatpush1.msra.mxu0 0.0
        %894 = vmatprep.subr.mxu0 0.0
        %895 = vmatpush1.msra.mxu0 0.0
        %896 = vmatprep.subr.mxu0 0.0
        %897 = vmatpush1.msra.mxu0 0.0
        %898 = vmatprep.subr.mxu0 0.0
        %899 = vmatpush1.msra.mxu0 0.0
        %900 = vmatprep.subr.mxu0 0.0
        %901 = vmatpush1.msra.mxu0 0.0
        %902 = vmatprep.subr.mxu0 0.0
        %903 = vmatpush1.msra.mxu0 0.0
        %904 = vmatprep.subr.mxu0 0.0
        %905 = vmatpush1.msra.mxu0 0.0
        %906 = vmatprep.subr.mxu0 0.0
        %907 = vmatpush1.msra.mxu0 0.0
        %908 = vmatprep.subr.mxu0 0.0
        %909 = vmatpush1.msra.mxu0 0.0
        %910 = vmatprep.subr.mxu0 0.0
        %911 = vmatpush1.msra.mxu0 0.0
        %912 = vmatprep.subr.mxu0 0.0
        %913 = vmatpush1.msra.mxu0 0.0
        %914 = vmatprep.subr.mxu0 0.0
        %915 = vmatpush1.msra.mxu0 0.0
        %916 = vmatprep.subr.mxu0 0.0
        %917 = vmatpush1.msra.mxu0 0.0
        %918 = vmatprep.subr.mxu0 0.0
        %919 = vmatpush1.msra.mxu0 0.0
        %920 = vmatprep.subr.mxu0 0.0
        %921 = vmatpush1.msra.mxu0 0.0
        %922 = vmatprep.subr.mxu0 0.0
        %923 = vmatpush1.msra.mxu0 0.0
        %924 = vmatprep.mubr.f32.mxu0 0.0
        %925 = vmatmul.mubr.f32.gmra.mrb[0].mxu0 %v412
        %v926 = vpop.f32.mrb[0].mxu0
        %v927 = vadd.f32 0.0, %v926
        %v928 = vpop.f32.mrb[0].mxu0
        %v929 = vadd.f32 0.0, %v928
        %930 = vdwg.mxu0
        %v931 = vadd.f32 %v754, %v927
        %v932 = vxor.u32 %v931, 2147483648
        %v933 = vmul.f32 %v932, 1.442695
        %v934 = vpow.pop %v933
        %v935 = vadd.f32 %v934, 1.0
        %v936 = vrcp.pop %v935
        %v937 = vmul.f32 1.0, %v936
        %v938 = vadd.f32 %v756, %v929
        %v939 = vxor.u32 %v938, 2147483648
        %v940 = vmul.f32 %v939, 1.442695
        %v941 = vpow.pop %v940
        %v942 = vadd.f32 %v941, 1.0
        %v943 = vrcp.pop %v942
        %v944 = vmul.f32 1.0, %v943
        %v945 = vmul.f32 %v944, %v412
        %v946 = vld [vmem:[#allocation11] sm:$0xff]
        %v947 = vld [vmem:[#allocation11 + $0x8] sm:$0xff]
        %v948 = vld [vmem:[#allocation11 + $0x10] sm:$0xff]
        %v949 = vld [vmem:[#allocation11 + $0x18] sm:$0xff]
        %v950 = vld [vmem:[#allocation11 + $0x20] sm:$0xff]
        %v951 = vld [vmem:[#allocation11 + $0x28] sm:$0xff]
        %v952 = vld [vmem:[#allocation11 + $0x30] sm:$0xff]
        %v953 = vld [vmem:[#allocation11 + $0x38] sm:$0xff]
        %v954 = vld [vmem:[#allocation11 + $0x40] sm:$0xff]
        %v955 = vld [vmem:[#allocation11 + $0x48] sm:$0xff]
        %v956 = vld [vmem:[#allocation11 + $0x50] sm:$0xff]
        %v957 = vld [vmem:[#allocation11 + $0x58] sm:$0xff]
        %v958 = vld [vmem:[#allocation11 + $0x60] sm:$0xff]
        %v959 = vld [vmem:[#allocation11 + $0x68] sm:$0xff]
        %v960 = vld [vmem:[#allocation11 + $0x70] sm:$0xff]
        %v961 = vld [vmem:[#allocation11 + $0x78] sm:$0xff]
        %962 = vmatprep.subr.mxu0 0.0
        %963 = vmatpush1.msra.mxu0 %v946
        %964 = vmatprep.subr.mxu0 0.0
        %965 = vmatpush1.msra.mxu0 %v947
        %966 = vmatprep.subr.mxu0 0.0
        %967 = vmatpush1.msra.mxu0 %v948
        %968 = vmatprep.subr.mxu0 0.0
        %969 = vmatpush1.msra.mxu0 %v949
        %970 = vmatprep.subr.mxu0 0.0
        %971 = vmatpush1.msra.mxu0 %v950
        %972 = vmatprep.subr.mxu0 0.0
        %973 = vmatpush1.msra.mxu0 %v951
        %974 = vmatprep.subr.mxu0 0.0
        %975 = vmatpush1.msra.mxu0 %v952
        %976 = vmatprep.subr.mxu0 0.0
        %977 = vmatpush1.msra.mxu0 %v953
        %978 = vmatprep.subr.mxu0 0.0
        %979 = vmatpush1.msra.mxu0 %v954
        %980 = vmatprep.subr.mxu0 0.0
        %981 = vmatpush1.msra.mxu0 %v955
        %982 = vmatprep.subr.mxu0 0.0
        %983 = vmatpush1.msra.mxu0 %v956
        %984 = vmatprep.subr.mxu0 0.0
        %985 = vmatpush1.msra.mxu0 %v957
        %986 = vmatprep.subr.mxu0 0.0
        %987 = vmatpush1.msra.mxu0 %v958
        %988 = vmatprep.subr.mxu0 0.0
        %989 = vmatpush1.msra.mxu0 %v959
        %990 = vmatprep.subr.mxu0 0.0
        %991 = vmatpush1.msra.mxu0 %v960
        %992 = vmatprep.subr.mxu0 0.0
        %993 = vmatpush1.msra.mxu0 %v961
        %994 = vmatprep.subr.mxu0 0.0
        %995 = vmatpush1.msra.mxu0 0.0
        %996 = vmatprep.subr.mxu0 0.0
        %997 = vmatpush1.msra.mxu0 0.0
        %998 = vmatprep.subr.mxu0 0.0
        %999 = vmatpush1.msra.mxu0 0.0
        %1000 = vmatprep.subr.mxu0 0.0
        %1001 = vmatpush1.msra.mxu0 0.0
        %1002 = vmatprep.subr.mxu0 0.0
        %1003 = vmatpush1.msra.mxu0 0.0
        %1004 = vmatprep.subr.mxu0 0.0
        %1005 = vmatpush1.msra.mxu0 0.0
        %1006 = vmatprep.subr.mxu0 0.0
        %1007 = vmatpush1.msra.mxu0 0.0
        %1008 = vmatprep.subr.mxu0 0.0
        %1009 = vmatpush1.msra.mxu0 0.0
        %1010 = vmatprep.subr.mxu0 0.0
        %1011 = vmatpush1.msra.mxu0 0.0
        %1012 = vmatprep.subr.mxu0 0.0
        %1013 = vmatpush1.msra.mxu0 0.0
        %1014 = vmatprep.subr.mxu0 0.0
        %1015 = vmatpush1.msra.mxu0 0.0
        %1016 = vmatprep.subr.mxu0 0.0
        %1017 = vmatpush1.msra.mxu0 0.0
        %1018 = vmatprep.subr.mxu0 0.0
        %1019 = vmatpush1.msra.mxu0 0.0
        %1020 = vmatprep.subr.mxu0 0.0
        %1021 = vmatpush1.msra.mxu0 0.0
        %1022 = vmatprep.subr.mxu0 0.0
        %1023 = vmatpush1.msra.mxu0 0.0
        %1024 = vmatprep.subr.mxu0 0.0
        %1025 = vmatpush1.msra.mxu0 0.0
        %1026 = vmatprep.mubr.f32.mxu0 0.0
        %1027 = vmatmul.mubr.f32.gmra.mrb[0].mxu0 %v945
        %v1028 = vpop.f32.mrb[0].mxu0
        %v1029 = vadd.f32 0.0, %v1028
        %v1030 = vpop.f32.mrb[0].mxu0
        %1031 = vdwg.mxu0
        %v1032 = vadd.f32 %v825, %v1029
        %v1033 = vtanh.pop %v1032
        %v1034 = vsub.f32 1.0, %v937
        %v1035 = vmul.f32 %v1034, %v412
        %v1036 = vmul.f32 %v937, %v1033
        %v1037 = vadd.f32 %v1035, %v1036
        %1038 = vst [vmem:[%s411] sm:$0xff] %v1037
        %s1039 = sand.u32 %s199, 1
        %s1040 = scalar_lea.sflag [#allocation4], %s1039
        %s1041 = sand.u32 %s199, 1
        %s1042 = smul.addr %s1041, 8
        %s1043 = scalar_lea.vmem [#allocation13], %s1042
        // Predicated region
        $region73: #{tpu_custom_call.1} parent=47 // pred_check
          %p1044 = pneg %p209
        $region74: #{tpu_custom_call.1} parent=47 // pred_check_branch
          %1046 = sbr.rel (%p1044) target = $region76
        $region75: #{tpu_custom_call.1} parent=47 // pred_region
          %s1048 = ssub.s32 128, 128
          %1049 = vsyncadd %s1040, %s1048
          %s1050 = smul.addr %s29, 128
          %s1051 = scalar_lea.hbm %s7, %s1050
          %s1053 = sshll.u32 %s1043, 4
          %s1054 = int_to_ptr.vmem [resolvable:$true] %s1053
          %1056 = dma.vmem_to_hbm [thread:$0]  %s1054, 128, %s1051, %s1040
        $region76: #{tpu_custom_call.1} parent=47 // pred_fallthru
          _
      $region48: #{tpu_custom_call.1} parent=5 // pred_fallthru
        _
      %p1057 = scmp.le.s32.totalorder 2, %s24
      // Predicated region
      $region77: #{tpu_custom_call.1} parent=5 // pred_check
        %p1058 = pneg %p1057
      $region78: #{tpu_custom_call.1} parent=5 // pred_check_branch
        %1060 = sbr.rel (%p1058) target = $region80
      $region79: #{tpu_custom_call.1} parent=5 // pred_region
        %s1061 = ssub.s32 %s24, 2
        // Predicated region
        $region81: #{tpu_custom_call.1} parent=79 // pred_check
          %p1062 = pneg %p215
        $region82: #{tpu_custom_call.1} parent=79 // pred_check_branch
          %1064 = sbr.rel (%p1062) target = $region84
        $region83: #{tpu_custom_call.1} parent=79 // pred_region
          %s1065 = sand.u32 %s200, 1
          %s1066 = scalar_lea.sflag [#allocation4], %s1065
          %s1067 = sand.u32 %s200, 1
          %s1068 = smul.addr %s1067, 8
          %s1069 = scalar_lea.vmem [#allocation13], %s1068
          %1070 = dma.done %s1066, 128
        $region84: #{tpu_custom_call.1} parent=79 // pred_fallthru
          _
      $region80: #{tpu_custom_call.1} parent=5 // pred_fallthru
        _
    $region6: #{tpu_custom_call.1} parent=1 // loop_footer
      %s28 = sadd.s32 1, %s24
    $region7: #{tpu_custom_call.1} parent=1 // loop_footer_branch
      %23 = sbr.rel target = $region3
    $region8: #{tpu_custom_call.1} parent=1 // loop_exit
      _
    %1071 = vsyncpa [#allocation3], 1
    %s1072 = scalar_lea.sflag [#allocation3], 1
    %1073 = vsyncpa %s1072, 1
    %1074 = vsyncpa [#allocation6], 1
    %s1075 = scalar_lea.sflag [#allocation6], 1
    %1076 = vsyncpa %s1075, 1
    %1077 = vsyncpa [#allocation9], 1
    %1078 = vsyncpa [#allocation12], 1
    %1079 = vsyncpa [#allocation4], 1
    %s1080 = scalar_lea.sflag [#allocation4], 1
    %1081 = vsyncpa %s1080, 1

</llo_original>
